<compile_context>
chip_gen: v5e
topology: v5e:2x2
jax: 0.10.0
libtpu: 0.0.40
codegen_flags: <defaults>
</compile_context>

<pallas_src>
import math
import functools
from collections.abc import Iterable
from itertools import repeat

import jax
import jax.numpy as jnp
from jax.experimental import pallas as pl
from jax.experimental.pallas import tpu as pltpu


def _pair(v):
    if isinstance(v, Iterable):
        v = tuple(v)
        assert len(v) == 2, "len(v) != 2"
        return v
    return tuple(repeat(v, 2))


def _ceil_pool_dim(size, k, s):
    o = -(-(size - k) // s) + 1              # ceil((size-k)/s) + 1
    if (o - 1) * s >= size:                  # PyTorch ceil_mode rule (pad=0)
        o -= 1
    return o


# ---------------------------- fused Pallas kernel ----------------------------

def _vgg_fused_kernel(x_ref, *args, num_layers, KH, KW, ph, pw, Ho, Wo, Cout,
                      pool, P, Hpo, Wpo, Hz, Wz, pad_h, pad_w):
    # args layout: w_0, b_0, ..., w_{L-1}, b_{L-1}, o_ref, [act], [pz, pzw]
    w_refs = args[0:2 * num_layers:2]         # (K_l, Cout) bf16
    b_refs = args[1:2 * num_layers:2]         # (1, Cout)   f32
    o_ref = args[2 * num_layers]              # (1, Cout, Nout)
    scratch = list(args[2 * num_layers + 1:])
    act_ref = scratch.pop(0) if num_layers > 1 else None
    pz_ref, pzw_ref = (scratch if pool else (None, None))

    M = Ho * Wo

    def conv_relu(load_tap, cin, w_ref, b_ref):
        # In-kernel im2col: KH*KW shifted slices of the zero-padded input tile,
        # concatenated along the feature axis, then ONE MXU matmul (K merged
        # across all taps), bias add and ReLU fused in the epilogue.
        taps = [load_tap(kh, kw) for kh in range(KH) for kw in range(KW)]
        patches = jnp.concatenate(taps, axis=-1)          # (Ho, Wo, KH*KW*cin)
        patches = patches.reshape(M, KH * KW * cin)        # (M, K)  (Wo % 8 == 0)
        y = jnp.dot(patches.astype(jnp.bfloat16), w_ref[...],
                    preferred_element_type=jnp.float32)    # f32 accumulation
        return jnp.maximum(y + b_ref[...], 0.0)             # bias + ReLU, (M, Cout)

    # Layer 0 reads the zero-padded NHWC input block directly.
    cin0 = x_ref.shape[3]
    y = conv_relu(lambda kh, kw: x_ref[0, kh:kh + Ho, kw:kw + Wo, :],
                  cin0, w_refs[0], b_refs[0])

    # Remaining layers read/write a zero-bordered VMEM scratch: intermediate
    # activations never go to HBM.
    if num_layers > 1:
        act_ref[...] = jnp.zeros_like(act_ref)   # zero halo once ('same' conv pad)
        for l in range(1, num_layers):
            act_ref[ph:ph + Ho, pw:pw + Wo, :] = y.reshape(Ho, Wo, Cout)
            y = conv_relu(lambda kh, kw: act_ref[kh:kh + Ho, kw:kw + Wo, :],
                          Cout, w_refs[l], b_refs[l])

    if pool:
        # ceil_mode max-pool fused into the conv epilogue. Zero padding is exact
        # here: activations are post-ReLU (>= 0) and every ceil window contains
        # at least one real element.
        if pad_h or pad_w:
            pz_ref[...] = jnp.zeros_like(pz_ref)
        pz_ref[0:Ho, 0:Wo, :] = y.reshape(Ho, Wo, Cout)
        # H pooling: split the leading dim into (Hpo, P) windows (free regroup).
        t = pz_ref[...].reshape(Hpo, P, Wz, Cout)
        red = t[:, 0]
        for dh in range(1, P):
            red = jnp.maximum(red, t[:, dh])                # (Hpo, Wz, Cout)
        # W pooling: flatten rows and take P strided sublane loads (stride = P).
        pzw_ref[...] = red.reshape(Hpo * Wz, Cout)
        out = pzw_ref[pl.ds(0, Hpo * Wpo, stride=P), :]
        for dw in range(1, P):
            out = jnp.maximum(out, pzw_ref[pl.ds(dw, Hpo * Wpo, stride=P), :])
    else:
        out = y                                             # (M, Cout)

    # Lane-dense, channels-first store: (Cout, spatial) with spatial on lanes.
    o_ref[0] = out.T.astype(o_ref.dtype)


# ---------------------------- wrapper ----------------------------

def vgg_block_forward_pallas(x_nchw, params, conv_stride, padding, pool_k, pool_s):
    B, Cin0, H, W = x_nchw.shape
    L = len(params)
    Cout, _, KH, KW = params[0][0].shape
    sh, sw = _pair(conv_stride)
    ph, pw = padding
    # Fused fast path assumes the VGGBlock defaults: stride-1 'same' convs.
    assert (sh, sw) == (1, 1), "TODO(synk): conv_stride != 1 not implemented"
    assert KH % 2 == 1 and KW % 2 == 1 and (ph, pw) == (KH // 2, KW // 2), \
        "TODO(synk): only 'same' padding with odd kernels is fused"

    Ho, Wo = H, W
    M = Ho * Wo
    Hp, Wp = H + 2 * ph, W + 2 * pw

    pool = pool_k is not None
    if pool:
        PKH, PKW = pool_k
        PSH, PSW = _pair(pool_s)
        assert PKH == PKW == PSH == PSW, \
            "TODO(synk): only square pooling with kernel == stride is fused"
        P = int(PSH)
        Hpo = _ceil_pool_dim(Ho, PKH, P)
        Wpo = _ceil_pool_dim(Wo, PKW, P)
        pad_h = max(0, (Hpo - 1) * P + PKH - Ho)
        pad_w = max(0, (Wpo - 1) * P + PKW - Wo)
        Hz, Wz = Ho + pad_h, Wo + pad_w
        Nout = Hpo * Wpo
    else:
        P = Hpo = Wpo = Hz = Wz = pad_h = pad_w = 0
        Nout = M

    # Host glue (layout only, tiny): NCHW -> NHWC + zero pad of the first-layer
    # input. Later activations never leave VMEM.
    x = jnp.transpose(x_nchw, (0, 2, 3, 1)).astype(jnp.float32)
    xp = jnp.pad(x, ((0, 0), (ph, ph), (pw, pw), (0, 0)))

    # Flatten weights to (K, Cout) with K ordered (kh, kw, ci) -- matching the
    # in-kernel tap concatenation order -- and cast to bf16 for the MXU.
    flat_args = []
    in_specs = [pl.BlockSpec((1, Hp, Wp, Cin0), lambda b: (b, 0, 0, 0))]
    for (w, b) in params:
        k = w.shape[1] * KH * KW
        wf = jnp.transpose(w, (2, 3, 1, 0)).reshape(k, Cout).astype(jnp.bfloat16)
        bf = b.reshape(1, Cout).astype(jnp.float32)
        flat_args += [wf, bf]
        in_specs.append(pl.BlockSpec((k, Cout), lambda b: (0, 0)))
        in_specs.append(pl.BlockSpec((1, Cout), lambda b: (0, 0)))

    scratch_shapes = []
    if L > 1:
        scratch_shapes.append(pltpu.VMEM((Hp, Wp, Cout), jnp.float32))
    if pool:
        scratch_shapes.append(pltpu.VMEM((Hz, Wz, Cout), jnp.float32))
        scratch_shapes.append(pltpu.VMEM((Hpo * Wz, Cout), jnp.float32))

    kernel = functools.partial(
        _vgg_fused_kernel, num_layers=L, KH=KH, KW=KW, ph=ph, pw=pw,
        Ho=Ho, Wo=Wo, Cout=Cout, pool=pool, P=P, Hpo=Hpo, Wpo=Wpo,
        Hz=Hz, Wz=Wz, pad_h=pad_h, pad_w=pad_w)

    out = pl.pallas_call(
        kernel,
        out_shape=jax.ShapeDtypeStruct((B, Cout, Nout), jnp.float32),
        grid=(B,),
        in_specs=in_specs,
        out_specs=pl.BlockSpec((1, Cout, Nout), lambda b: (b, 0, 0)),
        scratch_shapes=scratch_shapes,
        compiler_params=pltpu.CompilerParams(
            dimension_semantics=("parallel",),
            vmem_limit_bytes=32 * 1024 * 1024),
    )(xp, *flat_args)

    if pool:
        return out.reshape(B, Cout, Hpo, Wpo)
    return out.reshape(B, Cout, Ho, Wo)


# ---------------------------- VGGBlock module ----------------------------

class VGGBlockPallas:
    """Input: (B, in_channels, seq_len, inp_dim) NCHW. Output: (B, out_channels, H', W')."""

    def __init__(self, inp_dim, in_channels, out_channels, conv_kernel_size,
                 conv_stride, num_conv_layers, pooling_kernel_size,
                 pooling_stride, padding=None, key=None):
        self.inp_dim = inp_dim
        self.in_channels = in_channels
        self.out_channels = out_channels
        self.conv_kernel_size = _pair(conv_kernel_size)
        self.conv_stride = conv_stride
        self.pooling_kernel_size = (_pair(pooling_kernel_size)
                                    if pooling_kernel_size is not None else None)
        self.pooling_stride = pooling_stride
        self.padding = (tuple(e // 2 for e in self.conv_kernel_size)
                        if padding is None else _pair(padding))
        KH, KW = self.conv_kernel_size

        # Deterministic Conv2d-style parameter init (uniform(-1/sqrt(fan_in), +)).
        key = jax.random.PRNGKey(0) if key is None else key
        self.params = []
        for layer in range(num_conv_layers):
            cin = in_channels if layer == 0 else out_channels
            key, k_w, k_b = jax.random.split(key, 3)
            bound = 1.0 / math.sqrt(cin * KH * KW)
            w = jax.random.uniform(k_w, (out_channels, cin, KH, KW),
                                   jnp.float32, -bound, bound)
            b = jax.random.uniform(k_b, (out_channels,), jnp.float32, -bound, bound)
            self.params.append((w, b))
        # TODO(synk): infer_conv_output_dim / total_output_dim are init-time
        # bookkeeping (not part of forward); not replicated here.

    def __call__(self, x_nchw):
        return vgg_block_forward_pallas(
            x_nchw, self.params, self.conv_stride, self.padding,
            self.pooling_kernel_size, self.pooling_stride)


# ---------------------------- pure-JAX reference ----------------------------

def vgg_block_ref(x_nchw, params, stride, padding, pool_k, pool_s):
    x = x_nchw
    for w, b in params:
        x = jax.lax.conv_general_dilated(
            x, w, window_strides=(stride, stride),
            padding=[(padding[0], padding[0]), (padding[1], padding[1])],
            dimension_numbers=("NCHW", "OIHW", "NCHW"),
            precision=jax.lax.Precision.HIGHEST)
        x = jnp.maximum(x + b[None, :, None, None], 0.0)
    if pool_k is not None:
        KH, KW = pool_k
        S = int(pool_s)
        B, C, H, W = x.shape
        Ho = _ceil_pool_dim(H, KH, S)
        Wo = _ceil_pool_dim(W, KW, S)
        ph = max(0, (Ho - 1) * S + KH - H)
        pw = max(0, (Wo - 1) * S + KW - W)
        xp = jnp.pad(x, ((0, 0), (0, 0), (0, ph), (0, pw)),
                     constant_values=-jnp.inf)
        x = jax.lax.reduce_window(xp, -jnp.inf, jax.lax.max,
                                  (1, 1, KH, KW), (1, 1, S, S), "VALID")
    return x


# ---------------------------- main ----------------------------

if __name__ == "__main__":
    B, in_channels, seq_len, inp_dim = 2, 1, 16, 16
    out_channels = 4

    block = VGGBlockPallas(
        inp_dim=inp_dim, in_channels=in_channels, out_channels=out_channels,
        conv_kernel_size=3, conv_stride=1, num_conv_layers=2,
        pooling_kernel_size=2, pooling_stride=2,
        key=jax.random.PRNGKey(42))

    x = jax.random.normal(jax.random.PRNGKey(0),
                          (B, in_channels, seq_len, inp_dim), jnp.float32)

    y = jax.block_until_ready(block(x))

    y_ref = vgg_block_ref(x, block.params, 1, block.padding,
                          block.pooling_kernel_size, block.pooling_stride)
    assert y.shape == y_ref.shape, (y.shape, y_ref.shape)
    max_err = float(jnp.max(jnp.abs(y - y_ref)))
    assert jnp.allclose(y, y_ref, rtol=2e-2, atol=2e-2), max_err

    print("KERNEL_OK")
</pallas_src>

<mosaic_0001>
module attributes {stable_mosaic.version = 11 : i64} {
  func.func @_vgg_fused_kernel(%arg0: i32, %arg1: memref<1x18x18x1xf32, #tpu.memory_space<vmem>>, %arg2: memref<9x4xbf16, #tpu.memory_space<vmem>>, %arg3: memref<1x4xf32, #tpu.memory_space<vmem>>, %arg4: memref<36x4xbf16, #tpu.memory_space<vmem>>, %arg5: memref<1x4xf32, #tpu.memory_space<vmem>>, %arg6: memref<1x4x64xf32, #tpu.memory_space<vmem>>, %arg7: memref<18x18x4xf32, #tpu.memory_space<vmem>>, %arg8: memref<16x16x4xf32, #tpu.memory_space<vmem>>, %arg9: memref<128x4xf32, #tpu.memory_space<vmem>>) attributes {dimension_semantics = [#tpu.dimension_semantics<parallel>], iteration_bounds = array<i64: 2>, scalar_prefetch = 0 : i64, scratch_operands = 3 : i64, tpu.core_type = #tpu.core_type<tc>, window_params = [{transform_indices = @transform_0, window_bounds = array<i64: 1, 18, 18, 1>}, {pipeline_mode = #tpu.pipeline_mode<synchronous>, transform_indices = @transform_1, window_bounds = array<i64: 9, 4>}, {pipeline_mode = #tpu.pipeline_mode<synchronous>, transform_indices = @transform_2, window_bounds = array<i64: 1, 4>}, {pipeline_mode = #tpu.pipeline_mode<synchronous>, transform_indices = @transform_3, window_bounds = array<i64: 36, 4>}, {pipeline_mode = #tpu.pipeline_mode<synchronous>, transform_indices = @transform_4, window_bounds = array<i64: 1, 4>}, {transform_indices = @transform_5, window_bounds = array<i64: 1, 4, 64>}]} {
    %c0 = arith.constant 0 : index
    %c0_0 = arith.constant 0 : index
    %c0_1 = arith.constant 0 : index
    %c0_2 = arith.constant 0 : index
    %0 = vector.load %arg1[%c0, %c0_0, %c0_1, %c0_2] : memref<1x18x18x1xf32, #tpu.memory_space<vmem>>, vector<1x16x16x1xf32>
    %1 = vector.shape_cast %0 : vector<1x16x16x1xf32> to vector<16x16x1xf32>
    %c0_3 = arith.constant 0 : index
    %c0_4 = arith.constant 0 : index
    %c1 = arith.constant 1 : index
    %c0_5 = arith.constant 0 : index
    %2 = vector.load %arg1[%c0_3, %c0_4, %c1, %c0_5] : memref<1x18x18x1xf32, #tpu.memory_space<vmem>>, vector<1x16x16x1xf32>
    %3 = vector.shape_cast %2 : vector<1x16x16x1xf32> to vector<16x16x1xf32>
    %c0_6 = arith.constant 0 : index
    %c0_7 = arith.constant 0 : index
    %c2 = arith.constant 2 : index
    %c0_8 = arith.constant 0 : index
    %4 = vector.load %arg1[%c0_6, %c0_7, %c2, %c0_8] : memref<1x18x18x1xf32, #tpu.memory_space<vmem>>, vector<1x16x16x1xf32>
    %5 = vector.shape_cast %4 : vector<1x16x16x1xf32> to vector<16x16x1xf32>
    %c0_9 = arith.constant 0 : index
    %c1_10 = arith.constant 1 : index
    %c0_11 = arith.constant 0 : index
    %c0_12 = arith.constant 0 : index
    %6 = vector.load %arg1[%c0_9, %c1_10, %c0_11, %c0_12] : memref<1x18x18x1xf32, #tpu.memory_space<vmem>>, vector<1x16x16x1xf32>
    %7 = vector.shape_cast %6 : vector<1x16x16x1xf32> to vector<16x16x1xf32>
    %c0_13 = arith.constant 0 : index
    %c1_14 = arith.constant 1 : index
    %c1_15 = arith.constant 1 : index
    %c0_16 = arith.constant 0 : index
    %8 = vector.load %arg1[%c0_13, %c1_14, %c1_15, %c0_16] : memref<1x18x18x1xf32, #tpu.memory_space<vmem>>, vector<1x16x16x1xf32>
    %9 = vector.shape_cast %8 : vector<1x16x16x1xf32> to vector<16x16x1xf32>
    %c0_17 = arith.constant 0 : index
    %c1_18 = arith.constant 1 : index
    %c2_19 = arith.constant 2 : index
    %c0_20 = arith.constant 0 : index
    %10 = vector.load %arg1[%c0_17, %c1_18, %c2_19, %c0_20] : memref<1x18x18x1xf32, #tpu.memory_space<vmem>>, vector<1x16x16x1xf32>
    %11 = vector.shape_cast %10 : vector<1x16x16x1xf32> to vector<16x16x1xf32>
    %c0_21 = arith.constant 0 : index
    %c2_22 = arith.constant 2 : index
    %c0_23 = arith.constant 0 : index
    %c0_24 = arith.constant 0 : index
    %12 = vector.load %arg1[%c0_21, %c2_22, %c0_23, %c0_24] : memref<1x18x18x1xf32, #tpu.memory_space<vmem>>, vector<1x16x16x1xf32>
    %13 = vector.shape_cast %12 : vector<1x16x16x1xf32> to vector<16x16x1xf32>
    %c0_25 = arith.constant 0 : index
    %c2_26 = arith.constant 2 : index
    %c1_27 = arith.constant 1 : index
    %c0_28 = arith.constant 0 : index
    %14 = vector.load %arg1[%c0_25, %c2_26, %c1_27, %c0_28] : memref<1x18x18x1xf32, #tpu.memory_space<vmem>>, vector<1x16x16x1xf32>
    %15 = vector.shape_cast %14 : vector<1x16x16x1xf32> to vector<16x16x1xf32>
    %c0_29 = arith.constant 0 : index
    %c2_30 = arith.constant 2 : index
    %c2_31 = arith.constant 2 : index
    %c0_32 = arith.constant 0 : index
    %16 = vector.load %arg1[%c0_29, %c2_30, %c2_31, %c0_32] : memref<1x18x18x1xf32, #tpu.memory_space<vmem>>, vector<1x16x16x1xf32>
    %17 = vector.shape_cast %16 : vector<1x16x16x1xf32> to vector<16x16x1xf32>
    %18 = tpu.concatenate %1, %3, %5, %7, %9, %11, %13, %15, %17 in 2 : vector<16x16x1xf32>, vector<16x16x1xf32>, vector<16x16x1xf32>, vector<16x16x1xf32>, vector<16x16x1xf32>, vector<16x16x1xf32>, vector<16x16x1xf32>, vector<16x16x1xf32>, vector<16x16x1xf32> -> vector<16x16x9xf32>
    %19 = vector.shape_cast %18 : vector<16x16x9xf32> to vector<256x9xf32>
    %20 = arith.truncf %19 : vector<256x9xf32> to vector<256x9xbf16>
    %c0_33 = arith.constant 0 : index
    %c0_34 = arith.constant 0 : index
    %21 = vector.load %arg2[%c0_33, %c0_34] : memref<9x4xbf16, #tpu.memory_space<vmem>>, vector<9x4xbf16>
    %cst = arith.constant dense<0.000000e+00> : vector<256x4xf32>
    %22 = tpu.matmul %20, %21, %cst {dimension_numbers = #tpu.dot_dimension_numbers<[1], [0], [0], [1], [0, 0, 1, 1], [], []>} : vector<256x9xbf16>, vector<9x4xbf16>, vector<256x4xf32> -> vector<256x4xf32>
    %c0_35 = arith.constant 0 : index
    %c0_36 = arith.constant 0 : index
    %23 = vector.load %arg3[%c0_35, %c0_36] : memref<1x4xf32, #tpu.memory_space<vmem>>, vector<1x4xf32>
    %24 = vector.broadcast %23 : vector<1x4xf32> to vector<256x4xf32>
    %25 = arith.addf %22, %24 : vector<256x4xf32>
    %cst_37 = arith.constant 0.000000e+00 : f32
    %26 = vector.broadcast %cst_37 : f32 to vector<256x4xf32>
    %27 = arith.maximumf %25, %26 : vector<256x4xf32>
    %cst_38 = arith.constant 0.000000e+00 : f32
    %28 = vector.broadcast %cst_38 : f32 to vector<18x18x4xf32>
    %c0_39 = arith.constant 0 : index
    %c0_40 = arith.constant 0 : index
    %c0_41 = arith.constant 0 : index
    %29 = vector.load %arg7[%c0_39, %c0_40, %c0_41] : memref<18x18x4xf32, #tpu.memory_space<vmem>>, vector<18x18x4xf32>
    tpu.vector_store %arg7[%c0_39, %c0_40, %c0_41], %28 {strides = array<i32>} : memref<18x18x4xf32, #tpu.memory_space<vmem>>, vector<18x18x4xf32>,
    %30 = vector.shape_cast %27 : vector<256x4xf32> to vector<16x16x4xf32>
    %c1_42 = arith.constant 1 : index
    %c1_43 = arith.constant 1 : index
    %c0_44 = arith.constant 0 : index
    %31 = vector.load %arg7[%c1_42, %c1_43, %c0_44] : memref<18x18x4xf32, #tpu.memory_space<vmem>>, vector<16x16x4xf32>
    tpu.vector_store %arg7[%c1_42, %c1_43, %c0_44], %30 {strides = array<i32>} : memref<18x18x4xf32, #tpu.memory_space<vmem>>, vector<16x16x4xf32>,
    %c0_45 = arith.constant 0 : index
    %c0_46 = arith.constant 0 : index
    %c0_47 = arith.constant 0 : index
    %32 = vector.load %arg7[%c0_45, %c0_46, %c0_47] : memref<18x18x4xf32, #tpu.memory_space<vmem>>, vector<16x16x4xf32>
    %c0_48 = arith.constant 0 : index
    %c1_49 = arith.constant 1 : index
    %c0_50 = arith.constant 0 : index
    %33 = vector.load %arg7[%c0_48, %c1_49, %c0_50] : memref<18x18x4xf32, #tpu.memory_space<vmem>>, vector<16x16x4xf32>
    %c0_51 = arith.constant 0 : index
    %c2_52 = arith.constant 2 : index
    %c0_53 = arith.constant 0 : index
    %34 = vector.load %arg7[%c0_51, %c2_52, %c0_53] : memref<18x18x4xf32, #tpu.memory_space<vmem>>, vector<16x16x4xf32>
    %c1_54 = arith.constant 1 : index
    %c0_55 = arith.constant 0 : index
    %c0_56 = arith.constant 0 : index
    %35 = vector.load %arg7[%c1_54, %c0_55, %c0_56] : memref<18x18x4xf32, #tpu.memory_space<vmem>>, vector<16x16x4xf32>
    %c1_57 = arith.constant 1 : index
    %c1_58 = arith.constant 1 : index
    %c0_59 = arith.constant 0 : index
    %36 = vector.load %arg7[%c1_57, %c1_58, %c0_59] : memref<18x18x4xf32, #tpu.memory_space<vmem>>, vector<16x16x4xf32>
    %c1_60 = arith.constant 1 : index
    %c2_61 = arith.constant 2 : index
    %c0_62 = arith.constant 0 : index
    %37 = vector.load %arg7[%c1_60, %c2_61, %c0_62] : memref<18x18x4xf32, #tpu.memory_space<vmem>>, vector<16x16x4xf32>
    %c2_63 = arith.constant 2 : index
    %c0_64 = arith.constant 0 : index
    %c0_65 = arith.constant 0 : index
    %38 = vector.load %arg7[%c2_63, %c0_64, %c0_65] : memref<18x18x4xf32, #tpu.memory_space<vmem>>, vector<16x16x4xf32>
    %c2_66 = arith.constant 2 : index
    %c1_67 = arith.constant 1 : index
    %c0_68 = arith.constant 0 : index
    %39 = vector.load %arg7[%c2_66, %c1_67, %c0_68] : memref<18x18x4xf32, #tpu.memory_space<vmem>>, vector<16x16x4xf32>
    %c2_69 = arith.constant 2 : index
    %c2_70 = arith.constant 2 : index
    %c0_71 = arith.constant 0 : index
    %40 = vector.load %arg7[%c2_69, %c2_70, %c0_71] : memref<18x18x4xf32, #tpu.memory_space<vmem>>, vector<16x16x4xf32>
    %41 = tpu.concatenate %32, %33, %34, %35, %36, %37, %38, %39, %40 in 2 : vector<16x16x4xf32>, vector<16x16x4xf32>, vector<16x16x4xf32>, vector<16x16x4xf32>, vector<16x16x4xf32>, vector<16x16x4xf32>, vector<16x16x4xf32>, vector<16x16x4xf32>, vector<16x16x4xf32> -> vector<16x16x36xf32>
    %42 = vector.shape_cast %41 : vector<16x16x36xf32> to vector<256x36xf32>
    %43 = arith.truncf %42 : vector<256x36xf32> to vector<256x36xbf16>
    %c0_72 = arith.constant 0 : index
    %c0_73 = arith.constant 0 : index
    %44 = vector.load %arg4[%c0_72, %c0_73] : memref<36x4xbf16, #tpu.memory_space<vmem>>, vector<36x4xbf16>
    %cst_74 = arith.constant dense<0.000000e+00> : vector<256x4xf32>
    %45 = tpu.matmul %43, %44, %cst_74 {dimension_numbers = #tpu.dot_dimension_numbers<[1], [0], [0], [1], [0, 0, 1, 1], [], []>} : vector<256x36xbf16>, vector<36x4xbf16>, vector<256x4xf32> -> vector<256x4xf32>
    %c0_75 = arith.constant 0 : index
    %c0_76 = arith.constant 0 : index
    %46 = vector.load %arg5[%c0_75, %c0_76] : memref<1x4xf32, #tpu.memory_space<vmem>>, vector<1x4xf32>
    %47 = vector.broadcast %46 : vector<1x4xf32> to vector<256x4xf32>
    %48 = arith.addf %45, %47 : vector<256x4xf32>
    %cst_77 = arith.constant 0.000000e+00 : f32
    %49 = vector.broadcast %cst_77 : f32 to vector<256x4xf32>
    %50 = arith.maximumf %48, %49 : vector<256x4xf32>
    %51 = vector.shape_cast %50 : vector<256x4xf32> to vector<16x16x4xf32>
    %c0_78 = arith.constant 0 : index
    %c0_79 = arith.constant 0 : index
    %c0_80 = arith.constant 0 : index
    %52 = vector.load %arg8[%c0_78, %c0_79, %c0_80] : memref<16x16x4xf32, #tpu.memory_space<vmem>>, vector<16x16x4xf32>
    tpu.vector_store %arg8[%c0_78, %c0_79, %c0_80], %51 {strides = array<i32>} : memref<16x16x4xf32, #tpu.memory_space<vmem>>, vector<16x16x4xf32>,
    %c0_81 = arith.constant 0 : index
    %c0_82 = arith.constant 0 : index
    %c0_83 = arith.constant 0 : index
    %53 = vector.load %arg8[%c0_81, %c0_82, %c0_83] : memref<16x16x4xf32, #tpu.memory_space<vmem>>, vector<16x16x4xf32>
    %54 = vector.shape_cast %53 : vector<16x16x4xf32> to vector<8x2x16x4xf32>
    %55 = vector.extract_strided_slice %54 {offsets = [0, 0, 0, 0], sizes = [8, 1, 16, 4], strides = [1, 1, 1, 1]} : vector<8x2x16x4xf32> to vector<8x1x16x4xf32>
    %56 = vector.shape_cast %55 : vector<8x1x16x4xf32> to vector<8x16x4xf32>
    %57 = vector.extract_strided_slice %54 {offsets = [0, 1, 0, 0], sizes = [8, 1, 16, 4], strides = [1, 1, 1, 1]} : vector<8x2x16x4xf32> to vector<8x1x16x4xf32>
    %58 = vector.shape_cast %57 : vector<8x1x16x4xf32> to vector<8x16x4xf32>
    %59 = arith.maximumf %56, %58 : vector<8x16x4xf32>
    %60 = vector.shape_cast %59 : vector<8x16x4xf32> to vector<128x4xf32>
    %c0_84 = arith.constant 0 : index
    %c0_85 = arith.constant 0 : index
    %61 = vector.load %arg9[%c0_84, %c0_85] : memref<128x4xf32, #tpu.memory_space<vmem>>, vector<128x4xf32>
    tpu.vector_store %arg9[%c0_84, %c0_85], %60 {strides = array<i32>} : memref<128x4xf32, #tpu.memory_space<vmem>>, vector<128x4xf32>,
    %c0_86 = arith.constant 0 : index
    %c0_87 = arith.constant 0 : index
    %62 = tpu.strided_load %arg9[%c0_86, %c0_87] {strides = array<i32: 2, 1>} : memref<128x4xf32, #tpu.memory_space<vmem>>, vector<64x4xf32>
    %c1_88 = arith.constant 1 : index
    %c0_89 = arith.constant 0 : index
    %63 = tpu.strided_load %arg9[%c1_88, %c0_89] {strides = array<i32: 2, 1>} : memref<128x4xf32, #tpu.memory_space<vmem>>, vector<64x4xf32>
    %64 = arith.maximumf %62, %63 : vector<64x4xf32>
    %65 = tpu.transpose %64, [1, 0] : vector<64x4xf32> -> vector<4x64xf32>
    %c0_90 = arith.constant 0 : index
    %c0_91 = arith.constant 0 : index
    %c0_92 = arith.constant 0 : index
    %66 = vector.load %arg6[%c0_90, %c0_91, %c0_92] : memref<1x4x64xf32, #tpu.memory_space<vmem>>, vector<1x4x64xf32>
    %67 = vector.shape_cast %66 : vector<1x4x64xf32> to vector<4x64xf32>
    %68 = vector.shape_cast %65 : vector<4x64xf32> to vector<1x4x64xf32>
    tpu.vector_store %arg6[%c0_90, %c0_91, %c0_92], %68 {strides = array<i32>} : memref<1x4x64xf32, #tpu.memory_space<vmem>>, vector<1x4x64xf32>,
    return
  }
  func.func @transform_0(%arg0: i32) -> (i32, i32, i32, i32) {
    %c0_i32 = arith.constant 0 : i32
    %c0_i32_0 = arith.constant 0 : i32
    %c0_i32_1 = arith.constant 0 : i32
    %c0_i32_2 = arith.constant 0 : i32
    return %arg0, %c0_i32, %c0_i32_0, %c0_i32_1 : i32, i32, i32, i32
  }
  func.func @transform_1(%arg0: i32) -> (i32, i32) {
    %c0_i32 = arith.constant 0 : i32
    %c0_i32_0 = arith.constant 0 : i32
    %c0_i32_1 = arith.constant 0 : i32
    return %c0_i32, %c0_i32_0 : i32, i32
  }
  func.func @transform_2(%arg0: i32) -> (i32, i32) {
    %c0_i32 = arith.constant 0 : i32
    %c0_i32_0 = arith.constant 0 : i32
    %c0_i32_1 = arith.constant 0 : i32
    return %c0_i32, %c0_i32_0 : i32, i32
  }
  func.func @transform_3(%arg0: i32) -> (i32, i32) {
    %c0_i32 = arith.constant 0 : i32
    %c0_i32_0 = arith.constant 0 : i32
    %c0_i32_1 = arith.constant 0 : i32
    return %c0_i32, %c0_i32_0 : i32, i32
  }
  func.func @transform_4(%arg0: i32) -> (i32, i32) {
    %c0_i32 = arith.constant 0 : i32
    %c0_i32_0 = arith.constant 0 : i32
    %c0_i32_1 = arith.constant 0 : i32
    return %c0_i32, %c0_i32_0 : i32, i32
  }
  func.func @transform_5(%arg0: i32) -> (i32, i32, i32) {
    %c0_i32 = arith.constant 0 : i32
    %c0_i32_0 = arith.constant 0 : i32
    %c0_i32_1 = arith.constant 0 : i32
    return %arg0, %c0_i32, %c0_i32_0 : i32, i32, i32
  }
}

</mosaic_0001>

<llo_original>
// kernel: tpu_custom_call.1
$region0: #{tpu_custom_call.1}
  #allocation0 [shape = 'u32[]', space=smem, size = 0x4, offset = 0x4, fixed_abs, tag = 'smem constant byte address 0x4 - core index']
  #allocation1 [shape = 'u32[72,128]{1,0:T(1,128)}', space=vmem, size = 0x9000, scoped, tag = 'internal scratch']
  #allocation2 [shape = 'f32[18,18,4]{2,1,0:T(8,128)}', space=vmem, size = 0x36000, scoped, tag = 'scratch operand']
  #allocation3 [shape = 'f32[16,16,4]{2,1,0:T(8,128)}', space=vmem, size = 0x20000, scoped, tag = 'scratch operand']
  #allocation4 [shape = 'f32[128,4]{1,0:T(8,128)}', space=vmem, size = 0x10000, scoped, tag = 'scratch operand']
  %s0 = inlined_call_operand.vmem [shape: f32[2,18,18,1], index: 0, kind: input, shape index: {}]
  %s1 = inlined_call_operand.vmem [shape: bf16[9,4], index: 1, kind: input, shape index: {}]
  %s2 = inlined_call_operand.vmem [shape: f32[1,4], index: 2, kind: input, shape index: {}]
  %s3 = inlined_call_operand.vmem [shape: bf16[36,4], index: 3, kind: input, shape index: {}]
  %s4 = inlined_call_operand.vmem [shape: f32[1,4], index: 4, kind: input, shape index: {}]
  %s5 = inlined_call_operand.hbm [shape: f32[2,4,64], index: 5, kind: output, shape index: {}]
  %s6 = sld [smem:[#allocation0]]
  $region53: #{tpu_custom_call.1} parent=0
    _
  %s8 = ssub.s32 1, %s6
  %s9 = scalar_select 0, %s8, %s6
  $region1: #{tpu_custom_call.1} parent=0
    #allocation5 [shape = 'u8[4096]{0}', space=vmem, size = 0x1000, scoped, tag = 'output window, operand 0']
    #allocation6 [shape = 's32[2]{0}', space=sflag, size = 0x8, scoped, tag = 'scoped memory for tpu_custom_call.1']
    %10 = vsyncpa [#allocation6], 0
    %s11 = scalar_lea.sflag [#allocation6], 1
    %12 = vsyncpa %s11, 0
    loop: start=0, step=1, limit=4
    $region2: #{tpu_custom_call.1} parent=1 // loop_pre_header
      _
    $region3: #{tpu_custom_call.1} parent=1 // loop_header
      %s14 = sphi 0, %s18
      %p15 = scmp.ge.s32.totalorder %s14, 4
      %s24 = sphi 0, %s26
      %s27 = sphi 0, %s24
      %s28 = sphi 0, %s27
      %s44 = sphi 0, %s28
      %s48 = sphi 0, %s48
      %s50 = sphi 0, %s48
      %s51 = sphi 0, %s50
      %s65 = sphi 0, %s51
      %s69 = sphi 0, %s69
      %s71 = sphi 0, %s69
      %s72 = sphi 0, %s71
      %s86 = sphi 0, %s72
      %s90 = sphi 0, %s90
      %s92 = sphi 0, %s90
      %s93 = sphi 0, %s92
      %s107 = sphi 0, %s93
      %s111 = sphi 0, %s111
      %s113 = sphi 0, %s111
      %s114 = sphi 0, %s113
      %s128 = sphi 0, %s114
      %s134 = sphi 0, %s136
      %s137 = sphi 0, %s134
      %s138 = sphi 0, %s137
      %s154 = sphi 0, %s138
    $region4: #{tpu_custom_call.1} parent=1 // loop_header_branch
      %17 = sbr.rel (%p15) target = $region8
    $region5: #{tpu_custom_call.1} parent=1 // loop_body
      %s19 = ssub.s32 %s14, 1
      %s20 = ssub.s32 %s14, 2
      %s21 = sadd.s32 %s14, 1
      %s22 = ssub.s32 %s14, %s21
      %p23 = scmp.eq.s32.totalorder %s22, 0
      %s25 = sadd.s32 %s24, 1
      %s26 = scalar_select %p23, %s24, %s25
      %p29 = pneg %p23
      %p30 = scmp.eq.s32.totalorder %s14, 1
      %p31 = por %p29, %p30
      %p32 = scmp.ne.s32.totalorder %s24, %s27
      %p33 = scmp.eq.s32.totalorder %s14, 0
      %p34 = por %p32, %p33
      %p35 = scmp.ne.s32.totalorder %s24, %s27
      %p36 = scmp.eq.s32.totalorder %s19, 1
      %p37 = por %p35, %p36
      %p38 = scmp.ne.s32.totalorder %s27, %s28
      %p39 = scmp.eq.s32.totalorder %s19, 0
      %p40 = por %p38, %p39
      %p41 = scmp.ne.s32.totalorder %s27, %s28
      %p42 = scmp.eq.s32.totalorder %s20, 1
      %p43 = por %p41, %p42
      %p45 = scmp.ne.s32.totalorder %s28, %s44
      %p46 = scmp.eq.s32.totalorder %s20, 0
      %p47 = por %p45, %p46
      %s49 = sadd.s32 %s48, 1
      %p52 = scmp.eq.s32.totalorder %s14, 1
      %p53 = scmp.ne.s32.totalorder %s48, %s50
      %p54 = scmp.eq.s32.totalorder %s14, 0
      %p55 = por %p53, %p54
      %p56 = scmp.ne.s32.totalorder %s48, %s50
      %p57 = scmp.eq.s32.totalorder %s19, 1
      %p58 = por %p56, %p57
      %p59 = scmp.ne.s32.totalorder %s50, %s51
      %p60 = scmp.eq.s32.totalorder %s19, 0
      %p61 = por %p59, %p60
      %p62 = scmp.ne.s32.totalorder %s50, %s51
      %p63 = scmp.eq.s32.totalorder %s20, 1
      %p64 = por %p62, %p63
      %p66 = scmp.ne.s32.totalorder %s51, %s65
      %p67 = scmp.eq.s32.totalorder %s20, 0
      %p68 = por %p66, %p67
      %s70 = sadd.s32 %s69, 1
      %p73 = scmp.eq.s32.totalorder %s14, 1
      %p74 = scmp.ne.s32.totalorder %s69, %s71
      %p75 = scmp.eq.s32.totalorder %s14, 0
      %p76 = por %p74, %p75
      %p77 = scmp.ne.s32.totalorder %s69, %s71
      %p78 = scmp.eq.s32.totalorder %s19, 1
      %p79 = por %p77, %p78
      %p80 = scmp.ne.s32.totalorder %s71, %s72
      %p81 = scmp.eq.s32.totalorder %s19, 0
      %p82 = por %p80, %p81
      %p83 = scmp.ne.s32.totalorder %s71, %s72
      %p84 = scmp.eq.s32.totalorder %s20, 1
      %p85 = por %p83, %p84
      %p87 = scmp.ne.s32.totalorder %s72, %s86
      %p88 = scmp.eq.s32.totalorder %s20, 0
      %p89 = por %p87, %p88
      %s91 = sadd.s32 %s90, 1
      %p94 = scmp.eq.s32.totalorder %s14, 1
      %p95 = scmp.ne.s32.totalorder %s90, %s92
      %p96 = scmp.eq.s32.totalorder %s14, 0
      %p97 = por %p95, %p96
      %p98 = scmp.ne.s32.totalorder %s90, %s92
      %p99 = scmp.eq.s32.totalorder %s19, 1
      %p100 = por %p98, %p99
      %p101 = scmp.ne.s32.totalorder %s92, %s93
      %p102 = scmp.eq.s32.totalorder %s19, 0
      %p103 = por %p101, %p102
      %p104 = scmp.ne.s32.totalorder %s92, %s93
      %p105 = scmp.eq.s32.totalorder %s20, 1
      %p106 = por %p104, %p105
      %p108 = scmp.ne.s32.totalorder %s93, %s107
      %p109 = scmp.eq.s32.totalorder %s20, 0
      %p110 = por %p108, %p109
      %s112 = sadd.s32 %s111, 1
      %p115 = scmp.eq.s32.totalorder %s14, 1
      %p116 = scmp.ne.s32.totalorder %s111, %s113
      %p117 = scmp.eq.s32.totalorder %s14, 0
      %p118 = por %p116, %p117
      %p119 = scmp.ne.s32.totalorder %s111, %s113
      %p120 = scmp.eq.s32.totalorder %s19, 1
      %p121 = por %p119, %p120
      %p122 = scmp.ne.s32.totalorder %s113, %s114
      %p123 = scmp.eq.s32.totalorder %s19, 0
      %p124 = por %p122, %p123
      %p125 = scmp.ne.s32.totalorder %s113, %s114
      %p126 = scmp.eq.s32.totalorder %s20, 1
      %p127 = por %p125, %p126
      %p129 = scmp.ne.s32.totalorder %s114, %s128
      %p130 = scmp.eq.s32.totalorder %s20, 0
      %p131 = por %p129, %p130
      %s132 = ssub.s32 %s14, %s21
      %p133 = scmp.eq.s32.totalorder %s132, 0
      %s135 = sadd.s32 %s134, 1
      %s136 = scalar_select %p133, %s134, %s135
      %p139 = pneg %p133
      %p140 = scmp.eq.s32.totalorder %s14, 1
      %p141 = por %p139, %p140
      %p142 = scmp.ne.s32.totalorder %s134, %s137
      %p143 = scmp.eq.s32.totalorder %s14, 0
      %p144 = por %p142, %p143
      %p145 = scmp.ne.s32.totalorder %s134, %s137
      %p146 = scmp.eq.s32.totalorder %s19, 1
      %p147 = por %p145, %p146
      %p148 = scmp.ne.s32.totalorder %s137, %s138
      %p149 = scmp.eq.s32.totalorder %s19, 0
      %p150 = por %p148, %p149
      %p151 = scmp.ne.s32.totalorder %s137, %s138
      %p152 = scmp.eq.s32.totalorder %s20, 1
      %p153 = por %p151, %p152
      %p155 = scmp.ne.s32.totalorder %s138, %s154
      %p156 = scmp.eq.s32.totalorder %s20, 0
      %p157 = por %p155, %p156
      %p158 = scmp.le.s32.totalorder 1, %s14
      %p159 = scmp.lt.s32.totalorder %s14, 3
      %p160 = pnand %p158, %p159
      %p161 = pneg %p160
      // Predicated region
      $region9: #{tpu_custom_call.1} parent=5 // pred_check
        _
      $region10: #{tpu_custom_call.1} parent=5 // pred_check_branch
        %163 = sbr.rel (%p160) target = $region12
      $region11: #{tpu_custom_call.1} parent=5 // pred_region
        %s164 = ssub.s32 %s14, 1
        // Predicated region
        $region13: #{tpu_custom_call.1} parent=11 // pred_check
          %p165 = pneg %p61
        $region14: #{tpu_custom_call.1} parent=11 // pred_check_branch
          %167 = sbr.rel (%p165) target = $region16
        $region15: #{tpu_custom_call.1} parent=11 // pred_region
          _
        $region16: #{tpu_custom_call.1} parent=11 // pred_fallthru
          _
        // Predicated region
        $region17: #{tpu_custom_call.1} parent=11 // pred_check
          %p168 = pneg %p82
        $region18: #{tpu_custom_call.1} parent=11 // pred_check_branch
          %170 = sbr.rel (%p168) target = $region20
        $region19: #{tpu_custom_call.1} parent=11 // pred_region
          _
        $region20: #{tpu_custom_call.1} parent=11 // pred_fallthru
          _
        // Predicated region
        $region21: #{tpu_custom_call.1} parent=11 // pred_check
          %p171 = pneg %p103
        $region22: #{tpu_custom_call.1} parent=11 // pred_check_branch
          %173 = sbr.rel (%p171) target = $region24
        $region23: #{tpu_custom_call.1} parent=11 // pred_region
          _
        $region24: #{tpu_custom_call.1} parent=11 // pred_fallthru
          _
        // Predicated region
        $region25: #{tpu_custom_call.1} parent=11 // pred_check
          %p174 = pneg %p124
        $region26: #{tpu_custom_call.1} parent=11 // pred_check_branch
          %176 = sbr.rel (%p174) target = $region28
        $region27: #{tpu_custom_call.1} parent=11 // pred_region
          _
        $region28: #{tpu_custom_call.1} parent=11 // pred_fallthru
          _
      $region12: #{tpu_custom_call.1} parent=5 // pred_fallthru
        _
      %p177 = scmp.lt.s32.totalorder %s14, 2
      // Predicated region
      $region29: #{tpu_custom_call.1} parent=5 // pred_check
        %p178 = pneg %p177
      $region30: #{tpu_custom_call.1} parent=5 // pred_check_branch
        %180 = sbr.rel (%p178) target = $region32
      $region31: #{tpu_custom_call.1} parent=5 // pred_region
        // Predicated region
        $region33: #{tpu_custom_call.1} parent=31 // pred_check
          %p181 = pneg %p34
        $region34: #{tpu_custom_call.1} parent=31 // pred_check_branch
          %183 = sbr.rel (%p181) target = $region36
        $region35: #{tpu_custom_call.1} parent=31 // pred_region
          %p184 = scmp.lt.s32.totalorder %s14, 1
          %s185 = scalar_select %p184, %s14, 1
          %s186 = smul.addr %s185, 54
          %s187 = smul.addr %s186, 8
          %s188 = scalar_lea.vmem %s0, %s187
        $region36: #{tpu_custom_call.1} parent=31 // pred_fallthru
          _
      $region32: #{tpu_custom_call.1} parent=5 // pred_fallthru
        _
      %p189 = scmp.le.s32.totalorder 1, %s14
      %p190 = scmp.lt.s32.totalorder %s14, 3
      %p191 = pnand %p189, %p190
      %p192 = pneg %p191
      // Predicated region
      $region37: #{tpu_custom_call.1} parent=5 // pred_check
        _
      $region38: #{tpu_custom_call.1} parent=5 // pred_check_branch
        %194 = sbr.rel (%p191) target = $region40
      $region39: #{tpu_custom_call.1} parent=5 // pred_region
        %s195 = ssub.s32 %s14, 1
        %p196 = scmp.lt.s32.totalorder %s19, 1
        %s197 = scalar_select %p196, %s19, 1
        %s198 = smul.addr %s197, 54
        %s199 = smul.addr %s198, 8
        %s200 = scalar_lea.vmem %s0, %s199
        %p201 = pneg %p40
        %p202 = pneg %p37
        %p203 = pneg %p61
        %p204 = pneg %p58
        %p205 = pneg %p82
        %p206 = pneg %p79
        %p207 = pneg %p103
        %p208 = pneg %p100
        %p209 = pneg %p124
        %p210 = pneg %p121
        %p211 = pneg %p150
        %p212 = pneg %p147
        %s213 = sand.u32 %s137, 1
        %s214 = scalar_lea.sflag [#allocation6], %s213
        %s215 = sand.u32 %s137, 1
        %s216 = smul.addr %s215, 4
        %s217 = scalar_lea.vmem [#allocation5], %s216
        %p218 = scmp.lt.s32.totalorder %s19, 1
        %s219 = scalar_select %p218, %s19, 1
        %s220 = smul.addr %s219, 54
        %s221 = smul.addr %s220, 8
        %s222 = scalar_lea.vmem %s0, %s221
        %v224 = vld [vmem:[%s222] sm:$0xff]
        %v225 = vld [vmem:[%s222 + $0x8] sm:$0xff]
        %v226 = vld [vmem:[%s222 + $0x18] sm:$0xff]
        %v227 = vld [vmem:[%s222 + $0x20] sm:$0xff]
        %v228 = vld [vmem:[%s222 + $0x30] sm:$0xff]
        %v229 = vld [vmem:[%s222 + $0x38] sm:$0xff]
        %v230 = vld [vmem:[%s222 + $0x48] sm:$0xff]
        %v231 = vld [vmem:[%s222 + $0x50] sm:$0xff]
        %v232 = vld [vmem:[%s222 + $0x60] sm:$0xff]
        %v233 = vld [vmem:[%s222 + $0x68] sm:$0xff]
        %v234 = vld [vmem:[%s222 + $0x78] sm:$0xff]
        %v235 = vld [vmem:[%s222 + $0x80] sm:$0xff]
        %v236 = vld [vmem:[%s222 + $0x90] sm:$0xff]
        %v237 = vld [vmem:[%s222 + $0x98] sm:$0xff]
        %v238 = vld [vmem:[%s222 + $0xa8] sm:$0xff]
        %v239 = vld [vmem:[%s222 + $0xb0] sm:$0xff]
        %v240 = vld [vmem:[%s222 + $0xc0] sm:$0xff]
        %v241 = vld [vmem:[%s222 + $0xc8] sm:$0xff]
        %v242 = vld [vmem:[%s222 + $0xd8] sm:$0xff]
        %v243 = vld [vmem:[%s222 + $0xe0] sm:$0xff]
        %v244 = vld [vmem:[%s222 + $0xf0] sm:$0xff]
        %v245 = vld [vmem:[%s222 + $0xf8] sm:$0xff]
        %v246 = vld [vmem:[%s222 + $0x108] sm:$0xff]
        %v247 = vld [vmem:[%s222 + $0x110] sm:$0xff]
        %v248 = vld [vmem:[%s222 + $0x120] sm:$0xff]
        %v249 = vld [vmem:[%s222 + $0x128] sm:$0xff]
        %v250 = vld [vmem:[%s222 + $0x138] sm:$0xff]
        %v251 = vld [vmem:[%s222 + $0x140] sm:$0xff]
        %v252 = vld [vmem:[%s222 + $0x150] sm:$0xff]
        %v253 = vld [vmem:[%s222 + $0x158] sm:$0xff]
        %v254 = vld [vmem:[%s222 + $0x168] sm:$0xff]
        %v255 = vld [vmem:[%s222 + $0x170] sm:$0xff]
        %v256 = vld [vmem:[%s222 + $0x1] sm:$0xff]
        %v257 = vld [vmem:[%s222 + $0x9] sm:$0xff]
        %v258 = vld [vmem:[%s222 + $0x19] sm:$0xff]
        %v259 = vld [vmem:[%s222 + $0x21] sm:$0xff]
        %v260 = vld [vmem:[%s222 + $0x31] sm:$0xff]
        %v261 = vld [vmem:[%s222 + $0x39] sm:$0xff]
        %v262 = vld [vmem:[%s222 + $0x49] sm:$0xff]
        %v263 = vld [vmem:[%s222 + $0x51] sm:$0xff]
        %v264 = vld [vmem:[%s222 + $0x61] sm:$0xff]
        %v265 = vld [vmem:[%s222 + $0x69] sm:$0xff]
        %v266 = vld [vmem:[%s222 + $0x79] sm:$0xff]
        %v267 = vld [vmem:[%s222 + $0x81] sm:$0xff]
        %v268 = vld [vmem:[%s222 + $0x91] sm:$0xff]
        %v269 = vld [vmem:[%s222 + $0x99] sm:$0xff]
        %v270 = vld [vmem:[%s222 + $0xa9] sm:$0xff]
        %v271 = vld [vmem:[%s222 + $0xb1] sm:$0xff]
        %v272 = vld [vmem:[%s222 + $0xc1] sm:$0xff]
        %v273 = vld [vmem:[%s222 + $0xc9] sm:$0xff]
        %v274 = vld [vmem:[%s222 + $0xd9] sm:$0xff]
        %v275 = vld [vmem:[%s222 + $0xe1] sm:$0xff]
        %v276 = vld [vmem:[%s222 + $0xf1] sm:$0xff]
        %v277 = vld [vmem:[%s222 + $0xf9] sm:$0xff]
        %v278 = vld [vmem:[%s222 + $0x109] sm:$0xff]
        %v279 = vld [vmem:[%s222 + $0x111] sm:$0xff]
        %v280 = vld [vmem:[%s222 + $0x121] sm:$0xff]
        %v281 = vld [vmem:[%s222 + $0x129] sm:$0xff]
        %v282 = vld [vmem:[%s222 + $0x139] sm:$0xff]
        %v283 = vld [vmem:[%s222 + $0x141] sm:$0xff]
        %v284 = vld [vmem:[%s222 + $0x151] sm:$0xff]
        %v285 = vld [vmem:[%s222 + $0x159] sm:$0xff]
        %v286 = vld [vmem:[%s222 + $0x169] sm:$0xff]
        %v287 = vld [vmem:[%s222 + $0x171] sm:$0xff]
        %v288 = vld [vmem:[%s222 + $0x2] sm:$0xff]
        %v289 = vld [vmem:[%s222 + $0xa] sm:$0xff]
        %v290 = vld [vmem:[%s222 + $0x1a] sm:$0xff]
        %v291 = vld [vmem:[%s222 + $0x22] sm:$0xff]
        %v292 = vld [vmem:[%s222 + $0x32] sm:$0xff]
        %v293 = vld [vmem:[%s222 + $0x3a] sm:$0xff]
        %v294 = vld [vmem:[%s222 + $0x4a] sm:$0xff]
        %v295 = vld [vmem:[%s222 + $0x52] sm:$0xff]
        %v296 = vld [vmem:[%s222 + $0x62] sm:$0xff]
        %v297 = vld [vmem:[%s222 + $0x6a] sm:$0xff]
        %v298 = vld [vmem:[%s222 + $0x7a] sm:$0xff]
        %v299 = vld [vmem:[%s222 + $0x82] sm:$0xff]
        %v300 = vld [vmem:[%s222 + $0x92] sm:$0xff]
        %v301 = vld [vmem:[%s222 + $0x9a] sm:$0xff]
        %v302 = vld [vmem:[%s222 + $0xaa] sm:$0xff]
        %v303 = vld [vmem:[%s222 + $0xb2] sm:$0xff]
        %v304 = vld [vmem:[%s222 + $0xc2] sm:$0xff]
        %v305 = vld [vmem:[%s222 + $0xca] sm:$0xff]
        %v306 = vld [vmem:[%s222 + $0xda] sm:$0xff]
        %v307 = vld [vmem:[%s222 + $0xe2] sm:$0xff]
        %v308 = vld [vmem:[%s222 + $0xf2] sm:$0xff]
        %v309 = vld [vmem:[%s222 + $0xfa] sm:$0xff]
        %v310 = vld [vmem:[%s222 + $0x10a] sm:$0xff]
        %v311 = vld [vmem:[%s222 + $0x112] sm:$0xff]
        %v312 = vld [vmem:[%s222 + $0x122] sm:$0xff]
        %v313 = vld [vmem:[%s222 + $0x12a] sm:$0xff]
        %v314 = vld [vmem:[%s222 + $0x13a] sm:$0xff]
        %v315 = vld [vmem:[%s222 + $0x142] sm:$0xff]
        %v316 = vld [vmem:[%s222 + $0x152] sm:$0xff]
        %v317 = vld [vmem:[%s222 + $0x15a] sm:$0xff]
        %v318 = vld [vmem:[%s222 + $0x16a] sm:$0xff]
        %v319 = vld [vmem:[%s222 + $0x172] sm:$0xff]
        %s320 = scalar_lea.vmem %s222, 24
        %v321 = vld [vmem:[%s320] sm:$0xff]
        %v322 = vld [vmem:[%s320 + $0x8] sm:$0xff]
        %v323 = vld [vmem:[%s320 + $0x18] sm:$0xff]
        %v324 = vld [vmem:[%s320 + $0x20] sm:$0xff]
        %v325 = vld [vmem:[%s320 + $0x30] sm:$0xff]
        %v326 = vld [vmem:[%s320 + $0x38] sm:$0xff]
        %v327 = vld [vmem:[%s320 + $0x48] sm:$0xff]
        %v328 = vld [vmem:[%s320 + $0x50] sm:$0xff]
        %v329 = vld [vmem:[%s320 + $0x60] sm:$0xff]
        %v330 = vld [vmem:[%s320 + $0x68] sm:$0xff]
        %v331 = vld [vmem:[%s320 + $0x78] sm:$0xff]
        %v332 = vld [vmem:[%s320 + $0x80] sm:$0xff]
        %v333 = vld [vmem:[%s320 + $0x90] sm:$0xff]
        %v334 = vld [vmem:[%s320 + $0x98] sm:$0xff]
        %v335 = vld [vmem:[%s320 + $0xa8] sm:$0xff]
        %v336 = vld [vmem:[%s320 + $0xb0] sm:$0xff]
        %v337 = vld [vmem:[%s320 + $0xc0] sm:$0xff]
        %v338 = vld [vmem:[%s320 + $0xc8] sm:$0xff]
        %v339 = vld [vmem:[%s320 + $0xd8] sm:$0xff]
        %v340 = vld [vmem:[%s320 + $0xe0] sm:$0xff]
        %v341 = vld [vmem:[%s320 + $0xf0] sm:$0xff]
        %v342 = vld [vmem:[%s320 + $0xf8] sm:$0xff]
        %v343 = vld [vmem:[%s320 + $0x108] sm:$0xff]
        %v344 = vld [vmem:[%s320 + $0x110] sm:$0xff]
        %v345 = vld [vmem:[%s320 + $0x120] sm:$0xff]
        %v346 = vld [vmem:[%s320 + $0x128] sm:$0xff]
        %v347 = vld [vmem:[%s320 + $0x138] sm:$0xff]
        %v348 = vld [vmem:[%s320 + $0x140] sm:$0xff]
        %v349 = vld [vmem:[%s320 + $0x150] sm:$0xff]
        %v350 = vld [vmem:[%s320 + $0x158] sm:$0xff]
        %v351 = vld [vmem:[%s320 + $0x168] sm:$0xff]
        %v352 = vld [vmem:[%s320 + $0x170] sm:$0xff]
        %v353 = vld [vmem:[%s320 + $0x1] sm:$0xff]
        %v354 = vld [vmem:[%s320 + $0x9] sm:$0xff]
        %v355 = vld [vmem:[%s320 + $0x19] sm:$0xff]
        %v356 = vld [vmem:[%s320 + $0x21] sm:$0xff]
        %v357 = vld [vmem:[%s320 + $0x31] sm:$0xff]
        %v358 = vld [vmem:[%s320 + $0x39] sm:$0xff]
        %v359 = vld [vmem:[%s320 + $0x49] sm:$0xff]
        %v360 = vld [vmem:[%s320 + $0x51] sm:$0xff]
        %v361 = vld [vmem:[%s320 + $0x61] sm:$0xff]
        %v362 = vld [vmem:[%s320 + $0x69] sm:$0xff]
        %v363 = vld [vmem:[%s320 + $0x79] sm:$0xff]
        %v364 = vld [vmem:[%s320 + $0x81] sm:$0xff]
        %v365 = vld [vmem:[%s320 + $0x91] sm:$0xff]
        %v366 = vld [vmem:[%s320 + $0x99] sm:$0xff]
        %v367 = vld [vmem:[%s320 + $0xa9] sm:$0xff]
        %v368 = vld [vmem:[%s320 + $0xb1] sm:$0xff]
        %v369 = vld [vmem:[%s320 + $0xc1] sm:$0xff]
        %v370 = vld [vmem:[%s320 + $0xc9] sm:$0xff]
        %v371 = vld [vmem:[%s320 + $0xd9] sm:$0xff]
        %v372 = vld [vmem:[%s320 + $0xe1] sm:$0xff]
        %v373 = vld [vmem:[%s320 + $0xf1] sm:$0xff]
        %v374 = vld [vmem:[%s320 + $0xf9] sm:$0xff]
        %v375 = vld [vmem:[%s320 + $0x109] sm:$0xff]
        %v376 = vld [vmem:[%s320 + $0x111] sm:$0xff]
        %v377 = vld [vmem:[%s320 + $0x121] sm:$0xff]
        %v378 = vld [vmem:[%s320 + $0x129] sm:$0xff]
        %v379 = vld [vmem:[%s320 + $0x139] sm:$0xff]
        %v380 = vld [vmem:[%s320 + $0x141] sm:$0xff]
        %v381 = vld [vmem:[%s320 + $0x151] sm:$0xff]
        %v382 = vld [vmem:[%s320 + $0x159] sm:$0xff]
        %v383 = vld [vmem:[%s320 + $0x169] sm:$0xff]
        %v384 = vld [vmem:[%s320 + $0x171] sm:$0xff]
        %v385 = vld [vmem:[%s320 + $0x2] sm:$0xff]
        %v386 = vld [vmem:[%s320 + $0xa] sm:$0xff]
        %v387 = vld [vmem:[%s320 + $0x1a] sm:$0xff]
        %v388 = vld [vmem:[%s320 + $0x22] sm:$0xff]
        %v389 = vld [vmem:[%s320 + $0x32] sm:$0xff]
        %v390 = vld [vmem:[%s320 + $0x3a] sm:$0xff]
        %v391 = vld [vmem:[%s320 + $0x4a] sm:$0xff]
        %v392 = vld [vmem:[%s320 + $0x52] sm:$0xff]
        %v393 = vld [vmem:[%s320 + $0x62] sm:$0xff]
        %v394 = vld [vmem:[%s320 + $0x6a] sm:$0xff]
        %v395 = vld [vmem:[%s320 + $0x7a] sm:$0xff]
        %v396 = vld [vmem:[%s320 + $0x82] sm:$0xff]
        %v397 = vld [vmem:[%s320 + $0x92] sm:$0xff]
        %v398 = vld [vmem:[%s320 + $0x9a] sm:$0xff]
        %v399 = vld [vmem:[%s320 + $0xaa] sm:$0xff]
        %v400 = vld [vmem:[%s320 + $0xb2] sm:$0xff]
        %v401 = vld [vmem:[%s320 + $0xc2] sm:$0xff]
        %v402 = vld [vmem:[%s320 + $0xca] sm:$0xff]
        %v403 = vld [vmem:[%s320 + $0xda] sm:$0xff]
        %v404 = vld [vmem:[%s320 + $0xe2] sm:$0xff]
        %v405 = vld [vmem:[%s320 + $0xf2] sm:$0xff]
        %v406 = vld [vmem:[%s320 + $0xfa] sm:$0xff]
        %v407 = vld [vmem:[%s320 + $0x10a] sm:$0xff]
        %v408 = vld [vmem:[%s320 + $0x112] sm:$0xff]
        %v409 = vld [vmem:[%s320 + $0x122] sm:$0xff]
        %v410 = vld [vmem:[%s320 + $0x12a] sm:$0xff]
        %v411 = vld [vmem:[%s320 + $0x13a] sm:$0xff]
        %v412 = vld [vmem:[%s320 + $0x142] sm:$0xff]
        %v413 = vld [vmem:[%s320 + $0x152] sm:$0xff]
        %v414 = vld [vmem:[%s320 + $0x15a] sm:$0xff]
        %v415 = vld [vmem:[%s320 + $0x16a] sm:$0xff]
        %v416 = vld [vmem:[%s320 + $0x172] sm:$0xff]
        %s417 = scalar_lea.vmem %s222, 48
        %v418 = vld [vmem:[%s417] sm:$0xff]
        %v419 = vld [vmem:[%s417 + $0x8] sm:$0xff]
        %v420 = vld [vmem:[%s417 + $0x18] sm:$0xff]
        %v421 = vld [vmem:[%s417 + $0x20] sm:$0xff]
        %v422 = vld [vmem:[%s417 + $0x30] sm:$0xff]
        %v423 = vld [vmem:[%s417 + $0x38] sm:$0xff]
        %v424 = vld [vmem:[%s417 + $0x48] sm:$0xff]
        %v425 = vld [vmem:[%s417 + $0x50] sm:$0xff]
        %v426 = vld [vmem:[%s417 + $0x60] sm:$0xff]
        %v427 = vld [vmem:[%s417 + $0x68] sm:$0xff]
        %v428 = vld [vmem:[%s417 + $0x78] sm:$0xff]
        %v429 = vld [vmem:[%s417 + $0x80] sm:$0xff]
        %v430 = vld [vmem:[%s417 + $0x90] sm:$0xff]
        %v431 = vld [vmem:[%s417 + $0x98] sm:$0xff]
        %v432 = vld [vmem:[%s417 + $0xa8] sm:$0xff]
        %v433 = vld [vmem:[%s417 + $0xb0] sm:$0xff]
        %v434 = vld [vmem:[%s417 + $0xc0] sm:$0xff]
        %v435 = vld [vmem:[%s417 + $0xc8] sm:$0xff]
        %v436 = vld [vmem:[%s417 + $0xd8] sm:$0xff]
        %v437 = vld [vmem:[%s417 + $0xe0] sm:$0xff]
        %v438 = vld [vmem:[%s417 + $0xf0] sm:$0xff]
        %v439 = vld [vmem:[%s417 + $0xf8] sm:$0xff]
        %v440 = vld [vmem:[%s417 + $0x108] sm:$0xff]
        %v441 = vld [vmem:[%s417 + $0x110] sm:$0xff]
        %v442 = vld [vmem:[%s417 + $0x120] sm:$0xff]
        %v443 = vld [vmem:[%s417 + $0x128] sm:$0xff]
        %v444 = vld [vmem:[%s417 + $0x138] sm:$0xff]
        %v445 = vld [vmem:[%s417 + $0x140] sm:$0xff]
        %v446 = vld [vmem:[%s417 + $0x150] sm:$0xff]
        %v447 = vld [vmem:[%s417 + $0x158] sm:$0xff]
        %v448 = vld [vmem:[%s417 + $0x168] sm:$0xff]
        %v449 = vld [vmem:[%s417 + $0x170] sm:$0xff]
        %v450 = vld [vmem:[%s417 + $0x1] sm:$0xff]
        %v451 = vld [vmem:[%s417 + $0x9] sm:$0xff]
        %v452 = vld [vmem:[%s417 + $0x19] sm:$0xff]
        %v453 = vld [vmem:[%s417 + $0x21] sm:$0xff]
        %v454 = vld [vmem:[%s417 + $0x31] sm:$0xff]
        %v455 = vld [vmem:[%s417 + $0x39] sm:$0xff]
        %v456 = vld [vmem:[%s417 + $0x49] sm:$0xff]
        %v457 = vld [vmem:[%s417 + $0x51] sm:$0xff]
        %v458 = vld [vmem:[%s417 + $0x61] sm:$0xff]
        %v459 = vld [vmem:[%s417 + $0x69] sm:$0xff]
        %v460 = vld [vmem:[%s417 + $0x79] sm:$0xff]
        %v461 = vld [vmem:[%s417 + $0x81] sm:$0xff]
        %v462 = vld [vmem:[%s417 + $0x91] sm:$0xff]
        %v463 = vld [vmem:[%s417 + $0x99] sm:$0xff]
        %v464 = vld [vmem:[%s417 + $0xa9] sm:$0xff]
        %v465 = vld [vmem:[%s417 + $0xb1] sm:$0xff]
        %v466 = vld [vmem:[%s417 + $0xc1] sm:$0xff]
        %v467 = vld [vmem:[%s417 + $0xc9] sm:$0xff]
        %v468 = vld [vmem:[%s417 + $0xd9] sm:$0xff]
        %v469 = vld [vmem:[%s417 + $0xe1] sm:$0xff]
        %v470 = vld [vmem:[%s417 + $0xf1] sm:$0xff]
        %v471 = vld [vmem:[%s417 + $0xf9] sm:$0xff]
        %v472 = vld [vmem:[%s417 + $0x109] sm:$0xff]
        %v473 = vld [vmem:[%s417 + $0x111] sm:$0xff]
        %v474 = vld [vmem:[%s417 + $0x121] sm:$0xff]
        %v475 = vld [vmem:[%s417 + $0x129] sm:$0xff]
        %v476 = vld [vmem:[%s417 + $0x139] sm:$0xff]
        %v477 = vld [vmem:[%s417 + $0x141] sm:$0xff]
        %v478 = vld [vmem:[%s417 + $0x151] sm:$0xff]
        %v479 = vld [vmem:[%s417 + $0x159] sm:$0xff]
        %v480 = vld [vmem:[%s417 + $0x169] sm:$0xff]
        %v481 = vld [vmem:[%s417 + $0x171] sm:$0xff]
        %v482 = vld [vmem:[%s417 + $0x2] sm:$0xff]
        %v483 = vld [vmem:[%s417 + $0xa] sm:$0xff]
        %v484 = vld [vmem:[%s417 + $0x1a] sm:$0xff]
        %v485 = vld [vmem:[%s417 + $0x22] sm:$0xff]
        %v486 = vld [vmem:[%s417 + $0x32] sm:$0xff]
        %v487 = vld [vmem:[%s417 + $0x3a] sm:$0xff]
        %v488 = vld [vmem:[%s417 + $0x4a] sm:$0xff]
        %v489 = vld [vmem:[%s417 + $0x52] sm:$0xff]
        %v490 = vld [vmem:[%s417 + $0x62] sm:$0xff]
        %v491 = vld [vmem:[%s417 + $0x6a] sm:$0xff]
        %v492 = vld [vmem:[%s417 + $0x7a] sm:$0xff]
        %v493 = vld [vmem:[%s417 + $0x82] sm:$0xff]
        %v494 = vld [vmem:[%s417 + $0x92] sm:$0xff]
        %v495 = vld [vmem:[%s417 + $0x9a] sm:$0xff]
        %v496 = vld [vmem:[%s417 + $0xaa] sm:$0xff]
        %v497 = vld [vmem:[%s417 + $0xb2] sm:$0xff]
        %v498 = vld [vmem:[%s417 + $0xc2] sm:$0xff]
        %v499 = vld [vmem:[%s417 + $0xca] sm:$0xff]
        %v500 = vld [vmem:[%s417 + $0xda] sm:$0xff]
        %v501 = vld [vmem:[%s417 + $0xe2] sm:$0xff]
        %v502 = vld [vmem:[%s417 + $0xf2] sm:$0xff]
        %v503 = vld [vmem:[%s417 + $0xfa] sm:$0xff]
        %v504 = vld [vmem:[%s417 + $0x10a] sm:$0xff]
        %v505 = vld [vmem:[%s417 + $0x112] sm:$0xff]
        %v506 = vld [vmem:[%s417 + $0x122] sm:$0xff]
        %v507 = vld [vmem:[%s417 + $0x12a] sm:$0xff]
        %v508 = vld [vmem:[%s417 + $0x13a] sm:$0xff]
        %v509 = vld [vmem:[%s417 + $0x142] sm:$0xff]
        %v510 = vld [vmem:[%s417 + $0x152] sm:$0xff]
        %v511 = vld [vmem:[%s417 + $0x15a] sm:$0xff]
        %v512 = vld [vmem:[%s417 + $0x16a] sm:$0xff]
        %v513 = vld [vmem:[%s417 + $0x172] sm:$0xff]
        %546 = vrot.lane.b32.xlu0 %v256, 1
        %v547 = vpop.permute.xlu0 %546
        %548 = vrot.lane.b32.xlu0 %v257, 1
        %v549 = vpop.permute.xlu0 %548
        %550 = vrot.lane.b32.xlu0 %v258, 1
        %v551 = vpop.permute.xlu0 %550
        %552 = vrot.lane.b32.xlu0 %v259, 1
        %v553 = vpop.permute.xlu0 %552
        %554 = vrot.lane.b32.xlu0 %v260, 1
        %v555 = vpop.permute.xlu0 %554
        %556 = vrot.lane.b32.xlu0 %v261, 1
        %v557 = vpop.permute.xlu0 %556
        %558 = vrot.lane.b32.xlu0 %v262, 1
        %v559 = vpop.permute.xlu0 %558
        %560 = vrot.lane.b32.xlu0 %v263, 1
        %v561 = vpop.permute.xlu0 %560
        %562 = vrot.lane.b32.xlu0 %v264, 1
        %v563 = vpop.permute.xlu0 %562
        %564 = vrot.lane.b32.xlu0 %v265, 1
        %v565 = vpop.permute.xlu0 %564
        %566 = vrot.lane.b32.xlu0 %v266, 1
        %v567 = vpop.permute.xlu0 %566
        %568 = vrot.lane.b32.xlu0 %v267, 1
        %v569 = vpop.permute.xlu0 %568
        %570 = vrot.lane.b32.xlu0 %v268, 1
        %v571 = vpop.permute.xlu0 %570
        %572 = vrot.lane.b32.xlu0 %v269, 1
        %v573 = vpop.permute.xlu0 %572
        %574 = vrot.lane.b32.xlu0 %v270, 1
        %v575 = vpop.permute.xlu0 %574
        %576 = vrot.lane.b32.xlu0 %v271, 1
        %v577 = vpop.permute.xlu0 %576
        %578 = vrot.lane.b32.xlu0 %v272, 1
        %v579 = vpop.permute.xlu0 %578
        %580 = vrot.lane.b32.xlu0 %v273, 1
        %v581 = vpop.permute.xlu0 %580
        %582 = vrot.lane.b32.xlu0 %v274, 1
        %v583 = vpop.permute.xlu0 %582
        %584 = vrot.lane.b32.xlu0 %v275, 1
        %v585 = vpop.permute.xlu0 %584
        %586 = vrot.lane.b32.xlu0 %v276, 1
        %v587 = vpop.permute.xlu0 %586
        %588 = vrot.lane.b32.xlu0 %v277, 1
        %v589 = vpop.permute.xlu0 %588
        %590 = vrot.lane.b32.xlu0 %v278, 1
        %v591 = vpop.permute.xlu0 %590
        %592 = vrot.lane.b32.xlu0 %v279, 1
        %v593 = vpop.permute.xlu0 %592
        %594 = vrot.lane.b32.xlu0 %v280, 1
        %v595 = vpop.permute.xlu0 %594
        %596 = vrot.lane.b32.xlu0 %v281, 1
        %v597 = vpop.permute.xlu0 %596
        %598 = vrot.lane.b32.xlu0 %v282, 1
        %v599 = vpop.permute.xlu0 %598
        %600 = vrot.lane.b32.xlu0 %v283, 1
        %v601 = vpop.permute.xlu0 %600
        %602 = vrot.lane.b32.xlu0 %v284, 1
        %v603 = vpop.permute.xlu0 %602
        %604 = vrot.lane.b32.xlu0 %v285, 1
        %v605 = vpop.permute.xlu0 %604
        %606 = vrot.lane.b32.xlu0 %v286, 1
        %v607 = vpop.permute.xlu0 %606
        %608 = vrot.lane.b32.xlu0 %v287, 1
        %v609 = vpop.permute.xlu0 %608
        %674 = vrot.lane.b32.xlu0 %v288, 2
        %v675 = vpop.permute.xlu0 %674
        %676 = vrot.lane.b32.xlu0 %v289, 2
        %v677 = vpop.permute.xlu0 %676
        %678 = vrot.lane.b32.xlu0 %v290, 2
        %v679 = vpop.permute.xlu0 %678
        %680 = vrot.lane.b32.xlu0 %v291, 2
        %v681 = vpop.permute.xlu0 %680
        %682 = vrot.lane.b32.xlu0 %v292, 2
        %v683 = vpop.permute.xlu0 %682
        %684 = vrot.lane.b32.xlu0 %v293, 2
        %v685 = vpop.permute.xlu0 %684
        %686 = vrot.lane.b32.xlu0 %v294, 2
        %v687 = vpop.permute.xlu0 %686
        %688 = vrot.lane.b32.xlu0 %v295, 2
        %v689 = vpop.permute.xlu0 %688
        %690 = vrot.lane.b32.xlu0 %v296, 2
        %v691 = vpop.permute.xlu0 %690
        %692 = vrot.lane.b32.xlu0 %v297, 2
        %v693 = vpop.permute.xlu0 %692
        %694 = vrot.lane.b32.xlu0 %v298, 2
        %v695 = vpop.permute.xlu0 %694
        %696 = vrot.lane.b32.xlu0 %v299, 2
        %v697 = vpop.permute.xlu0 %696
        %698 = vrot.lane.b32.xlu0 %v300, 2
        %v699 = vpop.permute.xlu0 %698
        %700 = vrot.lane.b32.xlu0 %v301, 2
        %v701 = vpop.permute.xlu0 %700
        %702 = vrot.lane.b32.xlu0 %v302, 2
        %v703 = vpop.permute.xlu0 %702
        %704 = vrot.lane.b32.xlu0 %v303, 2
        %v705 = vpop.permute.xlu0 %704
        %706 = vrot.lane.b32.xlu0 %v304, 2
        %v707 = vpop.permute.xlu0 %706
        %708 = vrot.lane.b32.xlu0 %v305, 2
        %v709 = vpop.permute.xlu0 %708
        %710 = vrot.lane.b32.xlu0 %v306, 2
        %v711 = vpop.permute.xlu0 %710
        %712 = vrot.lane.b32.xlu0 %v307, 2
        %v713 = vpop.permute.xlu0 %712
        %714 = vrot.lane.b32.xlu0 %v308, 2
        %v715 = vpop.permute.xlu0 %714
        %716 = vrot.lane.b32.xlu0 %v309, 2
        %v717 = vpop.permute.xlu0 %716
        %718 = vrot.lane.b32.xlu0 %v310, 2
        %v719 = vpop.permute.xlu0 %718
        %720 = vrot.lane.b32.xlu0 %v311, 2
        %v721 = vpop.permute.xlu0 %720
        %722 = vrot.lane.b32.xlu0 %v312, 2
        %v723 = vpop.permute.xlu0 %722
        %724 = vrot.lane.b32.xlu0 %v313, 2
        %v725 = vpop.permute.xlu0 %724
        %726 = vrot.lane.b32.xlu0 %v314, 2
        %v727 = vpop.permute.xlu0 %726
        %728 = vrot.lane.b32.xlu0 %v315, 2
        %v729 = vpop.permute.xlu0 %728
        %730 = vrot.lane.b32.xlu0 %v316, 2
        %v731 = vpop.permute.xlu0 %730
        %732 = vrot.lane.b32.xlu0 %v317, 2
        %v733 = vpop.permute.xlu0 %732
        %734 = vrot.lane.b32.xlu0 %v318, 2
        %v735 = vpop.permute.xlu0 %734
        %736 = vrot.lane.b32.xlu0 %v319, 2
        %v737 = vpop.permute.xlu0 %736
        %802 = vrot.lane.b32.xlu0 %v321, 3
        %v803 = vpop.permute.xlu0 %802
        %804 = vrot.lane.b32.xlu0 %v322, 3
        %v805 = vpop.permute.xlu0 %804
        %806 = vrot.lane.b32.xlu0 %v323, 3
        %v807 = vpop.permute.xlu0 %806
        %808 = vrot.lane.b32.xlu0 %v324, 3
        %v809 = vpop.permute.xlu0 %808
        %810 = vrot.lane.b32.xlu0 %v325, 3
        %v811 = vpop.permute.xlu0 %810
        %812 = vrot.lane.b32.xlu0 %v326, 3
        %v813 = vpop.permute.xlu0 %812
        %814 = vrot.lane.b32.xlu0 %v327, 3
        %v815 = vpop.permute.xlu0 %814
        %816 = vrot.lane.b32.xlu0 %v328, 3
        %v817 = vpop.permute.xlu0 %816
        %818 = vrot.lane.b32.xlu0 %v329, 3
        %v819 = vpop.permute.xlu0 %818
        %820 = vrot.lane.b32.xlu0 %v330, 3
        %v821 = vpop.permute.xlu0 %820
        %822 = vrot.lane.b32.xlu0 %v331, 3
        %v823 = vpop.permute.xlu0 %822
        %824 = vrot.lane.b32.xlu0 %v332, 3
        %v825 = vpop.permute.xlu0 %824
        %826 = vrot.lane.b32.xlu0 %v333, 3
        %v827 = vpop.permute.xlu0 %826
        %828 = vrot.lane.b32.xlu0 %v334, 3
        %v829 = vpop.permute.xlu0 %828
        %830 = vrot.lane.b32.xlu0 %v335, 3
        %v831 = vpop.permute.xlu0 %830
        %832 = vrot.lane.b32.xlu0 %v336, 3
        %v833 = vpop.permute.xlu0 %832
        %834 = vrot.lane.b32.xlu0 %v337, 3
        %v835 = vpop.permute.xlu0 %834
        %836 = vrot.lane.b32.xlu0 %v338, 3
        %v837 = vpop.permute.xlu0 %836
        %838 = vrot.lane.b32.xlu0 %v339, 3
        %v839 = vpop.permute.xlu0 %838
        %840 = vrot.lane.b32.xlu0 %v340, 3
        %v841 = vpop.permute.xlu0 %840
        %842 = vrot.lane.b32.xlu0 %v341, 3
        %v843 = vpop.permute.xlu0 %842
        %844 = vrot.lane.b32.xlu0 %v342, 3
        %v845 = vpop.permute.xlu0 %844
        %846 = vrot.lane.b32.xlu0 %v343, 3
        %v847 = vpop.permute.xlu0 %846
        %848 = vrot.lane.b32.xlu0 %v344, 3
        %v849 = vpop.permute.xlu0 %848
        %850 = vrot.lane.b32.xlu0 %v345, 3
        %v851 = vpop.permute.xlu0 %850
        %852 = vrot.lane.b32.xlu0 %v346, 3
        %v853 = vpop.permute.xlu0 %852
        %854 = vrot.lane.b32.xlu0 %v347, 3
        %v855 = vpop.permute.xlu0 %854
        %856 = vrot.lane.b32.xlu0 %v348, 3
        %v857 = vpop.permute.xlu0 %856
        %858 = vrot.lane.b32.xlu0 %v349, 3
        %v859 = vpop.permute.xlu0 %858
        %860 = vrot.lane.b32.xlu0 %v350, 3
        %v861 = vpop.permute.xlu0 %860
        %862 = vrot.lane.b32.xlu0 %v351, 3
        %v863 = vpop.permute.xlu0 %862
        %864 = vrot.lane.b32.xlu0 %v352, 3
        %v865 = vpop.permute.xlu0 %864
        %930 = vrot.lane.b32.xlu0 %v353, 4
        %v931 = vpop.permute.xlu0 %930
        %932 = vrot.lane.b32.xlu0 %v354, 4
        %v933 = vpop.permute.xlu0 %932
        %934 = vrot.lane.b32.xlu0 %v355, 4
        %v935 = vpop.permute.xlu0 %934
        %936 = vrot.lane.b32.xlu0 %v356, 4
        %v937 = vpop.permute.xlu0 %936
        %938 = vrot.lane.b32.xlu0 %v357, 4
        %v939 = vpop.permute.xlu0 %938
        %940 = vrot.lane.b32.xlu0 %v358, 4
        %v941 = vpop.permute.xlu0 %940
        %942 = vrot.lane.b32.xlu0 %v359, 4
        %v943 = vpop.permute.xlu0 %942
        %944 = vrot.lane.b32.xlu0 %v360, 4
        %v945 = vpop.permute.xlu0 %944
        %946 = vrot.lane.b32.xlu0 %v361, 4
        %v947 = vpop.permute.xlu0 %946
        %948 = vrot.lane.b32.xlu0 %v362, 4
        %v949 = vpop.permute.xlu0 %948
        %950 = vrot.lane.b32.xlu0 %v363, 4
        %v951 = vpop.permute.xlu0 %950
        %952 = vrot.lane.b32.xlu0 %v364, 4
        %v953 = vpop.permute.xlu0 %952
        %954 = vrot.lane.b32.xlu0 %v365, 4
        %v955 = vpop.permute.xlu0 %954
        %956 = vrot.lane.b32.xlu0 %v366, 4
        %v957 = vpop.permute.xlu0 %956
        %958 = vrot.lane.b32.xlu0 %v367, 4
        %v959 = vpop.permute.xlu0 %958
        %960 = vrot.lane.b32.xlu0 %v368, 4
        %v961 = vpop.permute.xlu0 %960
        %962 = vrot.lane.b32.xlu0 %v369, 4
        %v963 = vpop.permute.xlu0 %962
        %964 = vrot.lane.b32.xlu0 %v370, 4
        %v965 = vpop.permute.xlu0 %964
        %966 = vrot.lane.b32.xlu0 %v371, 4
        %v967 = vpop.permute.xlu0 %966
        %968 = vrot.lane.b32.xlu0 %v372, 4
        %v969 = vpop.permute.xlu0 %968
        %970 = vrot.lane.b32.xlu0 %v373, 4
        %v971 = vpop.permute.xlu0 %970
        %972 = vrot.lane.b32.xlu0 %v374, 4
        %v973 = vpop.permute.xlu0 %972
        %974 = vrot.lane.b32.xlu0 %v375, 4
        %v975 = vpop.permute.xlu0 %974
        %976 = vrot.lane.b32.xlu0 %v376, 4
        %v977 = vpop.permute.xlu0 %976
        %978 = vrot.lane.b32.xlu0 %v377, 4
        %v979 = vpop.permute.xlu0 %978
        %980 = vrot.lane.b32.xlu0 %v378, 4
        %v981 = vpop.permute.xlu0 %980
        %982 = vrot.lane.b32.xlu0 %v379, 4
        %v983 = vpop.permute.xlu0 %982
        %984 = vrot.lane.b32.xlu0 %v380, 4
        %v985 = vpop.permute.xlu0 %984
        %986 = vrot.lane.b32.xlu0 %v381, 4
        %v987 = vpop.permute.xlu0 %986
        %988 = vrot.lane.b32.xlu0 %v382, 4
        %v989 = vpop.permute.xlu0 %988
        %990 = vrot.lane.b32.xlu0 %v383, 4
        %v991 = vpop.permute.xlu0 %990
        %992 = vrot.lane.b32.xlu0 %v384, 4
        %v993 = vpop.permute.xlu0 %992
        %1058 = vrot.lane.b32.xlu0 %v385, 5
        %v1059 = vpop.permute.xlu0 %1058
        %1060 = vrot.lane.b32.xlu0 %v386, 5
        %v1061 = vpop.permute.xlu0 %1060
        %1062 = vrot.lane.b32.xlu0 %v387, 5
        %v1063 = vpop.permute.xlu0 %1062
        %1064 = vrot.lane.b32.xlu0 %v388, 5
        %v1065 = vpop.permute.xlu0 %1064
        %1066 = vrot.lane.b32.xlu0 %v389, 5
        %v1067 = vpop.permute.xlu0 %1066
        %1068 = vrot.lane.b32.xlu0 %v390, 5
        %v1069 = vpop.permute.xlu0 %1068
        %1070 = vrot.lane.b32.xlu0 %v391, 5
        %v1071 = vpop.permute.xlu0 %1070
        %1072 = vrot.lane.b32.xlu0 %v392, 5
        %v1073 = vpop.permute.xlu0 %1072
        %1074 = vrot.lane.b32.xlu0 %v393, 5
        %v1075 = vpop.permute.xlu0 %1074
        %1076 = vrot.lane.b32.xlu0 %v394, 5
        %v1077 = vpop.permute.xlu0 %1076
        %1078 = vrot.lane.b32.xlu0 %v395, 5
        %v1079 = vpop.permute.xlu0 %1078
        %1080 = vrot.lane.b32.xlu0 %v396, 5
        %v1081 = vpop.permute.xlu0 %1080
        %1082 = vrot.lane.b32.xlu0 %v397, 5
        %v1083 = vpop.permute.xlu0 %1082
        %1084 = vrot.lane.b32.xlu0 %v398, 5
        %v1085 = vpop.permute.xlu0 %1084
        %1086 = vrot.lane.b32.xlu0 %v399, 5
        %v1087 = vpop.permute.xlu0 %1086
        %1088 = vrot.lane.b32.xlu0 %v400, 5
        %v1089 = vpop.permute.xlu0 %1088
        %1090 = vrot.lane.b32.xlu0 %v401, 5
        %v1091 = vpop.permute.xlu0 %1090
        %1092 = vrot.lane.b32.xlu0 %v402, 5
        %v1093 = vpop.permute.xlu0 %1092
        %1094 = vrot.lane.b32.xlu0 %v403, 5
        %v1095 = vpop.permute.xlu0 %1094
        %1096 = vrot.lane.b32.xlu0 %v404, 5
        %v1097 = vpop.permute.xlu0 %1096
        %1098 = vrot.lane.b32.xlu0 %v405, 5
        %v1099 = vpop.permute.xlu0 %1098
        %1100 = vrot.lane.b32.xlu0 %v406, 5
        %v1101 = vpop.permute.xlu0 %1100
        %1102 = vrot.lane.b32.xlu0 %v407, 5
        %v1103 = vpop.permute.xlu0 %1102
        %1104 = vrot.lane.b32.xlu0 %v408, 5
        %v1105 = vpop.permute.xlu0 %1104
        %1106 = vrot.lane.b32.xlu0 %v409, 5
        %v1107 = vpop.permute.xlu0 %1106
        %1108 = vrot.lane.b32.xlu0 %v410, 5
        %v1109 = vpop.permute.xlu0 %1108
        %1110 = vrot.lane.b32.xlu0 %v411, 5
        %v1111 = vpop.permute.xlu0 %1110
        %1112 = vrot.lane.b32.xlu0 %v412, 5
        %v1113 = vpop.permute.xlu0 %1112
        %1114 = vrot.lane.b32.xlu0 %v413, 5
        %v1115 = vpop.permute.xlu0 %1114
        %1116 = vrot.lane.b32.xlu0 %v414, 5
        %v1117 = vpop.permute.xlu0 %1116
        %1118 = vrot.lane.b32.xlu0 %v415, 5
        %v1119 = vpop.permute.xlu0 %1118
        %1120 = vrot.lane.b32.xlu0 %v416, 5
        %v1121 = vpop.permute.xlu0 %1120
        %1186 = vrot.lane.b32.xlu0 %v418, 6
        %v1187 = vpop.permute.xlu0 %1186
        %1188 = vrot.lane.b32.xlu0 %v419, 6
        %v1189 = vpop.permute.xlu0 %1188
        %1190 = vrot.lane.b32.xlu0 %v420, 6
        %v1191 = vpop.permute.xlu0 %1190
        %1192 = vrot.lane.b32.xlu0 %v421, 6
        %v1193 = vpop.permute.xlu0 %1192
        %1194 = vrot.lane.b32.xlu0 %v422, 6
        %v1195 = vpop.permute.xlu0 %1194
        %1196 = vrot.lane.b32.xlu0 %v423, 6
        %v1197 = vpop.permute.xlu0 %1196
        %1198 = vrot.lane.b32.xlu0 %v424, 6
        %v1199 = vpop.permute.xlu0 %1198
        %1200 = vrot.lane.b32.xlu0 %v425, 6
        %v1201 = vpop.permute.xlu0 %1200
        %1202 = vrot.lane.b32.xlu0 %v426, 6
        %v1203 = vpop.permute.xlu0 %1202
        %1204 = vrot.lane.b32.xlu0 %v427, 6
        %v1205 = vpop.permute.xlu0 %1204
        %1206 = vrot.lane.b32.xlu0 %v428, 6
        %v1207 = vpop.permute.xlu0 %1206
        %1208 = vrot.lane.b32.xlu0 %v429, 6
        %v1209 = vpop.permute.xlu0 %1208
        %1210 = vrot.lane.b32.xlu0 %v430, 6
        %v1211 = vpop.permute.xlu0 %1210
        %1212 = vrot.lane.b32.xlu0 %v431, 6
        %v1213 = vpop.permute.xlu0 %1212
        %1214 = vrot.lane.b32.xlu0 %v432, 6
        %v1215 = vpop.permute.xlu0 %1214
        %1216 = vrot.lane.b32.xlu0 %v433, 6
        %v1217 = vpop.permute.xlu0 %1216
        %1218 = vrot.lane.b32.xlu0 %v434, 6
        %v1219 = vpop.permute.xlu0 %1218
        %1220 = vrot.lane.b32.xlu0 %v435, 6
        %v1221 = vpop.permute.xlu0 %1220
        %1222 = vrot.lane.b32.xlu0 %v436, 6
        %v1223 = vpop.permute.xlu0 %1222
        %1224 = vrot.lane.b32.xlu0 %v437, 6
        %v1225 = vpop.permute.xlu0 %1224
        %1226 = vrot.lane.b32.xlu0 %v438, 6
        %v1227 = vpop.permute.xlu0 %1226
        %1228 = vrot.lane.b32.xlu0 %v439, 6
        %v1229 = vpop.permute.xlu0 %1228
        %1230 = vrot.lane.b32.xlu0 %v440, 6
        %v1231 = vpop.permute.xlu0 %1230
        %1232 = vrot.lane.b32.xlu0 %v441, 6
        %v1233 = vpop.permute.xlu0 %1232
        %1234 = vrot.lane.b32.xlu0 %v442, 6
        %v1235 = vpop.permute.xlu0 %1234
        %1236 = vrot.lane.b32.xlu0 %v443, 6
        %v1237 = vpop.permute.xlu0 %1236
        %1238 = vrot.lane.b32.xlu0 %v444, 6
        %v1239 = vpop.permute.xlu0 %1238
        %1240 = vrot.lane.b32.xlu0 %v445, 6
        %v1241 = vpop.permute.xlu0 %1240
        %1242 = vrot.lane.b32.xlu0 %v446, 6
        %v1243 = vpop.permute.xlu0 %1242
        %1244 = vrot.lane.b32.xlu0 %v447, 6
        %v1245 = vpop.permute.xlu0 %1244
        %1246 = vrot.lane.b32.xlu0 %v448, 6
        %v1247 = vpop.permute.xlu0 %1246
        %1248 = vrot.lane.b32.xlu0 %v449, 6
        %v1249 = vpop.permute.xlu0 %1248
        %1314 = vrot.lane.b32.xlu0 %v450, 7
        %v1315 = vpop.permute.xlu0 %1314
        %1316 = vrot.lane.b32.xlu0 %v451, 7
        %v1317 = vpop.permute.xlu0 %1316
        %1318 = vrot.lane.b32.xlu0 %v452, 7
        %v1319 = vpop.permute.xlu0 %1318
        %1320 = vrot.lane.b32.xlu0 %v453, 7
        %v1321 = vpop.permute.xlu0 %1320
        %1322 = vrot.lane.b32.xlu0 %v454, 7
        %v1323 = vpop.permute.xlu0 %1322
        %1324 = vrot.lane.b32.xlu0 %v455, 7
        %v1325 = vpop.permute.xlu0 %1324
        %1326 = vrot.lane.b32.xlu0 %v456, 7
        %v1327 = vpop.permute.xlu0 %1326
        %1328 = vrot.lane.b32.xlu0 %v457, 7
        %v1329 = vpop.permute.xlu0 %1328
        %1330 = vrot.lane.b32.xlu0 %v458, 7
        %v1331 = vpop.permute.xlu0 %1330
        %1332 = vrot.lane.b32.xlu0 %v459, 7
        %v1333 = vpop.permute.xlu0 %1332
        %1334 = vrot.lane.b32.xlu0 %v460, 7
        %v1335 = vpop.permute.xlu0 %1334
        %1336 = vrot.lane.b32.xlu0 %v461, 7
        %v1337 = vpop.permute.xlu0 %1336
        %1338 = vrot.lane.b32.xlu0 %v462, 7
        %v1339 = vpop.permute.xlu0 %1338
        %1340 = vrot.lane.b32.xlu0 %v463, 7
        %v1341 = vpop.permute.xlu0 %1340
        %1342 = vrot.lane.b32.xlu0 %v464, 7
        %v1343 = vpop.permute.xlu0 %1342
        %1344 = vrot.lane.b32.xlu0 %v465, 7
        %v1345 = vpop.permute.xlu0 %1344
        %1346 = vrot.lane.b32.xlu0 %v466, 7
        %v1347 = vpop.permute.xlu0 %1346
        %1348 = vrot.lane.b32.xlu0 %v467, 7
        %v1349 = vpop.permute.xlu0 %1348
        %1350 = vrot.lane.b32.xlu0 %v468, 7
        %v1351 = vpop.permute.xlu0 %1350
        %1352 = vrot.lane.b32.xlu0 %v469, 7
        %v1353 = vpop.permute.xlu0 %1352
        %1354 = vrot.lane.b32.xlu0 %v470, 7
        %v1355 = vpop.permute.xlu0 %1354
        %1356 = vrot.lane.b32.xlu0 %v471, 7
        %v1357 = vpop.permute.xlu0 %1356
        %1358 = vrot.lane.b32.xlu0 %v472, 7
        %v1359 = vpop.permute.xlu0 %1358
        %1360 = vrot.lane.b32.xlu0 %v473, 7
        %v1361 = vpop.permute.xlu0 %1360
        %1362 = vrot.lane.b32.xlu0 %v474, 7
        %v1363 = vpop.permute.xlu0 %1362
        %1364 = vrot.lane.b32.xlu0 %v475, 7
        %v1365 = vpop.permute.xlu0 %1364
        %1366 = vrot.lane.b32.xlu0 %v476, 7
        %v1367 = vpop.permute.xlu0 %1366
        %1368 = vrot.lane.b32.xlu0 %v477, 7
        %v1369 = vpop.permute.xlu0 %1368
        %1370 = vrot.lane.b32.xlu0 %v478, 7
        %v1371 = vpop.permute.xlu0 %1370
        %1372 = vrot.lane.b32.xlu0 %v479, 7
        %v1373 = vpop.permute.xlu0 %1372
        %1374 = vrot.lane.b32.xlu0 %v480, 7
        %v1375 = vpop.permute.xlu0 %1374
        %1376 = vrot.lane.b32.xlu0 %v481, 7
        %v1377 = vpop.permute.xlu0 %1376
        %1442 = vrot.lane.b32.xlu0 %v482, 8
        %v1443 = vpop.permute.xlu0 %1442
        %1444 = vrot.lane.b32.xlu0 %v483, 8
        %v1445 = vpop.permute.xlu0 %1444
        %1446 = vrot.lane.b32.xlu0 %v484, 8
        %v1447 = vpop.permute.xlu0 %1446
        %1448 = vrot.lane.b32.xlu0 %v485, 8
        %v1449 = vpop.permute.xlu0 %1448
        %1450 = vrot.lane.b32.xlu0 %v486, 8
        %v1451 = vpop.permute.xlu0 %1450
        %1452 = vrot.lane.b32.xlu0 %v487, 8
        %v1453 = vpop.permute.xlu0 %1452
        %1454 = vrot.lane.b32.xlu0 %v488, 8
        %v1455 = vpop.permute.xlu0 %1454
        %1456 = vrot.lane.b32.xlu0 %v489, 8
        %v1457 = vpop.permute.xlu0 %1456
        %1458 = vrot.lane.b32.xlu0 %v490, 8
        %v1459 = vpop.permute.xlu0 %1458
        %1460 = vrot.lane.b32.xlu0 %v491, 8
        %v1461 = vpop.permute.xlu0 %1460
        %1462 = vrot.lane.b32.xlu0 %v492, 8
        %v1463 = vpop.permute.xlu0 %1462
        %1464 = vrot.lane.b32.xlu0 %v493, 8
        %v1465 = vpop.permute.xlu0 %1464
        %1466 = vrot.lane.b32.xlu0 %v494, 8
        %v1467 = vpop.permute.xlu0 %1466
        %1468 = vrot.lane.b32.xlu0 %v495, 8
        %v1469 = vpop.permute.xlu0 %1468
        %1470 = vrot.lane.b32.xlu0 %v496, 8
        %v1471 = vpop.permute.xlu0 %1470
        %1472 = vrot.lane.b32.xlu0 %v497, 8
        %v1473 = vpop.permute.xlu0 %1472
        %1474 = vrot.lane.b32.xlu0 %v498, 8
        %v1475 = vpop.permute.xlu0 %1474
        %1476 = vrot.lane.b32.xlu0 %v499, 8
        %v1477 = vpop.permute.xlu0 %1476
        %1478 = vrot.lane.b32.xlu0 %v500, 8
        %v1479 = vpop.permute.xlu0 %1478
        %1480 = vrot.lane.b32.xlu0 %v501, 8
        %v1481 = vpop.permute.xlu0 %1480
        %1482 = vrot.lane.b32.xlu0 %v502, 8
        %v1483 = vpop.permute.xlu0 %1482
        %1484 = vrot.lane.b32.xlu0 %v503, 8
        %v1485 = vpop.permute.xlu0 %1484
        %1486 = vrot.lane.b32.xlu0 %v504, 8
        %v1487 = vpop.permute.xlu0 %1486
        %1488 = vrot.lane.b32.xlu0 %v505, 8
        %v1489 = vpop.permute.xlu0 %1488
        %1490 = vrot.lane.b32.xlu0 %v506, 8
        %v1491 = vpop.permute.xlu0 %1490
        %1492 = vrot.lane.b32.xlu0 %v507, 8
        %v1493 = vpop.permute.xlu0 %1492
        %1494 = vrot.lane.b32.xlu0 %v508, 8
        %v1495 = vpop.permute.xlu0 %1494
        %1496 = vrot.lane.b32.xlu0 %v509, 8
        %v1497 = vpop.permute.xlu0 %1496
        %1498 = vrot.lane.b32.xlu0 %v510, 8
        %v1499 = vpop.permute.xlu0 %1498
        %1500 = vrot.lane.b32.xlu0 %v511, 8
        %v1501 = vpop.permute.xlu0 %1500
        %1502 = vrot.lane.b32.xlu0 %v512, 8
        %v1503 = vpop.permute.xlu0 %1502
        %1504 = vrot.lane.b32.xlu0 %v513, 8
        %v1505 = vpop.permute.xlu0 %1504
        %vm1538 = vcmask 7168
        %v1539 = vsel %vm1538, %v224, %v547
        %v1540 = vsel %vm1538, %v225, %v549
        %v1541 = vsel %vm1538, %v226, %v551
        %v1542 = vsel %vm1538, %v227, %v553
        %v1543 = vsel %vm1538, %v228, %v555
        %v1544 = vsel %vm1538, %v229, %v557
        %v1545 = vsel %vm1538, %v230, %v559
        %v1546 = vsel %vm1538, %v231, %v561
        %v1547 = vsel %vm1538, %v232, %v563
        %v1548 = vsel %vm1538, %v233, %v565
        %v1549 = vsel %vm1538, %v234, %v567
        %v1550 = vsel %vm1538, %v235, %v569
        %v1551 = vsel %vm1538, %v236, %v571
        %v1552 = vsel %vm1538, %v237, %v573
        %v1553 = vsel %vm1538, %v238, %v575
        %v1554 = vsel %vm1538, %v239, %v577
        %v1555 = vsel %vm1538, %v240, %v579
        %v1556 = vsel %vm1538, %v241, %v581
        %v1557 = vsel %vm1538, %v242, %v583
        %v1558 = vsel %vm1538, %v243, %v585
        %v1559 = vsel %vm1538, %v244, %v587
        %v1560 = vsel %vm1538, %v245, %v589
        %v1561 = vsel %vm1538, %v246, %v591
        %v1562 = vsel %vm1538, %v247, %v593
        %v1563 = vsel %vm1538, %v248, %v595
        %v1564 = vsel %vm1538, %v249, %v597
        %v1565 = vsel %vm1538, %v250, %v599
        %v1566 = vsel %vm1538, %v251, %v601
        %v1567 = vsel %vm1538, %v252, %v603
        %v1568 = vsel %vm1538, %v253, %v605
        %v1569 = vsel %vm1538, %v254, %v607
        %v1570 = vsel %vm1538, %v255, %v609
        %vm1571 = vcmask 15360
        %v1572 = vsel %vm1571, %v1539, %v675
        %v1573 = vsel %vm1571, %v1540, %v677
        %v1574 = vsel %vm1571, %v1541, %v679
        %v1575 = vsel %vm1571, %v1542, %v681
        %v1576 = vsel %vm1571, %v1543, %v683
        %v1577 = vsel %vm1571, %v1544, %v685
        %v1578 = vsel %vm1571, %v1545, %v687
        %v1579 = vsel %vm1571, %v1546, %v689
        %v1580 = vsel %vm1571, %v1547, %v691
        %v1581 = vsel %vm1571, %v1548, %v693
        %v1582 = vsel %vm1571, %v1549, %v695
        %v1583 = vsel %vm1571, %v1550, %v697
        %v1584 = vsel %vm1571, %v1551, %v699
        %v1585 = vsel %vm1571, %v1552, %v701
        %v1586 = vsel %vm1571, %v1553, %v703
        %v1587 = vsel %vm1571, %v1554, %v705
        %v1588 = vsel %vm1571, %v1555, %v707
        %v1589 = vsel %vm1571, %v1556, %v709
        %v1590 = vsel %vm1571, %v1557, %v711
        %v1591 = vsel %vm1571, %v1558, %v713
        %v1592 = vsel %vm1571, %v1559, %v715
        %v1593 = vsel %vm1571, %v1560, %v717
        %v1594 = vsel %vm1571, %v1561, %v719
        %v1595 = vsel %vm1571, %v1562, %v721
        %v1596 = vsel %vm1571, %v1563, %v723
        %v1597 = vsel %vm1571, %v1564, %v725
        %v1598 = vsel %vm1571, %v1565, %v727
        %v1599 = vsel %vm1571, %v1566, %v729
        %v1600 = vsel %vm1571, %v1567, %v731
        %v1601 = vsel %vm1571, %v1568, %v733
        %v1602 = vsel %vm1571, %v1569, %v735
        %v1603 = vsel %vm1571, %v1570, %v737
        %vm1604 = vcmask 23552
        %v1605 = vsel %vm1604, %v1572, %v803
        %v1606 = vsel %vm1604, %v1573, %v805
        %v1607 = vsel %vm1604, %v1574, %v807
        %v1608 = vsel %vm1604, %v1575, %v809
        %v1609 = vsel %vm1604, %v1576, %v811
        %v1610 = vsel %vm1604, %v1577, %v813
        %v1611 = vsel %vm1604, %v1578, %v815
        %v1612 = vsel %vm1604, %v1579, %v817
        %v1613 = vsel %vm1604, %v1580, %v819
        %v1614 = vsel %vm1604, %v1581, %v821
        %v1615 = vsel %vm1604, %v1582, %v823
        %v1616 = vsel %vm1604, %v1583, %v825
        %v1617 = vsel %vm1604, %v1584, %v827
        %v1618 = vsel %vm1604, %v1585, %v829
        %v1619 = vsel %vm1604, %v1586, %v831
        %v1620 = vsel %vm1604, %v1587, %v833
        %v1621 = vsel %vm1604, %v1588, %v835
        %v1622 = vsel %vm1604, %v1589, %v837
        %v1623 = vsel %vm1604, %v1590, %v839
        %v1624 = vsel %vm1604, %v1591, %v841
        %v1625 = vsel %vm1604, %v1592, %v843
        %v1626 = vsel %vm1604, %v1593, %v845
        %v1627 = vsel %vm1604, %v1594, %v847
        %v1628 = vsel %vm1604, %v1595, %v849
        %v1629 = vsel %vm1604, %v1596, %v851
        %v1630 = vsel %vm1604, %v1597, %v853
        %v1631 = vsel %vm1604, %v1598, %v855
        %v1632 = vsel %vm1604, %v1599, %v857
        %v1633 = vsel %vm1604, %v1600, %v859
        %v1634 = vsel %vm1604, %v1601, %v861
        %v1635 = vsel %vm1604, %v1602, %v863
        %v1636 = vsel %vm1604, %v1603, %v865
        %vm1637 = vcmask 31744
        %v1638 = vsel %vm1637, %v1605, %v931
        %v1639 = vsel %vm1637, %v1606, %v933
        %v1640 = vsel %vm1637, %v1607, %v935
        %v1641 = vsel %vm1637, %v1608, %v937
        %v1642 = vsel %vm1637, %v1609, %v939
        %v1643 = vsel %vm1637, %v1610, %v941
        %v1644 = vsel %vm1637, %v1611, %v943
        %v1645 = vsel %vm1637, %v1612, %v945
        %v1646 = vsel %vm1637, %v1613, %v947
        %v1647 = vsel %vm1637, %v1614, %v949
        %v1648 = vsel %vm1637, %v1615, %v951
        %v1649 = vsel %vm1637, %v1616, %v953
        %v1650 = vsel %vm1637, %v1617, %v955
        %v1651 = vsel %vm1637, %v1618, %v957
        %v1652 = vsel %vm1637, %v1619, %v959
        %v1653 = vsel %vm1637, %v1620, %v961
        %v1654 = vsel %vm1637, %v1621, %v963
        %v1655 = vsel %vm1637, %v1622, %v965
        %v1656 = vsel %vm1637, %v1623, %v967
        %v1657 = vsel %vm1637, %v1624, %v969
        %v1658 = vsel %vm1637, %v1625, %v971
        %v1659 = vsel %vm1637, %v1626, %v973
        %v1660 = vsel %vm1637, %v1627, %v975
        %v1661 = vsel %vm1637, %v1628, %v977
        %v1662 = vsel %vm1637, %v1629, %v979
        %v1663 = vsel %vm1637, %v1630, %v981
        %v1664 = vsel %vm1637, %v1631, %v983
        %v1665 = vsel %vm1637, %v1632, %v985
        %v1666 = vsel %vm1637, %v1633, %v987
        %v1667 = vsel %vm1637, %v1634, %v989
        %v1668 = vsel %vm1637, %v1635, %v991
        %v1669 = vsel %vm1637, %v1636, %v993
        %vm1670 = vcmask 39936
        %v1671 = vsel %vm1670, %v1638, %v1059
        %v1672 = vsel %vm1670, %v1639, %v1061
        %v1673 = vsel %vm1670, %v1640, %v1063
        %v1674 = vsel %vm1670, %v1641, %v1065
        %v1675 = vsel %vm1670, %v1642, %v1067
        %v1676 = vsel %vm1670, %v1643, %v1069
        %v1677 = vsel %vm1670, %v1644, %v1071
        %v1678 = vsel %vm1670, %v1645, %v1073
        %v1679 = vsel %vm1670, %v1646, %v1075
        %v1680 = vsel %vm1670, %v1647, %v1077
        %v1681 = vsel %vm1670, %v1648, %v1079
        %v1682 = vsel %vm1670, %v1649, %v1081
        %v1683 = vsel %vm1670, %v1650, %v1083
        %v1684 = vsel %vm1670, %v1651, %v1085
        %v1685 = vsel %vm1670, %v1652, %v1087
        %v1686 = vsel %vm1670, %v1653, %v1089
        %v1687 = vsel %vm1670, %v1654, %v1091
        %v1688 = vsel %vm1670, %v1655, %v1093
        %v1689 = vsel %vm1670, %v1656, %v1095
        %v1690 = vsel %vm1670, %v1657, %v1097
        %v1691 = vsel %vm1670, %v1658, %v1099
        %v1692 = vsel %vm1670, %v1659, %v1101
        %v1693 = vsel %vm1670, %v1660, %v1103
        %v1694 = vsel %vm1670, %v1661, %v1105
        %v1695 = vsel %vm1670, %v1662, %v1107
        %v1696 = vsel %vm1670, %v1663, %v1109
        %v1697 = vsel %vm1670, %v1664, %v1111
        %v1698 = vsel %vm1670, %v1665, %v1113
        %v1699 = vsel %vm1670, %v1666, %v1115
        %v1700 = vsel %vm1670, %v1667, %v1117
        %v1701 = vsel %vm1670, %v1668, %v1119
        %v1702 = vsel %vm1670, %v1669, %v1121
        %vm1703 = vcmask 48128
        %v1704 = vsel %vm1703, %v1671, %v1187
        %v1705 = vsel %vm1703, %v1672, %v1189
        %v1706 = vsel %vm1703, %v1673, %v1191
        %v1707 = vsel %vm1703, %v1674, %v1193
        %v1708 = vsel %vm1703, %v1675, %v1195
        %v1709 = vsel %vm1703, %v1676, %v1197
        %v1710 = vsel %vm1703, %v1677, %v1199
        %v1711 = vsel %vm1703, %v1678, %v1201
        %v1712 = vsel %vm1703, %v1679, %v1203
        %v1713 = vsel %vm1703, %v1680, %v1205
        %v1714 = vsel %vm1703, %v1681, %v1207
        %v1715 = vsel %vm1703, %v1682, %v1209
        %v1716 = vsel %vm1703, %v1683, %v1211
        %v1717 = vsel %vm1703, %v1684, %v1213
        %v1718 = vsel %vm1703, %v1685, %v1215
        %v1719 = vsel %vm1703, %v1686, %v1217
        %v1720 = vsel %vm1703, %v1687, %v1219
        %v1721 = vsel %vm1703, %v1688, %v1221
        %v1722 = vsel %vm1703, %v1689, %v1223
        %v1723 = vsel %vm1703, %v1690, %v1225
        %v1724 = vsel %vm1703, %v1691, %v1227
        %v1725 = vsel %vm1703, %v1692, %v1229
        %v1726 = vsel %vm1703, %v1693, %v1231
        %v1727 = vsel %vm1703, %v1694, %v1233
        %v1728 = vsel %vm1703, %v1695, %v1235
        %v1729 = vsel %vm1703, %v1696, %v1237
        %v1730 = vsel %vm1703, %v1697, %v1239
        %v1731 = vsel %vm1703, %v1698, %v1241
        %v1732 = vsel %vm1703, %v1699, %v1243
        %v1733 = vsel %vm1703, %v1700, %v1245
        %v1734 = vsel %vm1703, %v1701, %v1247
        %v1735 = vsel %vm1703, %v1702, %v1249
        %vm1736 = vcmask 56320
        %v1737 = vsel %vm1736, %v1704, %v1315
        %v1738 = vsel %vm1736, %v1705, %v1317
        %v1739 = vsel %vm1736, %v1706, %v1319
        %v1740 = vsel %vm1736, %v1707, %v1321
        %v1741 = vsel %vm1736, %v1708, %v1323
        %v1742 = vsel %vm1736, %v1709, %v1325
        %v1743 = vsel %vm1736, %v1710, %v1327
        %v1744 = vsel %vm1736, %v1711, %v1329
        %v1745 = vsel %vm1736, %v1712, %v1331
        %v1746 = vsel %vm1736, %v1713, %v1333
        %v1747 = vsel %vm1736, %v1714, %v1335
        %v1748 = vsel %vm1736, %v1715, %v1337
        %v1749 = vsel %vm1736, %v1716, %v1339
        %v1750 = vsel %vm1736, %v1717, %v1341
        %v1751 = vsel %vm1736, %v1718, %v1343
        %v1752 = vsel %vm1736, %v1719, %v1345
        %v1753 = vsel %vm1736, %v1720, %v1347
        %v1754 = vsel %vm1736, %v1721, %v1349
        %v1755 = vsel %vm1736, %v1722, %v1351
        %v1756 = vsel %vm1736, %v1723, %v1353
        %v1757 = vsel %vm1736, %v1724, %v1355
        %v1758 = vsel %vm1736, %v1725, %v1357
        %v1759 = vsel %vm1736, %v1726, %v1359
        %v1760 = vsel %vm1736, %v1727, %v1361
        %v1761 = vsel %vm1736, %v1728, %v1363
        %v1762 = vsel %vm1736, %v1729, %v1365
        %v1763 = vsel %vm1736, %v1730, %v1367
        %v1764 = vsel %vm1736, %v1731, %v1369
        %v1765 = vsel %vm1736, %v1732, %v1371
        %v1766 = vsel %vm1736, %v1733, %v1373
        %v1767 = vsel %vm1736, %v1734, %v1375
        %v1768 = vsel %vm1736, %v1735, %v1377
        %vm1769 = vcmask 64512
        %v1770 = vsel %vm1769, %v1737, %v1443
        %v1771 = vsel %vm1769, %v1738, %v1445
        %v1772 = vsel %vm1769, %v1739, %v1447
        %v1773 = vsel %vm1769, %v1740, %v1449
        %v1774 = vsel %vm1769, %v1741, %v1451
        %v1775 = vsel %vm1769, %v1742, %v1453
        %v1776 = vsel %vm1769, %v1743, %v1455
        %v1777 = vsel %vm1769, %v1744, %v1457
        %v1778 = vsel %vm1769, %v1745, %v1459
        %v1779 = vsel %vm1769, %v1746, %v1461
        %v1780 = vsel %vm1769, %v1747, %v1463
        %v1781 = vsel %vm1769, %v1748, %v1465
        %v1782 = vsel %vm1769, %v1749, %v1467
        %v1783 = vsel %vm1769, %v1750, %v1469
        %v1784 = vsel %vm1769, %v1751, %v1471
        %v1785 = vsel %vm1769, %v1752, %v1473
        %v1786 = vsel %vm1769, %v1753, %v1475
        %v1787 = vsel %vm1769, %v1754, %v1477
        %v1788 = vsel %vm1769, %v1755, %v1479
        %v1789 = vsel %vm1769, %v1756, %v1481
        %v1790 = vsel %vm1769, %v1757, %v1483
        %v1791 = vsel %vm1769, %v1758, %v1485
        %v1792 = vsel %vm1769, %v1759, %v1487
        %v1793 = vsel %vm1769, %v1760, %v1489
        %v1794 = vsel %vm1769, %v1761, %v1491
        %v1795 = vsel %vm1769, %v1762, %v1493
        %v1796 = vsel %vm1769, %v1763, %v1495
        %v1797 = vsel %vm1769, %v1764, %v1497
        %v1798 = vsel %vm1769, %v1765, %v1499
        %v1799 = vsel %vm1769, %v1766, %v1501
        %v1800 = vsel %vm1769, %v1767, %v1503
        %v1801 = vsel %vm1769, %v1768, %v1505
        %v1802 = vpack.c.bf16 %v1771, %v1770
        %v1803 = vpack.c.bf16 %v1773, %v1772
        %v1804 = vpack.c.bf16 %v1775, %v1774
        %v1805 = vpack.c.bf16 %v1777, %v1776
        %v1806 = vpack.c.bf16 %v1779, %v1778
        %v1807 = vpack.c.bf16 %v1781, %v1780
        %v1808 = vpack.c.bf16 %v1783, %v1782
        %v1809 = vpack.c.bf16 %v1785, %v1784
        %v1810 = vpack.c.bf16 %v1787, %v1786
        %v1811 = vpack.c.bf16 %v1789, %v1788
        %v1812 = vpack.c.bf16 %v1791, %v1790
        %v1813 = vpack.c.bf16 %v1793, %v1792
        %v1814 = vpack.c.bf16 %v1795, %v1794
        %v1815 = vpack.c.bf16 %v1797, %v1796
        %v1816 = vpack.c.bf16 %v1799, %v1798
        %v1817 = vpack.c.bf16 %v1801, %v1800
        %v1818 = vld [vmem:[%s1] sm:$0xf]
        %v1819 = vld [vmem:[%s1 + $0x4] sm:$0x1]
        %v1820 = vld [vmem:[%s2] sm:$0x1]
        %v1822 = vperm.slane %v1820, 0
        %v1826 = vunpack.c.l.b16 %v1818
        %v1827 = vunpack.c.l.b16 %v1819
        %v1828 = vpack.c.b16 %v1827, %v1826
        %vm1829 = vcmask 72704
        %v1831 = vsel %vm1829, %v1802, 0
        %v1834 = vsel %vm1829, %v1803, 0
        %v1837 = vsel %vm1829, %v1804, 0
        %v1840 = vsel %vm1829, %v1805, 0
        %v1843 = vsel %vm1829, %v1806, 0
        %v1846 = vsel %vm1829, %v1807, 0
        %v1849 = vsel %vm1829, %v1808, 0
        %v1852 = vsel %vm1829, %v1809, 0
        %v1855 = vsel %vm1829, %v1810, 0
        %v1858 = vsel %vm1829, %v1811, 0
        %v1861 = vsel %vm1829, %v1812, 0
        %v1864 = vsel %vm1829, %v1813, 0
        %v1867 = vsel %vm1829, %v1814, 0
        %v1870 = vsel %vm1829, %v1815, 0
        %v1873 = vsel %vm1829, %v1816, 0
        %v1876 = vsel %vm1829, %v1817, 0
        %vm1878 = vcmask 1043456
        %vm1879 = vcmask 1044480
        %v1880 = vsel %vm1878, 4294967295, 65535
        %v1881 = vsel %vm1879, %v1880, 0
        %v1883 = vand.u32 %v1828, %v1881
        %1885 = vmatpush.bf16.msra.mxu0 0
        %1886 = vmatpush.bf16.msra.mxu0 0
        %1887 = vmatpush.bf16.msra.mxu0 0
        %1888 = vmatpush.bf16.msra.mxu0 0
        %1889 = vmatpush.bf16.msra.mxu0 0
        %1890 = vmatpush.bf16.msra.mxu0 0
        %1891 = vmatpush.bf16.msra.mxu0 0
        %1892 = vmatpush.bf16.msra.mxu0 %v1883
        %1893 = vmatmul.bf16.gmra.mxu0 %v1831
        %v1894 = vpop.f32.mrf.mxu0
        %v1895 = vadd.f32 %v1822, %v1894
        %v1896 = vpop.f32.mrf.mxu0
        %v1897 = vadd.f32 %v1822, %v1896
        %1898 = vmatmul.bf16.gmra.mxu0 %v1834
        %v1899 = vpop.f32.mrf.mxu0
        %v1900 = vadd.f32 %v1822, %v1899
        %v1901 = vpop.f32.mrf.mxu0
        %v1902 = vadd.f32 %v1822, %v1901
        %1903 = vmatmul.bf16.gmra.mxu0 %v1837
        %v1904 = vpop.f32.mrf.mxu0
        %v1905 = vadd.f32 %v1822, %v1904
        %v1906 = vpop.f32.mrf.mxu0
        %v1907 = vadd.f32 %v1822, %v1906
        %1908 = vmatmul.bf16.gmra.mxu0 %v1840
        %v1909 = vpop.f32.mrf.mxu0
        %v1910 = vadd.f32 %v1822, %v1909
        %v1911 = vpop.f32.mrf.mxu0
        %v1912 = vadd.f32 %v1822, %v1911
        %1913 = vmatmul.bf16.gmra.mxu0 %v1843
        %v1914 = vpop.f32.mrf.mxu0
        %v1915 = vadd.f32 %v1822, %v1914
        %v1916 = vpop.f32.mrf.mxu0
        %v1917 = vadd.f32 %v1822, %v1916
        %1918 = vmatmul.bf16.gmra.mxu0 %v1846
        %v1919 = vpop.f32.mrf.mxu0
        %v1920 = vadd.f32 %v1822, %v1919
        %v1921 = vpop.f32.mrf.mxu0
        %v1922 = vadd.f32 %v1822, %v1921
        %1923 = vmatmul.bf16.gmra.mxu0 %v1849
        %v1924 = vpop.f32.mrf.mxu0
        %v1925 = vadd.f32 %v1822, %v1924
        %v1926 = vpop.f32.mrf.mxu0
        %v1927 = vadd.f32 %v1822, %v1926
        %1928 = vmatmul.bf16.gmra.mxu0 %v1852
        %v1929 = vpop.f32.mrf.mxu0
        %v1930 = vadd.f32 %v1822, %v1929
        %v1931 = vpop.f32.mrf.mxu0
        %v1932 = vadd.f32 %v1822, %v1931
        %1933 = vmatmul.bf16.gmra.mxu0 %v1855
        %v1934 = vpop.f32.mrf.mxu0
        %v1935 = vadd.f32 %v1822, %v1934
        %v1936 = vpop.f32.mrf.mxu0
        %v1937 = vadd.f32 %v1822, %v1936
        %1938 = vmatmul.bf16.gmra.mxu0 %v1858
        %v1939 = vpop.f32.mrf.mxu0
        %v1940 = vadd.f32 %v1822, %v1939
        %v1941 = vpop.f32.mrf.mxu0
        %v1942 = vadd.f32 %v1822, %v1941
        %1943 = vmatmul.bf16.gmra.mxu0 %v1861
        %v1944 = vpop.f32.mrf.mxu0
        %v1945 = vadd.f32 %v1822, %v1944
        %v1946 = vpop.f32.mrf.mxu0
        %v1947 = vadd.f32 %v1822, %v1946
        %1948 = vmatmul.bf16.gmra.mxu0 %v1864
        %v1949 = vpop.f32.mrf.mxu0
        %v1950 = vadd.f32 %v1822, %v1949
        %v1951 = vpop.f32.mrf.mxu0
        %v1952 = vadd.f32 %v1822, %v1951
        %1953 = vmatmul.bf16.gmra.mxu0 %v1867
        %v1954 = vpop.f32.mrf.mxu0
        %v1955 = vadd.f32 %v1822, %v1954
        %v1956 = vpop.f32.mrf.mxu0
        %v1957 = vadd.f32 %v1822, %v1956
        %1958 = vmatmul.bf16.gmra.mxu0 %v1870
        %v1959 = vpop.f32.mrf.mxu0
        %v1960 = vadd.f32 %v1822, %v1959
        %v1961 = vpop.f32.mrf.mxu0
        %v1962 = vadd.f32 %v1822, %v1961
        %1963 = vmatmul.bf16.gmra.mxu0 %v1873
        %v1964 = vpop.f32.mrf.mxu0
        %v1965 = vadd.f32 %v1822, %v1964
        %v1966 = vpop.f32.mrf.mxu0
        %v1967 = vadd.f32 %v1822, %v1966
        %1968 = vmatmul.bf16.gmra.mxu0 %v1876
        %v1969 = vpop.f32.mrf.mxu0
        %v1970 = vadd.f32 %v1822, %v1969
        %v1971 = vpop.f32.mrf.mxu0
        %v1972 = vadd.f32 %v1822, %v1971
        %1973 = vdwg.mxu0
        %v1974 = vmax.f32 %v1895, 0.0
        %v1975 = vmax.f32 %v1897, 0.0
        %v1976 = vmax.f32 %v1900, 0.0
        %v1977 = vmax.f32 %v1902, 0.0
        %v1978 = vmax.f32 %v1905, 0.0
        %v1979 = vmax.f32 %v1907, 0.0
        %v1980 = vmax.f32 %v1910, 0.0
        %v1981 = vmax.f32 %v1912, 0.0
        %v1982 = vmax.f32 %v1915, 0.0
        %v1983 = vmax.f32 %v1917, 0.0
        %v1984 = vmax.f32 %v1920, 0.0
        %v1985 = vmax.f32 %v1922, 0.0
        %v1986 = vmax.f32 %v1925, 0.0
        %v1987 = vmax.f32 %v1927, 0.0
        %v1988 = vmax.f32 %v1930, 0.0
        %v1989 = vmax.f32 %v1932, 0.0
        %v1990 = vmax.f32 %v1935, 0.0
        %v1991 = vmax.f32 %v1937, 0.0
        %v1992 = vmax.f32 %v1940, 0.0
        %v1993 = vmax.f32 %v1942, 0.0
        %v1994 = vmax.f32 %v1945, 0.0
        %v1995 = vmax.f32 %v1947, 0.0
        %v1996 = vmax.f32 %v1950, 0.0
        %v1997 = vmax.f32 %v1952, 0.0
        %v1998 = vmax.f32 %v1955, 0.0
        %v1999 = vmax.f32 %v1957, 0.0
        %v2000 = vmax.f32 %v1960, 0.0
        %v2001 = vmax.f32 %v1962, 0.0
        %v2002 = vmax.f32 %v1965, 0.0
        %v2003 = vmax.f32 %v1967, 0.0
        %v2004 = vmax.f32 %v1970, 0.0
        %v2005 = vmax.f32 %v1972, 0.0
        %2006 = vst.msk [vmem:[#allocation2] sm:$0xff] %vm1637, 0.0
        %2007 = vst.msk [vmem:[#allocation2 + $0x8] sm:$0xff] %vm1637, 0.0
        %vm2008 = vcmask 25600
        %2009 = vst.msk [vmem:[#allocation2 + $0x10] sm:$0x3] %vm2008, 0.0
        %2010 = vst.msk [vmem:[#allocation2 + $0x18] sm:$0xff] %vm1637, 0.0
        %2011 = vst.msk [vmem:[#allocation2 + $0x20] sm:$0xff] %vm1637, 0.0
        %2012 = vst.msk [vmem:[#allocation2 + $0x28] sm:$0x3] %vm2008, 0.0
        %2013 = vst.msk [vmem:[#allocation2 + $0x30] sm:$0xff] %vm1637, 0.0
        %2014 = vst.msk [vmem:[#allocation2 + $0x38] sm:$0xff] %vm1637, 0.0
        %2015 = vst.msk [vmem:[#allocation2 + $0x40] sm:$0x3] %vm2008, 0.0
        %2016 = vst.msk [vmem:[#allocation2 + $0x48] sm:$0xff] %vm1637, 0.0
        %2017 = vst.msk [vmem:[#allocation2 + $0x50] sm:$0xff] %vm1637, 0.0
        %2018 = vst.msk [vmem:[#allocation2 + $0x58] sm:$0x3] %vm2008, 0.0
        %2019 = vst.msk [vmem:[#allocation2 + $0x60] sm:$0xff] %vm1637, 0.0
        %2020 = vst.msk [vmem:[#allocation2 + $0x68] sm:$0xff] %vm1637, 0.0
        %2021 = vst.msk [vmem:[#allocation2 + $0x70] sm:$0x3] %vm2008, 0.0
        %2022 = vst.msk [vmem:[#allocation2 + $0x78] sm:$0xff] %vm1637, 0.0
        %2023 = vst.msk [vmem:[#allocation2 + $0x80] sm:$0xff] %vm1637, 0.0
        %2024 = vst.msk [vmem:[#allocation2 + $0x88] sm:$0x3] %vm2008, 0.0
        %2025 = vst.msk [vmem:[#allocation2 + $0x90] sm:$0xff] %vm1637, 0.0
        %2026 = vst.msk [vmem:[#allocation2 + $0x98] sm:$0xff] %vm1637, 0.0
        %2027 = vst.msk [vmem:[#allocation2 + $0xa0] sm:$0x3] %vm2008, 0.0
        %2028 = vst.msk [vmem:[#allocation2 + $0xa8] sm:$0xff] %vm1637, 0.0
        %2029 = vst.msk [vmem:[#allocation2 + $0xb0] sm:$0xff] %vm1637, 0.0
        %2030 = vst.msk [vmem:[#allocation2 + $0xb8] sm:$0x3] %vm2008, 0.0
        %2031 = vst.msk [vmem:[#allocation2 + $0xc0] sm:$0xff] %vm1637, 0.0
        %2032 = vst.msk [vmem:[#allocation2 + $0xc8] sm:$0xff] %vm1637, 0.0
        %2033 = vst.msk [vmem:[#allocation2 + $0xd0] sm:$0x3] %vm2008, 0.0
        %2034 = vst.msk [vmem:[#allocation2 + $0xd8] sm:$0xff] %vm1637, 0.0
        %2035 = vst.msk [vmem:[#allocation2 + $0xe0] sm:$0xff] %vm1637, 0.0
        %2036 = vst.msk [vmem:[#allocation2 + $0xe8] sm:$0x3] %vm2008, 0.0
        %2037 = vst.msk [vmem:[#allocation2 + $0xf0] sm:$0xff] %vm1637, 0.0
        %2038 = vst.msk [vmem:[#allocation2 + $0xf8] sm:$0xff] %vm1637, 0.0
        %2039 = vst.msk [vmem:[#allocation2 + $0x100] sm:$0x3] %vm2008, 0.0
        %2040 = vst.msk [vmem:[#allocation2 + $0x108] sm:$0xff] %vm1637, 0.0
        %2041 = vst.msk [vmem:[#allocation2 + $0x110] sm:$0xff] %vm1637, 0.0
        %2042 = vst.msk [vmem:[#allocation2 + $0x118] sm:$0x3] %vm2008, 0.0
        %2043 = vst.msk [vmem:[#allocation2 + $0x120] sm:$0xff] %vm1637, 0.0
        %2044 = vst.msk [vmem:[#allocation2 + $0x128] sm:$0xff] %vm1637, 0.0
        %2045 = vst.msk [vmem:[#allocation2 + $0x130] sm:$0x3] %vm2008, 0.0
        %2046 = vst.msk [vmem:[#allocation2 + $0x138] sm:$0xff] %vm1637, 0.0
        %2047 = vst.msk [vmem:[#allocation2 + $0x140] sm:$0xff] %vm1637, 0.0
        %2048 = vst.msk [vmem:[#allocation2 + $0x148] sm:$0x3] %vm2008, 0.0
        %2049 = vst.msk [vmem:[#allocation2 + $0x150] sm:$0xff] %vm1637, 0.0
        %2050 = vst.msk [vmem:[#allocation2 + $0x158] sm:$0xff] %vm1637, 0.0
        %2051 = vst.msk [vmem:[#allocation2 + $0x160] sm:$0x3] %vm2008, 0.0
        %2052 = vst.msk [vmem:[#allocation2 + $0x168] sm:$0xff] %vm1637, 0.0
        %2053 = vst.msk [vmem:[#allocation2 + $0x170] sm:$0xff] %vm1637, 0.0
        %2054 = vst.msk [vmem:[#allocation2 + $0x178] sm:$0x3] %vm2008, 0.0
        %2055 = vst.msk [vmem:[#allocation2 + $0x180] sm:$0xff] %vm1637, 0.0
        %2056 = vst.msk [vmem:[#allocation2 + $0x188] sm:$0xff] %vm1637, 0.0
        %2057 = vst.msk [vmem:[#allocation2 + $0x190] sm:$0x3] %vm2008, 0.0
        %2058 = vst.msk [vmem:[#allocation2 + $0x198] sm:$0xff] %vm1637, 0.0
        %2059 = vst.msk [vmem:[#allocation2 + $0x1a0] sm:$0xff] %vm1637, 0.0
        %2060 = vst.msk [vmem:[#allocation2 + $0x1a8] sm:$0x3] %vm2008, 0.0
        %s2061 = scalar_lea.vmem [#allocation2], 24
        %2062 = vst.msk [vmem:[%s2061 + $0x1] sm:$0xff] %vm1637, %v1974
        %2063 = vst.msk [vmem:[%s2061 + $0x9] sm:$0xff] %vm1637, %v1975
        %2064 = vst.msk [vmem:[%s2061 + $0x19] sm:$0xff] %vm1637, %v1976
        %2065 = vst.msk [vmem:[%s2061 + $0x21] sm:$0xff] %vm1637, %v1977
        %2066 = vst.msk [vmem:[%s2061 + $0x31] sm:$0xff] %vm1637, %v1978
        %2067 = vst.msk [vmem:[%s2061 + $0x39] sm:$0xff] %vm1637, %v1979
        %2068 = vst.msk [vmem:[%s2061 + $0x49] sm:$0xff] %vm1637, %v1980
        %2069 = vst.msk [vmem:[%s2061 + $0x51] sm:$0xff] %vm1637, %v1981
        %2070 = vst.msk [vmem:[%s2061 + $0x61] sm:$0xff] %vm1637, %v1982
        %2071 = vst.msk [vmem:[%s2061 + $0x69] sm:$0xff] %vm1637, %v1983
        %2072 = vst.msk [vmem:[%s2061 + $0x79] sm:$0xff] %vm1637, %v1984
        %2073 = vst.msk [vmem:[%s2061 + $0x81] sm:$0xff] %vm1637, %v1985
        %2074 = vst.msk [vmem:[%s2061 + $0x91] sm:$0xff] %vm1637, %v1986
        %2075 = vst.msk [vmem:[%s2061 + $0x99] sm:$0xff] %vm1637, %v1987
        %2076 = vst.msk [vmem:[%s2061 + $0xa9] sm:$0xff] %vm1637, %v1988
        %2077 = vst.msk [vmem:[%s2061 + $0xb1] sm:$0xff] %vm1637, %v1989
        %2078 = vst.msk [vmem:[%s2061 + $0xc1] sm:$0xff] %vm1637, %v1990
        %2079 = vst.msk [vmem:[%s2061 + $0xc9] sm:$0xff] %vm1637, %v1991
        %2080 = vst.msk [vmem:[%s2061 + $0xd9] sm:$0xff] %vm1637, %v1992
        %2081 = vst.msk [vmem:[%s2061 + $0xe1] sm:$0xff] %vm1637, %v1993
        %2082 = vst.msk [vmem:[%s2061 + $0xf1] sm:$0xff] %vm1637, %v1994
        %2083 = vst.msk [vmem:[%s2061 + $0xf9] sm:$0xff] %vm1637, %v1995
        %2084 = vst.msk [vmem:[%s2061 + $0x109] sm:$0xff] %vm1637, %v1996
        %2085 = vst.msk [vmem:[%s2061 + $0x111] sm:$0xff] %vm1637, %v1997
        %2086 = vst.msk [vmem:[%s2061 + $0x121] sm:$0xff] %vm1637, %v1998
        %2087 = vst.msk [vmem:[%s2061 + $0x129] sm:$0xff] %vm1637, %v1999
        %2088 = vst.msk [vmem:[%s2061 + $0x139] sm:$0xff] %vm1637, %v2000
        %2089 = vst.msk [vmem:[%s2061 + $0x141] sm:$0xff] %vm1637, %v2001
        %2090 = vst.msk [vmem:[%s2061 + $0x151] sm:$0xff] %vm1637, %v2002
        %2091 = vst.msk [vmem:[%s2061 + $0x159] sm:$0xff] %vm1637, %v2003
        %2092 = vst.msk [vmem:[%s2061 + $0x169] sm:$0xff] %vm1637, %v2004
        %2093 = vst.msk [vmem:[%s2061 + $0x171] sm:$0xff] %vm1637, %v2005
        %v2094 = vld [vmem:[#allocation2] sm:$0xff]
        %v2095 = vld [vmem:[#allocation2 + $0x8] sm:$0xff]
        %v2096 = vld [vmem:[#allocation2 + $0x18] sm:$0xff]
        %v2097 = vld [vmem:[#allocation2 + $0x20] sm:$0xff]
        %v2098 = vld [vmem:[#allocation2 + $0x30] sm:$0xff]
        %v2099 = vld [vmem:[#allocation2 + $0x38] sm:$0xff]
        %v2100 = vld [vmem:[#allocation2 + $0x48] sm:$0xff]
        %v2101 = vld [vmem:[#allocation2 + $0x50] sm:$0xff]
        %v2102 = vld [vmem:[#allocation2 + $0x60] sm:$0xff]
        %v2103 = vld [vmem:[#allocation2 + $0x68] sm:$0xff]
        %v2104 = vld [vmem:[#allocation2 + $0x78] sm:$0xff]
        %v2105 = vld [vmem:[#allocation2 + $0x80] sm:$0xff]
        %v2106 = vld [vmem:[#allocation2 + $0x90] sm:$0xff]
        %v2107 = vld [vmem:[#allocation2 + $0x98] sm:$0xff]
        %v2108 = vld [vmem:[#allocation2 + $0xa8] sm:$0xff]
        %v2109 = vld [vmem:[#allocation2 + $0xb0] sm:$0xff]
        %v2110 = vld [vmem:[#allocation2 + $0xc0] sm:$0xff]
        %v2111 = vld [vmem:[#allocation2 + $0xc8] sm:$0xff]
        %v2112 = vld [vmem:[#allocation2 + $0xd8] sm:$0xff]
        %v2113 = vld [vmem:[#allocation2 + $0xe0] sm:$0xff]
        %v2114 = vld [vmem:[#allocation2 + $0xf0] sm:$0xff]
        %v2115 = vld [vmem:[#allocation2 + $0xf8] sm:$0xff]
        %v2116 = vld [vmem:[#allocation2 + $0x108] sm:$0xff]
        %v2117 = vld [vmem:[#allocation2 + $0x110] sm:$0xff]
        %v2118 = vld [vmem:[#allocation2 + $0x120] sm:$0xff]
        %v2119 = vld [vmem:[#allocation2 + $0x128] sm:$0xff]
        %v2120 = vld [vmem:[#allocation2 + $0x138] sm:$0xff]
        %v2121 = vld [vmem:[#allocation2 + $0x140] sm:$0xff]
        %v2122 = vld [vmem:[#allocation2 + $0x150] sm:$0xff]
        %v2123 = vld [vmem:[#allocation2 + $0x158] sm:$0xff]
        %v2124 = vld [vmem:[#allocation2 + $0x168] sm:$0xff]
        %v2125 = vld [vmem:[#allocation2 + $0x170] sm:$0xff]
        %v2126 = vld [vmem:[#allocation2 + $0x1] sm:$0xff]
        %v2127 = vld [vmem:[#allocation2 + $0x9] sm:$0xff]
        %v2128 = vld [vmem:[#allocation2 + $0x19] sm:$0xff]
        %v2129 = vld [vmem:[#allocation2 + $0x21] sm:$0xff]
        %v2130 = vld [vmem:[#allocation2 + $0x31] sm:$0xff]
        %v2131 = vld [vmem:[#allocation2 + $0x39] sm:$0xff]
        %v2132 = vld [vmem:[#allocation2 + $0x49] sm:$0xff]
        %v2133 = vld [vmem:[#allocation2 + $0x51] sm:$0xff]
        %v2134 = vld [vmem:[#allocation2 + $0x61] sm:$0xff]
        %v2135 = vld [vmem:[#allocation2 + $0x69] sm:$0xff]
        %v2136 = vld [vmem:[#allocation2 + $0x79] sm:$0xff]
        %v2137 = vld [vmem:[#allocation2 + $0x81] sm:$0xff]
        %v2138 = vld [vmem:[#allocation2 + $0x91] sm:$0xff]
        %v2139 = vld [vmem:[#allocation2 + $0x99] sm:$0xff]
        %v2140 = vld [vmem:[#allocation2 + $0xa9] sm:$0xff]
        %v2141 = vld [vmem:[#allocation2 + $0xb1] sm:$0xff]
        %v2142 = vld [vmem:[#allocation2 + $0xc1] sm:$0xff]
        %v2143 = vld [vmem:[#allocation2 + $0xc9] sm:$0xff]
        %v2144 = vld [vmem:[#allocation2 + $0xd9] sm:$0xff]
        %v2145 = vld [vmem:[#allocation2 + $0xe1] sm:$0xff]
        %v2146 = vld [vmem:[#allocation2 + $0xf1] sm:$0xff]
        %v2147 = vld [vmem:[#allocation2 + $0xf9] sm:$0xff]
        %v2148 = vld [vmem:[#allocation2 + $0x109] sm:$0xff]
        %v2149 = vld [vmem:[#allocation2 + $0x111] sm:$0xff]
        %v2150 = vld [vmem:[#allocation2 + $0x121] sm:$0xff]
        %v2151 = vld [vmem:[#allocation2 + $0x129] sm:$0xff]
        %v2152 = vld [vmem:[#allocation2 + $0x139] sm:$0xff]
        %v2153 = vld [vmem:[#allocation2 + $0x141] sm:$0xff]
        %v2154 = vld [vmem:[#allocation2 + $0x151] sm:$0xff]
        %v2155 = vld [vmem:[#allocation2 + $0x159] sm:$0xff]
        %v2156 = vld [vmem:[#allocation2 + $0x169] sm:$0xff]
        %v2157 = vld [vmem:[#allocation2 + $0x171] sm:$0xff]
        %v2158 = vld [vmem:[#allocation2 + $0x2] sm:$0xff]
        %v2159 = vld [vmem:[#allocation2 + $0xa] sm:$0xff]
        %v2160 = vld [vmem:[#allocation2 + $0x1a] sm:$0xff]
        %v2161 = vld [vmem:[#allocation2 + $0x22] sm:$0xff]
        %v2162 = vld [vmem:[#allocation2 + $0x32] sm:$0xff]
        %v2163 = vld [vmem:[#allocation2 + $0x3a] sm:$0xff]
        %v2164 = vld [vmem:[#allocation2 + $0x4a] sm:$0xff]
        %v2165 = vld [vmem:[#allocation2 + $0x52] sm:$0xff]
        %v2166 = vld [vmem:[#allocation2 + $0x62] sm:$0xff]
        %v2167 = vld [vmem:[#allocation2 + $0x6a] sm:$0xff]
        %v2168 = vld [vmem:[#allocation2 + $0x7a] sm:$0xff]
        %v2169 = vld [vmem:[#allocation2 + $0x82] sm:$0xff]
        %v2170 = vld [vmem:[#allocation2 + $0x92] sm:$0xff]
        %v2171 = vld [vmem:[#allocation2 + $0x9a] sm:$0xff]
        %v2172 = vld [vmem:[#allocation2 + $0xaa] sm:$0xff]
        %v2173 = vld [vmem:[#allocation2 + $0xb2] sm:$0xff]
        %v2174 = vld [vmem:[#allocation2 + $0xc2] sm:$0xff]
        %v2175 = vld [vmem:[#allocation2 + $0xca] sm:$0xff]
        %v2176 = vld [vmem:[#allocation2 + $0xda] sm:$0xff]
        %v2177 = vld [vmem:[#allocation2 + $0xe2] sm:$0xff]
        %v2178 = vld [vmem:[#allocation2 + $0xf2] sm:$0xff]
        %v2179 = vld [vmem:[#allocation2 + $0xfa] sm:$0xff]
        %v2180 = vld [vmem:[#allocation2 + $0x10a] sm:$0xff]
        %v2181 = vld [vmem:[#allocation2 + $0x112] sm:$0xff]
        %v2182 = vld [vmem:[#allocation2 + $0x122] sm:$0xff]
        %v2183 = vld [vmem:[#allocation2 + $0x12a] sm:$0xff]
        %v2184 = vld [vmem:[#allocation2 + $0x13a] sm:$0xff]
        %v2185 = vld [vmem:[#allocation2 + $0x142] sm:$0xff]
        %v2186 = vld [vmem:[#allocation2 + $0x152] sm:$0xff]
        %v2187 = vld [vmem:[#allocation2 + $0x15a] sm:$0xff]
        %v2188 = vld [vmem:[#allocation2 + $0x16a] sm:$0xff]
        %v2189 = vld [vmem:[#allocation2 + $0x172] sm:$0xff]
        %v2190 = vld [vmem:[%s2061] sm:$0xff]
        %v2191 = vld [vmem:[%s2061 + $0x8] sm:$0xff]
        %v2192 = vld [vmem:[%s2061 + $0x18] sm:$0xff]
        %v2193 = vld [vmem:[%s2061 + $0x20] sm:$0xff]
        %v2194 = vld [vmem:[%s2061 + $0x30] sm:$0xff]
        %v2195 = vld [vmem:[%s2061 + $0x38] sm:$0xff]
        %v2196 = vld [vmem:[%s2061 + $0x48] sm:$0xff]
        %v2197 = vld [vmem:[%s2061 + $0x50] sm:$0xff]
        %v2198 = vld [vmem:[%s2061 + $0x60] sm:$0xff]
        %v2199 = vld [vmem:[%s2061 + $0x68] sm:$0xff]
        %v2200 = vld [vmem:[%s2061 + $0x78] sm:$0xff]
        %v2201 = vld [vmem:[%s2061 + $0x80] sm:$0xff]
        %v2202 = vld [vmem:[%s2061 + $0x90] sm:$0xff]
        %v2203 = vld [vmem:[%s2061 + $0x98] sm:$0xff]
        %v2204 = vld [vmem:[%s2061 + $0xa8] sm:$0xff]
        %v2205 = vld [vmem:[%s2061 + $0xb0] sm:$0xff]
        %v2206 = vld [vmem:[%s2061 + $0xc0] sm:$0xff]
        %v2207 = vld [vmem:[%s2061 + $0xc8] sm:$0xff]
        %v2208 = vld [vmem:[%s2061 + $0xd8] sm:$0xff]
        %v2209 = vld [vmem:[%s2061 + $0xe0] sm:$0xff]
        %v2210 = vld [vmem:[%s2061 + $0xf0] sm:$0xff]
        %v2211 = vld [vmem:[%s2061 + $0xf8] sm:$0xff]
        %v2212 = vld [vmem:[%s2061 + $0x108] sm:$0xff]
        %v2213 = vld [vmem:[%s2061 + $0x110] sm:$0xff]
        %v2214 = vld [vmem:[%s2061 + $0x120] sm:$0xff]
        %v2215 = vld [vmem:[%s2061 + $0x128] sm:$0xff]
        %v2216 = vld [vmem:[%s2061 + $0x138] sm:$0xff]
        %v2217 = vld [vmem:[%s2061 + $0x140] sm:$0xff]
        %v2218 = vld [vmem:[%s2061 + $0x150] sm:$0xff]
        %v2219 = vld [vmem:[%s2061 + $0x158] sm:$0xff]
        %v2220 = vld [vmem:[%s2061 + $0x168] sm:$0xff]
        %v2221 = vld [vmem:[%s2061 + $0x170] sm:$0xff]
        %v2222 = vld [vmem:[%s2061 + $0x1] sm:$0xff]
        %v2223 = vld [vmem:[%s2061 + $0x9] sm:$0xff]
        %v2224 = vld [vmem:[%s2061 + $0x19] sm:$0xff]
        %v2225 = vld [vmem:[%s2061 + $0x21] sm:$0xff]
        %v2226 = vld [vmem:[%s2061 + $0x31] sm:$0xff]
        %v2227 = vld [vmem:[%s2061 + $0x39] sm:$0xff]
        %v2228 = vld [vmem:[%s2061 + $0x49] sm:$0xff]
        %v2229 = vld [vmem:[%s2061 + $0x51] sm:$0xff]
        %v2230 = vld [vmem:[%s2061 + $0x61] sm:$0xff]
        %v2231 = vld [vmem:[%s2061 + $0x69] sm:$0xff]
        %v2232 = vld [vmem:[%s2061 + $0x79] sm:$0xff]
        %v2233 = vld [vmem:[%s2061 + $0x81] sm:$0xff]
        %v2234 = vld [vmem:[%s2061 + $0x91] sm:$0xff]
        %v2235 = vld [vmem:[%s2061 + $0x99] sm:$0xff]
        %v2236 = vld [vmem:[%s2061 + $0xa9] sm:$0xff]
        %v2237 = vld [vmem:[%s2061 + $0xb1] sm:$0xff]
        %v2238 = vld [vmem:[%s2061 + $0xc1] sm:$0xff]
        %v2239 = vld [vmem:[%s2061 + $0xc9] sm:$0xff]
        %v2240 = vld [vmem:[%s2061 + $0xd9] sm:$0xff]
        %v2241 = vld [vmem:[%s2061 + $0xe1] sm:$0xff]
        %v2242 = vld [vmem:[%s2061 + $0xf1] sm:$0xff]
        %v2243 = vld [vmem:[%s2061 + $0xf9] sm:$0xff]
        %v2244 = vld [vmem:[%s2061 + $0x109] sm:$0xff]
        %v2245 = vld [vmem:[%s2061 + $0x111] sm:$0xff]
        %v2246 = vld [vmem:[%s2061 + $0x121] sm:$0xff]
        %v2247 = vld [vmem:[%s2061 + $0x129] sm:$0xff]
        %v2248 = vld [vmem:[%s2061 + $0x139] sm:$0xff]
        %v2249 = vld [vmem:[%s2061 + $0x141] sm:$0xff]
        %v2250 = vld [vmem:[%s2061 + $0x151] sm:$0xff]
        %v2251 = vld [vmem:[%s2061 + $0x159] sm:$0xff]
        %v2252 = vld [vmem:[%s2061 + $0x169] sm:$0xff]
        %v2253 = vld [vmem:[%s2061 + $0x171] sm:$0xff]
        %v2254 = vld [vmem:[%s2061 + $0x2] sm:$0xff]
        %v2255 = vld [vmem:[%s2061 + $0xa] sm:$0xff]
        %v2256 = vld [vmem:[%s2061 + $0x1a] sm:$0xff]
        %v2257 = vld [vmem:[%s2061 + $0x22] sm:$0xff]
        %v2258 = vld [vmem:[%s2061 + $0x32] sm:$0xff]
        %v2259 = vld [vmem:[%s2061 + $0x3a] sm:$0xff]
        %v2260 = vld [vmem:[%s2061 + $0x4a] sm:$0xff]
        %v2261 = vld [vmem:[%s2061 + $0x52] sm:$0xff]
        %v2262 = vld [vmem:[%s2061 + $0x62] sm:$0xff]
        %v2263 = vld [vmem:[%s2061 + $0x6a] sm:$0xff]
        %v2264 = vld [vmem:[%s2061 + $0x7a] sm:$0xff]
        %v2265 = vld [vmem:[%s2061 + $0x82] sm:$0xff]
        %v2266 = vld [vmem:[%s2061 + $0x92] sm:$0xff]
        %v2267 = vld [vmem:[%s2061 + $0x9a] sm:$0xff]
        %v2268 = vld [vmem:[%s2061 + $0xaa] sm:$0xff]
        %v2269 = vld [vmem:[%s2061 + $0xb2] sm:$0xff]
        %v2270 = vld [vmem:[%s2061 + $0xc2] sm:$0xff]
        %v2271 = vld [vmem:[%s2061 + $0xca] sm:$0xff]
        %v2272 = vld [vmem:[%s2061 + $0xda] sm:$0xff]
        %v2273 = vld [vmem:[%s2061 + $0xe2] sm:$0xff]
        %v2274 = vld [vmem:[%s2061 + $0xf2] sm:$0xff]
        %v2275 = vld [vmem:[%s2061 + $0xfa] sm:$0xff]
        %v2276 = vld [vmem:[%s2061 + $0x10a] sm:$0xff]
        %v2277 = vld [vmem:[%s2061 + $0x112] sm:$0xff]
        %v2278 = vld [vmem:[%s2061 + $0x122] sm:$0xff]
        %v2279 = vld [vmem:[%s2061 + $0x12a] sm:$0xff]
        %v2280 = vld [vmem:[%s2061 + $0x13a] sm:$0xff]
        %v2281 = vld [vmem:[%s2061 + $0x142] sm:$0xff]
        %v2282 = vld [vmem:[%s2061 + $0x152] sm:$0xff]
        %v2283 = vld [vmem:[%s2061 + $0x15a] sm:$0xff]
        %v2284 = vld [vmem:[%s2061 + $0x16a] sm:$0xff]
        %v2285 = vld [vmem:[%s2061 + $0x172] sm:$0xff]
        %s2286 = scalar_lea.vmem [#allocation2], 48
        %v2287 = vld [vmem:[%s2286] sm:$0xff]
        %v2288 = vld [vmem:[%s2286 + $0x8] sm:$0xff]
        %v2289 = vld [vmem:[%s2286 + $0x18] sm:$0xff]
        %v2290 = vld [vmem:[%s2286 + $0x20] sm:$0xff]
        %v2291 = vld [vmem:[%s2286 + $0x30] sm:$0xff]
        %v2292 = vld [vmem:[%s2286 + $0x38] sm:$0xff]
        %v2293 = vld [vmem:[%s2286 + $0x48] sm:$0xff]
        %v2294 = vld [vmem:[%s2286 + $0x50] sm:$0xff]
        %v2295 = vld [vmem:[%s2286 + $0x60] sm:$0xff]
        %v2296 = vld [vmem:[%s2286 + $0x68] sm:$0xff]
        %v2297 = vld [vmem:[%s2286 + $0x78] sm:$0xff]
        %v2298 = vld [vmem:[%s2286 + $0x80] sm:$0xff]
        %v2299 = vld [vmem:[%s2286 + $0x90] sm:$0xff]
        %v2300 = vld [vmem:[%s2286 + $0x98] sm:$0xff]
        %v2301 = vld [vmem:[%s2286 + $0xa8] sm:$0xff]
        %v2302 = vld [vmem:[%s2286 + $0xb0] sm:$0xff]
        %v2303 = vld [vmem:[%s2286 + $0xc0] sm:$0xff]
        %v2304 = vld [vmem:[%s2286 + $0xc8] sm:$0xff]
        %v2305 = vld [vmem:[%s2286 + $0xd8] sm:$0xff]
        %v2306 = vld [vmem:[%s2286 + $0xe0] sm:$0xff]
        %v2307 = vld [vmem:[%s2286 + $0xf0] sm:$0xff]
        %v2308 = vld [vmem:[%s2286 + $0xf8] sm:$0xff]
        %v2309 = vld [vmem:[%s2286 + $0x108] sm:$0xff]
        %v2310 = vld [vmem:[%s2286 + $0x110] sm:$0xff]
        %v2311 = vld [vmem:[%s2286 + $0x120] sm:$0xff]
        %v2312 = vld [vmem:[%s2286 + $0x128] sm:$0xff]
        %v2313 = vld [vmem:[%s2286 + $0x138] sm:$0xff]
        %v2314 = vld [vmem:[%s2286 + $0x140] sm:$0xff]
        %v2315 = vld [vmem:[%s2286 + $0x150] sm:$0xff]
        %v2316 = vld [vmem:[%s2286 + $0x158] sm:$0xff]
        %v2317 = vld [vmem:[%s2286 + $0x168] sm:$0xff]
        %v2318 = vld [vmem:[%s2286 + $0x170] sm:$0xff]
        %v2319 = vld [vmem:[%s2286 + $0x1] sm:$0xff]
        %v2320 = vld [vmem:[%s2286 + $0x9] sm:$0xff]
        %v2321 = vld [vmem:[%s2286 + $0x19] sm:$0xff]
        %v2322 = vld [vmem:[%s2286 + $0x21] sm:$0xff]
        %v2323 = vld [vmem:[%s2286 + $0x31] sm:$0xff]
        %v2324 = vld [vmem:[%s2286 + $0x39] sm:$0xff]
        %v2325 = vld [vmem:[%s2286 + $0x49] sm:$0xff]
        %v2326 = vld [vmem:[%s2286 + $0x51] sm:$0xff]
        %v2327 = vld [vmem:[%s2286 + $0x61] sm:$0xff]
        %v2328 = vld [vmem:[%s2286 + $0x69] sm:$0xff]
        %v2329 = vld [vmem:[%s2286 + $0x79] sm:$0xff]
        %v2330 = vld [vmem:[%s2286 + $0x81] sm:$0xff]
        %v2331 = vld [vmem:[%s2286 + $0x91] sm:$0xff]
        %v2332 = vld [vmem:[%s2286 + $0x99] sm:$0xff]
        %v2333 = vld [vmem:[%s2286 + $0xa9] sm:$0xff]
        %v2334 = vld [vmem:[%s2286 + $0xb1] sm:$0xff]
        %v2335 = vld [vmem:[%s2286 + $0xc1] sm:$0xff]
        %v2336 = vld [vmem:[%s2286 + $0xc9] sm:$0xff]
        %v2337 = vld [vmem:[%s2286 + $0xd9] sm:$0xff]
        %v2338 = vld [vmem:[%s2286 + $0xe1] sm:$0xff]
        %v2339 = vld [vmem:[%s2286 + $0xf1] sm:$0xff]
        %v2340 = vld [vmem:[%s2286 + $0xf9] sm:$0xff]
        %v2341 = vld [vmem:[%s2286 + $0x109] sm:$0xff]
        %v2342 = vld [vmem:[%s2286 + $0x111] sm:$0xff]
        %v2343 = vld [vmem:[%s2286 + $0x121] sm:$0xff]
        %v2344 = vld [vmem:[%s2286 + $0x129] sm:$0xff]
        %v2345 = vld [vmem:[%s2286 + $0x139] sm:$0xff]
        %v2346 = vld [vmem:[%s2286 + $0x141] sm:$0xff]
        %v2347 = vld [vmem:[%s2286 + $0x151] sm:$0xff]
        %v2348 = vld [vmem:[%s2286 + $0x159] sm:$0xff]
        %v2349 = vld [vmem:[%s2286 + $0x169] sm:$0xff]
        %v2350 = vld [vmem:[%s2286 + $0x171] sm:$0xff]
        %v2351 = vld [vmem:[%s2286 + $0x2] sm:$0xff]
        %v2352 = vld [vmem:[%s2286 + $0xa] sm:$0xff]
        %v2353 = vld [vmem:[%s2286 + $0x1a] sm:$0xff]
        %v2354 = vld [vmem:[%s2286 + $0x22] sm:$0xff]
        %v2355 = vld [vmem:[%s2286 + $0x32] sm:$0xff]
        %v2356 = vld [vmem:[%s2286 + $0x3a] sm:$0xff]
        %v2357 = vld [vmem:[%s2286 + $0x4a] sm:$0xff]
        %v2358 = vld [vmem:[%s2286 + $0x52] sm:$0xff]
        %v2359 = vld [vmem:[%s2286 + $0x62] sm:$0xff]
        %v2360 = vld [vmem:[%s2286 + $0x6a] sm:$0xff]
        %v2361 = vld [vmem:[%s2286 + $0x7a] sm:$0xff]
        %v2362 = vld [vmem:[%s2286 + $0x82] sm:$0xff]
        %v2363 = vld [vmem:[%s2286 + $0x92] sm:$0xff]
        %v2364 = vld [vmem:[%s2286 + $0x9a] sm:$0xff]
        %v2365 = vld [vmem:[%s2286 + $0xaa] sm:$0xff]
        %v2366 = vld [vmem:[%s2286 + $0xb2] sm:$0xff]
        %v2367 = vld [vmem:[%s2286 + $0xc2] sm:$0xff]
        %v2368 = vld [vmem:[%s2286 + $0xca] sm:$0xff]
        %v2369 = vld [vmem:[%s2286 + $0xda] sm:$0xff]
        %v2370 = vld [vmem:[%s2286 + $0xe2] sm:$0xff]
        %v2371 = vld [vmem:[%s2286 + $0xf2] sm:$0xff]
        %v2372 = vld [vmem:[%s2286 + $0xfa] sm:$0xff]
        %v2373 = vld [vmem:[%s2286 + $0x10a] sm:$0xff]
        %v2374 = vld [vmem:[%s2286 + $0x112] sm:$0xff]
        %v2375 = vld [vmem:[%s2286 + $0x122] sm:$0xff]
        %v2376 = vld [vmem:[%s2286 + $0x12a] sm:$0xff]
        %v2377 = vld [vmem:[%s2286 + $0x13a] sm:$0xff]
        %v2378 = vld [vmem:[%s2286 + $0x142] sm:$0xff]
        %v2379 = vld [vmem:[%s2286 + $0x152] sm:$0xff]
        %v2380 = vld [vmem:[%s2286 + $0x15a] sm:$0xff]
        %v2381 = vld [vmem:[%s2286 + $0x16a] sm:$0xff]
        %v2382 = vld [vmem:[%s2286 + $0x172] sm:$0xff]
        %2415 = vrot.lane.b32.xlu0 %v2126, 4
        %v2416 = vpop.permute.xlu0 %2415
        %2417 = vrot.lane.b32.xlu0 %v2127, 4
        %v2418 = vpop.permute.xlu0 %2417
        %2419 = vrot.lane.b32.xlu0 %v2128, 4
        %v2420 = vpop.permute.xlu0 %2419
        %2421 = vrot.lane.b32.xlu0 %v2129, 4
        %v2422 = vpop.permute.xlu0 %2421
        %2423 = vrot.lane.b32.xlu0 %v2130, 4
        %v2424 = vpop.permute.xlu0 %2423
        %2425 = vrot.lane.b32.xlu0 %v2131, 4
        %v2426 = vpop.permute.xlu0 %2425
        %2427 = vrot.lane.b32.xlu0 %v2132, 4
        %v2428 = vpop.permute.xlu0 %2427
        %2429 = vrot.lane.b32.xlu0 %v2133, 4
        %v2430 = vpop.permute.xlu0 %2429
        %2431 = vrot.lane.b32.xlu0 %v2134, 4
        %v2432 = vpop.permute.xlu0 %2431
        %2433 = vrot.lane.b32.xlu0 %v2135, 4
        %v2434 = vpop.permute.xlu0 %2433
        %2435 = vrot.lane.b32.xlu0 %v2136, 4
        %v2436 = vpop.permute.xlu0 %2435
        %2437 = vrot.lane.b32.xlu0 %v2137, 4
        %v2438 = vpop.permute.xlu0 %2437
        %2439 = vrot.lane.b32.xlu0 %v2138, 4
        %v2440 = vpop.permute.xlu0 %2439
        %2441 = vrot.lane.b32.xlu0 %v2139, 4
        %v2442 = vpop.permute.xlu0 %2441
        %2443 = vrot.lane.b32.xlu0 %v2140, 4
        %v2444 = vpop.permute.xlu0 %2443
        %2445 = vrot.lane.b32.xlu0 %v2141, 4
        %v2446 = vpop.permute.xlu0 %2445
        %2447 = vrot.lane.b32.xlu0 %v2142, 4
        %v2448 = vpop.permute.xlu0 %2447
        %2449 = vrot.lane.b32.xlu0 %v2143, 4
        %v2450 = vpop.permute.xlu0 %2449
        %2451 = vrot.lane.b32.xlu0 %v2144, 4
        %v2452 = vpop.permute.xlu0 %2451
        %2453 = vrot.lane.b32.xlu0 %v2145, 4
        %v2454 = vpop.permute.xlu0 %2453
        %2455 = vrot.lane.b32.xlu0 %v2146, 4
        %v2456 = vpop.permute.xlu0 %2455
        %2457 = vrot.lane.b32.xlu0 %v2147, 4
        %v2458 = vpop.permute.xlu0 %2457
        %2459 = vrot.lane.b32.xlu0 %v2148, 4
        %v2460 = vpop.permute.xlu0 %2459
        %2461 = vrot.lane.b32.xlu0 %v2149, 4
        %v2462 = vpop.permute.xlu0 %2461
        %2463 = vrot.lane.b32.xlu0 %v2150, 4
        %v2464 = vpop.permute.xlu0 %2463
        %2465 = vrot.lane.b32.xlu0 %v2151, 4
        %v2466 = vpop.permute.xlu0 %2465
        %2467 = vrot.lane.b32.xlu0 %v2152, 4
        %v2468 = vpop.permute.xlu0 %2467
        %2469 = vrot.lane.b32.xlu0 %v2153, 4
        %v2470 = vpop.permute.xlu0 %2469
        %2471 = vrot.lane.b32.xlu0 %v2154, 4
        %v2472 = vpop.permute.xlu0 %2471
        %2473 = vrot.lane.b32.xlu0 %v2155, 4
        %v2474 = vpop.permute.xlu0 %2473
        %2475 = vrot.lane.b32.xlu0 %v2156, 4
        %v2476 = vpop.permute.xlu0 %2475
        %2477 = vrot.lane.b32.xlu0 %v2157, 4
        %v2478 = vpop.permute.xlu0 %2477
        %2543 = vrot.lane.b32.xlu0 %v2158, 8
        %v2544 = vpop.permute.xlu0 %2543
        %2545 = vrot.lane.b32.xlu0 %v2159, 8
        %v2546 = vpop.permute.xlu0 %2545
        %2547 = vrot.lane.b32.xlu0 %v2160, 8
        %v2548 = vpop.permute.xlu0 %2547
        %2549 = vrot.lane.b32.xlu0 %v2161, 8
        %v2550 = vpop.permute.xlu0 %2549
        %2551 = vrot.lane.b32.xlu0 %v2162, 8
        %v2552 = vpop.permute.xlu0 %2551
        %2553 = vrot.lane.b32.xlu0 %v2163, 8
        %v2554 = vpop.permute.xlu0 %2553
        %2555 = vrot.lane.b32.xlu0 %v2164, 8
        %v2556 = vpop.permute.xlu0 %2555
        %2557 = vrot.lane.b32.xlu0 %v2165, 8
        %v2558 = vpop.permute.xlu0 %2557
        %2559 = vrot.lane.b32.xlu0 %v2166, 8
        %v2560 = vpop.permute.xlu0 %2559
        %2561 = vrot.lane.b32.xlu0 %v2167, 8
        %v2562 = vpop.permute.xlu0 %2561
        %2563 = vrot.lane.b32.xlu0 %v2168, 8
        %v2564 = vpop.permute.xlu0 %2563
        %2565 = vrot.lane.b32.xlu0 %v2169, 8
        %v2566 = vpop.permute.xlu0 %2565
        %2567 = vrot.lane.b32.xlu0 %v2170, 8
        %v2568 = vpop.permute.xlu0 %2567
        %2569 = vrot.lane.b32.xlu0 %v2171, 8
        %v2570 = vpop.permute.xlu0 %2569
        %2571 = vrot.lane.b32.xlu0 %v2172, 8
        %v2572 = vpop.permute.xlu0 %2571
        %2573 = vrot.lane.b32.xlu0 %v2173, 8
        %v2574 = vpop.permute.xlu0 %2573
        %2575 = vrot.lane.b32.xlu0 %v2174, 8
        %v2576 = vpop.permute.xlu0 %2575
        %2577 = vrot.lane.b32.xlu0 %v2175, 8
        %v2578 = vpop.permute.xlu0 %2577
        %2579 = vrot.lane.b32.xlu0 %v2176, 8
        %v2580 = vpop.permute.xlu0 %2579
        %2581 = vrot.lane.b32.xlu0 %v2177, 8
        %v2582 = vpop.permute.xlu0 %2581
        %2583 = vrot.lane.b32.xlu0 %v2178, 8
        %v2584 = vpop.permute.xlu0 %2583
        %2585 = vrot.lane.b32.xlu0 %v2179, 8
        %v2586 = vpop.permute.xlu0 %2585
        %2587 = vrot.lane.b32.xlu0 %v2180, 8
        %v2588 = vpop.permute.xlu0 %2587
        %2589 = vrot.lane.b32.xlu0 %v2181, 8
        %v2590 = vpop.permute.xlu0 %2589
        %2591 = vrot.lane.b32.xlu0 %v2182, 8
        %v2592 = vpop.permute.xlu0 %2591
        %2593 = vrot.lane.b32.xlu0 %v2183, 8
        %v2594 = vpop.permute.xlu0 %2593
        %2595 = vrot.lane.b32.xlu0 %v2184, 8
        %v2596 = vpop.permute.xlu0 %2595
        %2597 = vrot.lane.b32.xlu0 %v2185, 8
        %v2598 = vpop.permute.xlu0 %2597
        %2599 = vrot.lane.b32.xlu0 %v2186, 8
        %v2600 = vpop.permute.xlu0 %2599
        %2601 = vrot.lane.b32.xlu0 %v2187, 8
        %v2602 = vpop.permute.xlu0 %2601
        %2603 = vrot.lane.b32.xlu0 %v2188, 8
        %v2604 = vpop.permute.xlu0 %2603
        %2605 = vrot.lane.b32.xlu0 %v2189, 8
        %v2606 = vpop.permute.xlu0 %2605
        %2671 = vrot.lane.b32.xlu0 %v2190, 12
        %v2672 = vpop.permute.xlu0 %2671
        %2673 = vrot.lane.b32.xlu0 %v2191, 12
        %v2674 = vpop.permute.xlu0 %2673
        %2675 = vrot.lane.b32.xlu0 %v2192, 12
        %v2676 = vpop.permute.xlu0 %2675
        %2677 = vrot.lane.b32.xlu0 %v2193, 12
        %v2678 = vpop.permute.xlu0 %2677
        %2679 = vrot.lane.b32.xlu0 %v2194, 12
        %v2680 = vpop.permute.xlu0 %2679
        %2681 = vrot.lane.b32.xlu0 %v2195, 12
        %v2682 = vpop.permute.xlu0 %2681
        %2683 = vrot.lane.b32.xlu0 %v2196, 12
        %v2684 = vpop.permute.xlu0 %2683
        %2685 = vrot.lane.b32.xlu0 %v2197, 12
        %v2686 = vpop.permute.xlu0 %2685
        %2687 = vrot.lane.b32.xlu0 %v2198, 12
        %v2688 = vpop.permute.xlu0 %2687
        %2689 = vrot.lane.b32.xlu0 %v2199, 12
        %v2690 = vpop.permute.xlu0 %2689
        %2691 = vrot.lane.b32.xlu0 %v2200, 12
        %v2692 = vpop.permute.xlu0 %2691
        %2693 = vrot.lane.b32.xlu0 %v2201, 12
        %v2694 = vpop.permute.xlu0 %2693
        %2695 = vrot.lane.b32.xlu0 %v2202, 12
        %v2696 = vpop.permute.xlu0 %2695
        %2697 = vrot.lane.b32.xlu0 %v2203, 12
        %v2698 = vpop.permute.xlu0 %2697
        %2699 = vrot.lane.b32.xlu0 %v2204, 12
        %v2700 = vpop.permute.xlu0 %2699
        %2701 = vrot.lane.b32.xlu0 %v2205, 12
        %v2702 = vpop.permute.xlu0 %2701
        %2703 = vrot.lane.b32.xlu0 %v2206, 12
        %v2704 = vpop.permute.xlu0 %2703
        %2705 = vrot.lane.b32.xlu0 %v2207, 12
        %v2706 = vpop.permute.xlu0 %2705
        %2707 = vrot.lane.b32.xlu0 %v2208, 12
        %v2708 = vpop.permute.xlu0 %2707
        %2709 = vrot.lane.b32.xlu0 %v2209, 12
        %v2710 = vpop.permute.xlu0 %2709
        %2711 = vrot.lane.b32.xlu0 %v2210, 12
        %v2712 = vpop.permute.xlu0 %2711
        %2713 = vrot.lane.b32.xlu0 %v2211, 12
        %v2714 = vpop.permute.xlu0 %2713
        %2715 = vrot.lane.b32.xlu0 %v2212, 12
        %v2716 = vpop.permute.xlu0 %2715
        %2717 = vrot.lane.b32.xlu0 %v2213, 12
        %v2718 = vpop.permute.xlu0 %2717
        %2719 = vrot.lane.b32.xlu0 %v2214, 12
        %v2720 = vpop.permute.xlu0 %2719
        %2721 = vrot.lane.b32.xlu0 %v2215, 12
        %v2722 = vpop.permute.xlu0 %2721
        %2723 = vrot.lane.b32.xlu0 %v2216, 12
        %v2724 = vpop.permute.xlu0 %2723
        %2725 = vrot.lane.b32.xlu0 %v2217, 12
        %v2726 = vpop.permute.xlu0 %2725
        %2727 = vrot.lane.b32.xlu0 %v2218, 12
        %v2728 = vpop.permute.xlu0 %2727
        %2729 = vrot.lane.b32.xlu0 %v2219, 12
        %v2730 = vpop.permute.xlu0 %2729
        %2731 = vrot.lane.b32.xlu0 %v2220, 12
        %v2732 = vpop.permute.xlu0 %2731
        %2733 = vrot.lane.b32.xlu0 %v2221, 12
        %v2734 = vpop.permute.xlu0 %2733
        %2799 = vrot.lane.b32.xlu0 %v2222, 16
        %v2800 = vpop.permute.xlu0 %2799
        %2801 = vrot.lane.b32.xlu0 %v2223, 16
        %v2802 = vpop.permute.xlu0 %2801
        %2803 = vrot.lane.b32.xlu0 %v2224, 16
        %v2804 = vpop.permute.xlu0 %2803
        %2805 = vrot.lane.b32.xlu0 %v2225, 16
        %v2806 = vpop.permute.xlu0 %2805
        %2807 = vrot.lane.b32.xlu0 %v2226, 16
        %v2808 = vpop.permute.xlu0 %2807
        %2809 = vrot.lane.b32.xlu0 %v2227, 16
        %v2810 = vpop.permute.xlu0 %2809
        %2811 = vrot.lane.b32.xlu0 %v2228, 16
        %v2812 = vpop.permute.xlu0 %2811
        %2813 = vrot.lane.b32.xlu0 %v2229, 16
        %v2814 = vpop.permute.xlu0 %2813
        %2815 = vrot.lane.b32.xlu0 %v2230, 16
        %v2816 = vpop.permute.xlu0 %2815
        %2817 = vrot.lane.b32.xlu0 %v2231, 16
        %v2818 = vpop.permute.xlu0 %2817
        %2819 = vrot.lane.b32.xlu0 %v2232, 16
        %v2820 = vpop.permute.xlu0 %2819
        %2821 = vrot.lane.b32.xlu0 %v2233, 16
        %v2822 = vpop.permute.xlu0 %2821
        %2823 = vrot.lane.b32.xlu0 %v2234, 16
        %v2824 = vpop.permute.xlu0 %2823
        %2825 = vrot.lane.b32.xlu0 %v2235, 16
        %v2826 = vpop.permute.xlu0 %2825
        %2827 = vrot.lane.b32.xlu0 %v2236, 16
        %v2828 = vpop.permute.xlu0 %2827
        %2829 = vrot.lane.b32.xlu0 %v2237, 16
        %v2830 = vpop.permute.xlu0 %2829
        %2831 = vrot.lane.b32.xlu0 %v2238, 16
        %v2832 = vpop.permute.xlu0 %2831
        %2833 = vrot.lane.b32.xlu0 %v2239, 16
        %v2834 = vpop.permute.xlu0 %2833
        %2835 = vrot.lane.b32.xlu0 %v2240, 16
        %v2836 = vpop.permute.xlu0 %2835
        %2837 = vrot.lane.b32.xlu0 %v2241, 16
        %v2838 = vpop.permute.xlu0 %2837
        %2839 = vrot.lane.b32.xlu0 %v2242, 16
        %v2840 = vpop.permute.xlu0 %2839
        %2841 = vrot.lane.b32.xlu0 %v2243, 16
        %v2842 = vpop.permute.xlu0 %2841
        %2843 = vrot.lane.b32.xlu0 %v2244, 16
        %v2844 = vpop.permute.xlu0 %2843
        %2845 = vrot.lane.b32.xlu0 %v2245, 16
        %v2846 = vpop.permute.xlu0 %2845
        %2847 = vrot.lane.b32.xlu0 %v2246, 16
        %v2848 = vpop.permute.xlu0 %2847
        %2849 = vrot.lane.b32.xlu0 %v2247, 16
        %v2850 = vpop.permute.xlu0 %2849
        %2851 = vrot.lane.b32.xlu0 %v2248, 16
        %v2852 = vpop.permute.xlu0 %2851
        %2853 = vrot.lane.b32.xlu0 %v2249, 16
        %v2854 = vpop.permute.xlu0 %2853
        %2855 = vrot.lane.b32.xlu0 %v2250, 16
        %v2856 = vpop.permute.xlu0 %2855
        %2857 = vrot.lane.b32.xlu0 %v2251, 16
        %v2858 = vpop.permute.xlu0 %2857
        %2859 = vrot.lane.b32.xlu0 %v2252, 16
        %v2860 = vpop.permute.xlu0 %2859
        %2861 = vrot.lane.b32.xlu0 %v2253, 16
        %v2862 = vpop.permute.xlu0 %2861
        %2927 = vrot.lane.b32.xlu0 %v2254, 20
        %v2928 = vpop.permute.xlu0 %2927
        %2929 = vrot.lane.b32.xlu0 %v2255, 20
        %v2930 = vpop.permute.xlu0 %2929
        %2931 = vrot.lane.b32.xlu0 %v2256, 20
        %v2932 = vpop.permute.xlu0 %2931
        %2933 = vrot.lane.b32.xlu0 %v2257, 20
        %v2934 = vpop.permute.xlu0 %2933
        %2935 = vrot.lane.b32.xlu0 %v2258, 20
        %v2936 = vpop.permute.xlu0 %2935
        %2937 = vrot.lane.b32.xlu0 %v2259, 20
        %v2938 = vpop.permute.xlu0 %2937
        %2939 = vrot.lane.b32.xlu0 %v2260, 20
        %v2940 = vpop.permute.xlu0 %2939
        %2941 = vrot.lane.b32.xlu0 %v2261, 20
        %v2942 = vpop.permute.xlu0 %2941
        %2943 = vrot.lane.b32.xlu0 %v2262, 20
        %v2944 = vpop.permute.xlu0 %2943
        %2945 = vrot.lane.b32.xlu0 %v2263, 20
        %v2946 = vpop.permute.xlu0 %2945
        %2947 = vrot.lane.b32.xlu0 %v2264, 20
        %v2948 = vpop.permute.xlu0 %2947
        %2949 = vrot.lane.b32.xlu0 %v2265, 20
        %v2950 = vpop.permute.xlu0 %2949
        %2951 = vrot.lane.b32.xlu0 %v2266, 20
        %v2952 = vpop.permute.xlu0 %2951
        %2953 = vrot.lane.b32.xlu0 %v2267, 20
        %v2954 = vpop.permute.xlu0 %2953
        %2955 = vrot.lane.b32.xlu0 %v2268, 20
        %v2956 = vpop.permute.xlu0 %2955
        %2957 = vrot.lane.b32.xlu0 %v2269, 20
        %v2958 = vpop.permute.xlu0 %2957
        %2959 = vrot.lane.b32.xlu0 %v2270, 20
        %v2960 = vpop.permute.xlu0 %2959
        %2961 = vrot.lane.b32.xlu0 %v2271, 20
        %v2962 = vpop.permute.xlu0 %2961
        %2963 = vrot.lane.b32.xlu0 %v2272, 20
        %v2964 = vpop.permute.xlu0 %2963
        %2965 = vrot.lane.b32.xlu0 %v2273, 20
        %v2966 = vpop.permute.xlu0 %2965
        %2967 = vrot.lane.b32.xlu0 %v2274, 20
        %v2968 = vpop.permute.xlu0 %2967
        %2969 = vrot.lane.b32.xlu0 %v2275, 20
        %v2970 = vpop.permute.xlu0 %2969
        %2971 = vrot.lane.b32.xlu0 %v2276, 20
        %v2972 = vpop.permute.xlu0 %2971
        %2973 = vrot.lane.b32.xlu0 %v2277, 20
        %v2974 = vpop.permute.xlu0 %2973
        %2975 = vrot.lane.b32.xlu0 %v2278, 20
        %v2976 = vpop.permute.xlu0 %2975
        %2977 = vrot.lane.b32.xlu0 %v2279, 20
        %v2978 = vpop.permute.xlu0 %2977
        %2979 = vrot.lane.b32.xlu0 %v2280, 20
        %v2980 = vpop.permute.xlu0 %2979
        %2981 = vrot.lane.b32.xlu0 %v2281, 20
        %v2982 = vpop.permute.xlu0 %2981
        %2983 = vrot.lane.b32.xlu0 %v2282, 20
        %v2984 = vpop.permute.xlu0 %2983
        %2985 = vrot.lane.b32.xlu0 %v2283, 20
        %v2986 = vpop.permute.xlu0 %2985
        %2987 = vrot.lane.b32.xlu0 %v2284, 20
        %v2988 = vpop.permute.xlu0 %2987
        %2989 = vrot.lane.b32.xlu0 %v2285, 20
        %v2990 = vpop.permute.xlu0 %2989
        %3055 = vrot.lane.b32.xlu0 %v2287, 24
        %v3056 = vpop.permute.xlu0 %3055
        %3057 = vrot.lane.b32.xlu0 %v2288, 24
        %v3058 = vpop.permute.xlu0 %3057
        %3059 = vrot.lane.b32.xlu0 %v2289, 24
        %v3060 = vpop.permute.xlu0 %3059
        %3061 = vrot.lane.b32.xlu0 %v2290, 24
        %v3062 = vpop.permute.xlu0 %3061
        %3063 = vrot.lane.b32.xlu0 %v2291, 24
        %v3064 = vpop.permute.xlu0 %3063
        %3065 = vrot.lane.b32.xlu0 %v2292, 24
        %v3066 = vpop.permute.xlu0 %3065
        %3067 = vrot.lane.b32.xlu0 %v2293, 24
        %v3068 = vpop.permute.xlu0 %3067
        %3069 = vrot.lane.b32.xlu0 %v2294, 24
        %v3070 = vpop.permute.xlu0 %3069
        %3071 = vrot.lane.b32.xlu0 %v2295, 24
        %v3072 = vpop.permute.xlu0 %3071
        %3073 = vrot.lane.b32.xlu0 %v2296, 24
        %v3074 = vpop.permute.xlu0 %3073
        %3075 = vrot.lane.b32.xlu0 %v2297, 24
        %v3076 = vpop.permute.xlu0 %3075
        %3077 = vrot.lane.b32.xlu0 %v2298, 24
        %v3078 = vpop.permute.xlu0 %3077
        %3079 = vrot.lane.b32.xlu0 %v2299, 24
        %v3080 = vpop.permute.xlu0 %3079
        %3081 = vrot.lane.b32.xlu0 %v2300, 24
        %v3082 = vpop.permute.xlu0 %3081
        %3083 = vrot.lane.b32.xlu0 %v2301, 24
        %v3084 = vpop.permute.xlu0 %3083
        %3085 = vrot.lane.b32.xlu0 %v2302, 24
        %v3086 = vpop.permute.xlu0 %3085
        %3087 = vrot.lane.b32.xlu0 %v2303, 24
        %v3088 = vpop.permute.xlu0 %3087
        %3089 = vrot.lane.b32.xlu0 %v2304, 24
        %v3090 = vpop.permute.xlu0 %3089
        %3091 = vrot.lane.b32.xlu0 %v2305, 24
        %v3092 = vpop.permute.xlu0 %3091
        %3093 = vrot.lane.b32.xlu0 %v2306, 24
        %v3094 = vpop.permute.xlu0 %3093
        %3095 = vrot.lane.b32.xlu0 %v2307, 24
        %v3096 = vpop.permute.xlu0 %3095
        %3097 = vrot.lane.b32.xlu0 %v2308, 24
        %v3098 = vpop.permute.xlu0 %3097
        %3099 = vrot.lane.b32.xlu0 %v2309, 24
        %v3100 = vpop.permute.xlu0 %3099
        %3101 = vrot.lane.b32.xlu0 %v2310, 24
        %v3102 = vpop.permute.xlu0 %3101
        %3103 = vrot.lane.b32.xlu0 %v2311, 24
        %v3104 = vpop.permute.xlu0 %3103
        %3105 = vrot.lane.b32.xlu0 %v2312, 24
        %v3106 = vpop.permute.xlu0 %3105
        %3107 = vrot.lane.b32.xlu0 %v2313, 24
        %v3108 = vpop.permute.xlu0 %3107
        %3109 = vrot.lane.b32.xlu0 %v2314, 24
        %v3110 = vpop.permute.xlu0 %3109
        %3111 = vrot.lane.b32.xlu0 %v2315, 24
        %v3112 = vpop.permute.xlu0 %3111
        %3113 = vrot.lane.b32.xlu0 %v2316, 24
        %v3114 = vpop.permute.xlu0 %3113
        %3115 = vrot.lane.b32.xlu0 %v2317, 24
        %v3116 = vpop.permute.xlu0 %3115
        %3117 = vrot.lane.b32.xlu0 %v2318, 24
        %v3118 = vpop.permute.xlu0 %3117
        %3183 = vrot.lane.b32.xlu0 %v2319, 28
        %v3184 = vpop.permute.xlu0 %3183
        %3185 = vrot.lane.b32.xlu0 %v2320, 28
        %v3186 = vpop.permute.xlu0 %3185
        %3187 = vrot.lane.b32.xlu0 %v2321, 28
        %v3188 = vpop.permute.xlu0 %3187
        %3189 = vrot.lane.b32.xlu0 %v2322, 28
        %v3190 = vpop.permute.xlu0 %3189
        %3191 = vrot.lane.b32.xlu0 %v2323, 28
        %v3192 = vpop.permute.xlu0 %3191
        %3193 = vrot.lane.b32.xlu0 %v2324, 28
        %v3194 = vpop.permute.xlu0 %3193
        %3195 = vrot.lane.b32.xlu0 %v2325, 28
        %v3196 = vpop.permute.xlu0 %3195
        %3197 = vrot.lane.b32.xlu0 %v2326, 28
        %v3198 = vpop.permute.xlu0 %3197
        %3199 = vrot.lane.b32.xlu0 %v2327, 28
        %v3200 = vpop.permute.xlu0 %3199
        %3201 = vrot.lane.b32.xlu0 %v2328, 28
        %v3202 = vpop.permute.xlu0 %3201
        %3203 = vrot.lane.b32.xlu0 %v2329, 28
        %v3204 = vpop.permute.xlu0 %3203
        %3205 = vrot.lane.b32.xlu0 %v2330, 28
        %v3206 = vpop.permute.xlu0 %3205
        %3207 = vrot.lane.b32.xlu0 %v2331, 28
        %v3208 = vpop.permute.xlu0 %3207
        %3209 = vrot.lane.b32.xlu0 %v2332, 28
        %v3210 = vpop.permute.xlu0 %3209
        %3211 = vrot.lane.b32.xlu0 %v2333, 28
        %v3212 = vpop.permute.xlu0 %3211
        %3213 = vrot.lane.b32.xlu0 %v2334, 28
        %v3214 = vpop.permute.xlu0 %3213
        %3215 = vrot.lane.b32.xlu0 %v2335, 28
        %v3216 = vpop.permute.xlu0 %3215
        %3217 = vrot.lane.b32.xlu0 %v2336, 28
        %v3218 = vpop.permute.xlu0 %3217
        %3219 = vrot.lane.b32.xlu0 %v2337, 28
        %v3220 = vpop.permute.xlu0 %3219
        %3221 = vrot.lane.b32.xlu0 %v2338, 28
        %v3222 = vpop.permute.xlu0 %3221
        %3223 = vrot.lane.b32.xlu0 %v2339, 28
        %v3224 = vpop.permute.xlu0 %3223
        %3225 = vrot.lane.b32.xlu0 %v2340, 28
        %v3226 = vpop.permute.xlu0 %3225
        %3227 = vrot.lane.b32.xlu0 %v2341, 28
        %v3228 = vpop.permute.xlu0 %3227
        %3229 = vrot.lane.b32.xlu0 %v2342, 28
        %v3230 = vpop.permute.xlu0 %3229
        %3231 = vrot.lane.b32.xlu0 %v2343, 28
        %v3232 = vpop.permute.xlu0 %3231
        %3233 = vrot.lane.b32.xlu0 %v2344, 28
        %v3234 = vpop.permute.xlu0 %3233
        %3235 = vrot.lane.b32.xlu0 %v2345, 28
        %v3236 = vpop.permute.xlu0 %3235
        %3237 = vrot.lane.b32.xlu0 %v2346, 28
        %v3238 = vpop.permute.xlu0 %3237
        %3239 = vrot.lane.b32.xlu0 %v2347, 28
        %v3240 = vpop.permute.xlu0 %3239
        %3241 = vrot.lane.b32.xlu0 %v2348, 28
        %v3242 = vpop.permute.xlu0 %3241
        %3243 = vrot.lane.b32.xlu0 %v2349, 28
        %v3244 = vpop.permute.xlu0 %3243
        %3245 = vrot.lane.b32.xlu0 %v2350, 28
        %v3246 = vpop.permute.xlu0 %3245
        %3311 = vrot.lane.b32.xlu0 %v2351, 32
        %v3312 = vpop.permute.xlu0 %3311
        %3313 = vrot.lane.b32.xlu0 %v2352, 32
        %v3314 = vpop.permute.xlu0 %3313
        %3315 = vrot.lane.b32.xlu0 %v2353, 32
        %v3316 = vpop.permute.xlu0 %3315
        %3317 = vrot.lane.b32.xlu0 %v2354, 32
        %v3318 = vpop.permute.xlu0 %3317
        %3319 = vrot.lane.b32.xlu0 %v2355, 32
        %v3320 = vpop.permute.xlu0 %3319
        %3321 = vrot.lane.b32.xlu0 %v2356, 32
        %v3322 = vpop.permute.xlu0 %3321
        %3323 = vrot.lane.b32.xlu0 %v2357, 32
        %v3324 = vpop.permute.xlu0 %3323
        %3325 = vrot.lane.b32.xlu0 %v2358, 32
        %v3326 = vpop.permute.xlu0 %3325
        %3327 = vrot.lane.b32.xlu0 %v2359, 32
        %v3328 = vpop.permute.xlu0 %3327
        %3329 = vrot.lane.b32.xlu0 %v2360, 32
        %v3330 = vpop.permute.xlu0 %3329
        %3331 = vrot.lane.b32.xlu0 %v2361, 32
        %v3332 = vpop.permute.xlu0 %3331
        %3333 = vrot.lane.b32.xlu0 %v2362, 32
        %v3334 = vpop.permute.xlu0 %3333
        %3335 = vrot.lane.b32.xlu0 %v2363, 32
        %v3336 = vpop.permute.xlu0 %3335
        %3337 = vrot.lane.b32.xlu0 %v2364, 32
        %v3338 = vpop.permute.xlu0 %3337
        %3339 = vrot.lane.b32.xlu0 %v2365, 32
        %v3340 = vpop.permute.xlu0 %3339
        %3341 = vrot.lane.b32.xlu0 %v2366, 32
        %v3342 = vpop.permute.xlu0 %3341
        %3343 = vrot.lane.b32.xlu0 %v2367, 32
        %v3344 = vpop.permute.xlu0 %3343
        %3345 = vrot.lane.b32.xlu0 %v2368, 32
        %v3346 = vpop.permute.xlu0 %3345
        %3347 = vrot.lane.b32.xlu0 %v2369, 32
        %v3348 = vpop.permute.xlu0 %3347
        %3349 = vrot.lane.b32.xlu0 %v2370, 32
        %v3350 = vpop.permute.xlu0 %3349
        %3351 = vrot.lane.b32.xlu0 %v2371, 32
        %v3352 = vpop.permute.xlu0 %3351
        %3353 = vrot.lane.b32.xlu0 %v2372, 32
        %v3354 = vpop.permute.xlu0 %3353
        %3355 = vrot.lane.b32.xlu0 %v2373, 32
        %v3356 = vpop.permute.xlu0 %3355
        %3357 = vrot.lane.b32.xlu0 %v2374, 32
        %v3358 = vpop.permute.xlu0 %3357
        %3359 = vrot.lane.b32.xlu0 %v2375, 32
        %v3360 = vpop.permute.xlu0 %3359
        %3361 = vrot.lane.b32.xlu0 %v2376, 32
        %v3362 = vpop.permute.xlu0 %3361
        %3363 = vrot.lane.b32.xlu0 %v2377, 32
        %v3364 = vpop.permute.xlu0 %3363
        %3365 = vrot.lane.b32.xlu0 %v2378, 32
        %v3366 = vpop.permute.xlu0 %3365
        %3367 = vrot.lane.b32.xlu0 %v2379, 32
        %v3368 = vpop.permute.xlu0 %3367
        %3369 = vrot.lane.b32.xlu0 %v2380, 32
        %v3370 = vpop.permute.xlu0 %3369
        %3371 = vrot.lane.b32.xlu0 %v2381, 32
        %v3372 = vpop.permute.xlu0 %3371
        %3373 = vrot.lane.b32.xlu0 %v2382, 32
        %v3374 = vpop.permute.xlu0 %3373
        %v3407 = vsel %vm1637, %v2094, %v2416
        %v3408 = vsel %vm1637, %v2095, %v2418
        %v3409 = vsel %vm1637, %v2096, %v2420
        %v3410 = vsel %vm1637, %v2097, %v2422
        %v3411 = vsel %vm1637, %v2098, %v2424
        %v3412 = vsel %vm1637, %v2099, %v2426
        %v3413 = vsel %vm1637, %v2100, %v2428
        %v3414 = vsel %vm1637, %v2101, %v2430
        %v3415 = vsel %vm1637, %v2102, %v2432
        %v3416 = vsel %vm1637, %v2103, %v2434
        %v3417 = vsel %vm1637, %v2104, %v2436
        %v3418 = vsel %vm1637, %v2105, %v2438
        %v3419 = vsel %vm1637, %v2106, %v2440
        %v3420 = vsel %vm1637, %v2107, %v2442
        %v3421 = vsel %vm1637, %v2108, %v2444
        %v3422 = vsel %vm1637, %v2109, %v2446
        %v3423 = vsel %vm1637, %v2110, %v2448
        %v3424 = vsel %vm1637, %v2111, %v2450
        %v3425 = vsel %vm1637, %v2112, %v2452
        %v3426 = vsel %vm1637, %v2113, %v2454
        %v3427 = vsel %vm1637, %v2114, %v2456
        %v3428 = vsel %vm1637, %v2115, %v2458
        %v3429 = vsel %vm1637, %v2116, %v2460
        %v3430 = vsel %vm1637, %v2117, %v2462
        %v3431 = vsel %vm1637, %v2118, %v2464
        %v3432 = vsel %vm1637, %v2119, %v2466
        %v3433 = vsel %vm1637, %v2120, %v2468
        %v3434 = vsel %vm1637, %v2121, %v2470
        %v3435 = vsel %vm1637, %v2122, %v2472
        %v3436 = vsel %vm1637, %v2123, %v2474
        %v3437 = vsel %vm1637, %v2124, %v2476
        %v3438 = vsel %vm1637, %v2125, %v2478
        %v3439 = vsel %vm1769, %v3407, %v2544
        %v3440 = vsel %vm1769, %v3408, %v2546
        %v3441 = vsel %vm1769, %v3409, %v2548
        %v3442 = vsel %vm1769, %v3410, %v2550
        %v3443 = vsel %vm1769, %v3411, %v2552
        %v3444 = vsel %vm1769, %v3412, %v2554
        %v3445 = vsel %vm1769, %v3413, %v2556
        %v3446 = vsel %vm1769, %v3414, %v2558
        %v3447 = vsel %vm1769, %v3415, %v2560
        %v3448 = vsel %vm1769, %v3416, %v2562
        %v3449 = vsel %vm1769, %v3417, %v2564
        %v3450 = vsel %vm1769, %v3418, %v2566
        %v3451 = vsel %vm1769, %v3419, %v2568
        %v3452 = vsel %vm1769, %v3420, %v2570
        %v3453 = vsel %vm1769, %v3421, %v2572
        %v3454 = vsel %vm1769, %v3422, %v2574
        %v3455 = vsel %vm1769, %v3423, %v2576
        %v3456 = vsel %vm1769, %v3424, %v2578
        %v3457 = vsel %vm1769, %v3425, %v2580
        %v3458 = vsel %vm1769, %v3426, %v2582
        %v3459 = vsel %vm1769, %v3427, %v2584
        %v3460 = vsel %vm1769, %v3428, %v2586
        %v3461 = vsel %vm1769, %v3429, %v2588
        %v3462 = vsel %vm1769, %v3430, %v2590
        %v3463 = vsel %vm1769, %v3431, %v2592
        %v3464 = vsel %vm1769, %v3432, %v2594
        %v3465 = vsel %vm1769, %v3433, %v2596
        %v3466 = vsel %vm1769, %v3434, %v2598
        %v3467 = vsel %vm1769, %v3435, %v2600
        %v3468 = vsel %vm1769, %v3436, %v2602
        %v3469 = vsel %vm1769, %v3437, %v2604
        %v3470 = vsel %vm1769, %v3438, %v2606
        %vm3471 = vcmask 97280
        %v3472 = vsel %vm3471, %v3439, %v2672
        %v3473 = vsel %vm3471, %v3440, %v2674
        %v3474 = vsel %vm3471, %v3441, %v2676
        %v3475 = vsel %vm3471, %v3442, %v2678
        %v3476 = vsel %vm3471, %v3443, %v2680
        %v3477 = vsel %vm3471, %v3444, %v2682
        %v3478 = vsel %vm3471, %v3445, %v2684
        %v3479 = vsel %vm3471, %v3446, %v2686
        %v3480 = vsel %vm3471, %v3447, %v2688
        %v3481 = vsel %vm3471, %v3448, %v2690
        %v3482 = vsel %vm3471, %v3449, %v2692
        %v3483 = vsel %vm3471, %v3450, %v2694
        %v3484 = vsel %vm3471, %v3451, %v2696
        %v3485 = vsel %vm3471, %v3452, %v2698
        %v3486 = vsel %vm3471, %v3453, %v2700
        %v3487 = vsel %vm3471, %v3454, %v2702
        %v3488 = vsel %vm3471, %v3455, %v2704
        %v3489 = vsel %vm3471, %v3456, %v2706
        %v3490 = vsel %vm3471, %v3457, %v2708
        %v3491 = vsel %vm3471, %v3458, %v2710
        %v3492 = vsel %vm3471, %v3459, %v2712
        %v3493 = vsel %vm3471, %v3460, %v2714
        %v3494 = vsel %vm3471, %v3461, %v2716
        %v3495 = vsel %vm3471, %v3462, %v2718
        %v3496 = vsel %vm3471, %v3463, %v2720
        %v3497 = vsel %vm3471, %v3464, %v2722
        %v3498 = vsel %vm3471, %v3465, %v2724
        %v3499 = vsel %vm3471, %v3466, %v2726
        %v3500 = vsel %vm3471, %v3467, %v2728
        %v3501 = vsel %vm3471, %v3468, %v2730
        %v3502 = vsel %vm3471, %v3469, %v2732
        %v3503 = vsel %vm3471, %v3470, %v2734
        %vm3504 = vcmask 130048
        %v3505 = vsel %vm3504, %v3472, %v2800
        %v3506 = vsel %vm3504, %v3473, %v2802
        %v3507 = vsel %vm3504, %v3474, %v2804
        %v3508 = vsel %vm3504, %v3475, %v2806
        %v3509 = vsel %vm3504, %v3476, %v2808
        %v3510 = vsel %vm3504, %v3477, %v2810
        %v3511 = vsel %vm3504, %v3478, %v2812
        %v3512 = vsel %vm3504, %v3479, %v2814
        %v3513 = vsel %vm3504, %v3480, %v2816
        %v3514 = vsel %vm3504, %v3481, %v2818
        %v3515 = vsel %vm3504, %v3482, %v2820
        %v3516 = vsel %vm3504, %v3483, %v2822
        %v3517 = vsel %vm3504, %v3484, %v2824
        %v3518 = vsel %vm3504, %v3485, %v2826
        %v3519 = vsel %vm3504, %v3486, %v2828
        %v3520 = vsel %vm3504, %v3487, %v2830
        %v3521 = vsel %vm3504, %v3488, %v2832
        %v3522 = vsel %vm3504, %v3489, %v2834
        %v3523 = vsel %vm3504, %v3490, %v2836
        %v3524 = vsel %vm3504, %v3491, %v2838
        %v3525 = vsel %vm3504, %v3492, %v2840
        %v3526 = vsel %vm3504, %v3493, %v2842
        %v3527 = vsel %vm3504, %v3494, %v2844
        %v3528 = vsel %vm3504, %v3495, %v2846
        %v3529 = vsel %vm3504, %v3496, %v2848
        %v3530 = vsel %vm3504, %v3497, %v2850
        %v3531 = vsel %vm3504, %v3498, %v2852
        %v3532 = vsel %vm3504, %v3499, %v2854
        %v3533 = vsel %vm3504, %v3500, %v2856
        %v3534 = vsel %vm3504, %v3501, %v2858
        %v3535 = vsel %vm3504, %v3502, %v2860
        %v3536 = vsel %vm3504, %v3503, %v2862
        %vm3537 = vcmask 162816
        %v3538 = vsel %vm3537, %v3505, %v2928
        %v3539 = vsel %vm3537, %v3506, %v2930
        %v3540 = vsel %vm3537, %v3507, %v2932
        %v3541 = vsel %vm3537, %v3508, %v2934
        %v3542 = vsel %vm3537, %v3509, %v2936
        %v3543 = vsel %vm3537, %v3510, %v2938
        %v3544 = vsel %vm3537, %v3511, %v2940
        %v3545 = vsel %vm3537, %v3512, %v2942
        %v3546 = vsel %vm3537, %v3513, %v2944
        %v3547 = vsel %vm3537, %v3514, %v2946
        %v3548 = vsel %vm3537, %v3515, %v2948
        %v3549 = vsel %vm3537, %v3516, %v2950
        %v3550 = vsel %vm3537, %v3517, %v2952
        %v3551 = vsel %vm3537, %v3518, %v2954
        %v3552 = vsel %vm3537, %v3519, %v2956
        %v3553 = vsel %vm3537, %v3520, %v2958
        %v3554 = vsel %vm3537, %v3521, %v2960
        %v3555 = vsel %vm3537, %v3522, %v2962
        %v3556 = vsel %vm3537, %v3523, %v2964
        %v3557 = vsel %vm3537, %v3524, %v2966
        %v3558 = vsel %vm3537, %v3525, %v2968
        %v3559 = vsel %vm3537, %v3526, %v2970
        %v3560 = vsel %vm3537, %v3527, %v2972
        %v3561 = vsel %vm3537, %v3528, %v2974
        %v3562 = vsel %vm3537, %v3529, %v2976
        %v3563 = vsel %vm3537, %v3530, %v2978
        %v3564 = vsel %vm3537, %v3531, %v2980
        %v3565 = vsel %vm3537, %v3532, %v2982
        %v3566 = vsel %vm3537, %v3533, %v2984
        %v3567 = vsel %vm3537, %v3534, %v2986
        %v3568 = vsel %vm3537, %v3535, %v2988
        %v3569 = vsel %vm3537, %v3536, %v2990
        %vm3570 = vcmask 195584
        %v3571 = vsel %vm3570, %v3538, %v3056
        %v3572 = vsel %vm3570, %v3539, %v3058
        %v3573 = vsel %vm3570, %v3540, %v3060
        %v3574 = vsel %vm3570, %v3541, %v3062
        %v3575 = vsel %vm3570, %v3542, %v3064
        %v3576 = vsel %vm3570, %v3543, %v3066
        %v3577 = vsel %vm3570, %v3544, %v3068
        %v3578 = vsel %vm3570, %v3545, %v3070
        %v3579 = vsel %vm3570, %v3546, %v3072
        %v3580 = vsel %vm3570, %v3547, %v3074
        %v3581 = vsel %vm3570, %v3548, %v3076
        %v3582 = vsel %vm3570, %v3549, %v3078
        %v3583 = vsel %vm3570, %v3550, %v3080
        %v3584 = vsel %vm3570, %v3551, %v3082
        %v3585 = vsel %vm3570, %v3552, %v3084
        %v3586 = vsel %vm3570, %v3553, %v3086
        %v3587 = vsel %vm3570, %v3554, %v3088
        %v3588 = vsel %vm3570, %v3555, %v3090
        %v3589 = vsel %vm3570, %v3556, %v3092
        %v3590 = vsel %vm3570, %v3557, %v3094
        %v3591 = vsel %vm3570, %v3558, %v3096
        %v3592 = vsel %vm3570, %v3559, %v3098
        %v3593 = vsel %vm3570, %v3560, %v3100
        %v3594 = vsel %vm3570, %v3561, %v3102
        %v3595 = vsel %vm3570, %v3562, %v3104
        %v3596 = vsel %vm3570, %v3563, %v3106
        %v3597 = vsel %vm3570, %v3564, %v3108
        %v3598 = vsel %vm3570, %v3565, %v3110
        %v3599 = vsel %vm3570, %v3566, %v3112
        %v3600 = vsel %vm3570, %v3567, %v3114
        %v3601 = vsel %vm3570, %v3568, %v3116
        %v3602 = vsel %vm3570, %v3569, %v3118
        %vm3603 = vcmask 228352
        %v3604 = vsel %vm3603, %v3571, %v3184
        %v3605 = vsel %vm3603, %v3572, %v3186
        %v3606 = vsel %vm3603, %v3573, %v3188
        %v3607 = vsel %vm3603, %v3574, %v3190
        %v3608 = vsel %vm3603, %v3575, %v3192
        %v3609 = vsel %vm3603, %v3576, %v3194
        %v3610 = vsel %vm3603, %v3577, %v3196
        %v3611 = vsel %vm3603, %v3578, %v3198
        %v3612 = vsel %vm3603, %v3579, %v3200
        %v3613 = vsel %vm3603, %v3580, %v3202
        %v3614 = vsel %vm3603, %v3581, %v3204
        %v3615 = vsel %vm3603, %v3582, %v3206
        %v3616 = vsel %vm3603, %v3583, %v3208
        %v3617 = vsel %vm3603, %v3584, %v3210
        %v3618 = vsel %vm3603, %v3585, %v3212
        %v3619 = vsel %vm3603, %v3586, %v3214
        %v3620 = vsel %vm3603, %v3587, %v3216
        %v3621 = vsel %vm3603, %v3588, %v3218
        %v3622 = vsel %vm3603, %v3589, %v3220
        %v3623 = vsel %vm3603, %v3590, %v3222
        %v3624 = vsel %vm3603, %v3591, %v3224
        %v3625 = vsel %vm3603, %v3592, %v3226
        %v3626 = vsel %vm3603, %v3593, %v3228
        %v3627 = vsel %vm3603, %v3594, %v3230
        %v3628 = vsel %vm3603, %v3595, %v3232
        %v3629 = vsel %vm3603, %v3596, %v3234
        %v3630 = vsel %vm3603, %v3597, %v3236
        %v3631 = vsel %vm3603, %v3598, %v3238
        %v3632 = vsel %vm3603, %v3599, %v3240
        %v3633 = vsel %vm3603, %v3600, %v3242
        %v3634 = vsel %vm3603, %v3601, %v3244
        %v3635 = vsel %vm3603, %v3602, %v3246
        %vm3636 = vcmask 261120
        %v3637 = vsel %vm3636, %v3604, %v3312
        %v3638 = vsel %vm3636, %v3605, %v3314
        %v3639 = vsel %vm3636, %v3606, %v3316
        %v3640 = vsel %vm3636, %v3607, %v3318
        %v3641 = vsel %vm3636, %v3608, %v3320
        %v3642 = vsel %vm3636, %v3609, %v3322
        %v3643 = vsel %vm3636, %v3610, %v3324
        %v3644 = vsel %vm3636, %v3611, %v3326
        %v3645 = vsel %vm3636, %v3612, %v3328
        %v3646 = vsel %vm3636, %v3613, %v3330
        %v3647 = vsel %vm3636, %v3614, %v3332
        %v3648 = vsel %vm3636, %v3615, %v3334
        %v3649 = vsel %vm3636, %v3616, %v3336
        %v3650 = vsel %vm3636, %v3617, %v3338
        %v3651 = vsel %vm3636, %v3618, %v3340
        %v3652 = vsel %vm3636, %v3619, %v3342
        %v3653 = vsel %vm3636, %v3620, %v3344
        %v3654 = vsel %vm3636, %v3621, %v3346
        %v3655 = vsel %vm3636, %v3622, %v3348
        %v3656 = vsel %vm3636, %v3623, %v3350
        %v3657 = vsel %vm3636, %v3624, %v3352
        %v3658 = vsel %vm3636, %v3625, %v3354
        %v3659 = vsel %vm3636, %v3626, %v3356
        %v3660 = vsel %vm3636, %v3627, %v3358
        %v3661 = vsel %vm3636, %v3628, %v3360
        %v3662 = vsel %vm3636, %v3629, %v3362
        %v3663 = vsel %vm3636, %v3630, %v3364
        %v3664 = vsel %vm3636, %v3631, %v3366
        %v3665 = vsel %vm3636, %v3632, %v3368
        %v3666 = vsel %vm3636, %v3633, %v3370
        %v3667 = vsel %vm3636, %v3634, %v3372
        %v3668 = vsel %vm3636, %v3635, %v3374
        %v3669 = vpack.c.bf16 %v3638, %v3637
        %v3670 = vpack.c.bf16 %v3640, %v3639
        %v3671 = vpack.c.bf16 %v3642, %v3641
        %v3672 = vpack.c.bf16 %v3644, %v3643
        %v3673 = vpack.c.bf16 %v3646, %v3645
        %v3674 = vpack.c.bf16 %v3648, %v3647
        %v3675 = vpack.c.bf16 %v3650, %v3649
        %v3676 = vpack.c.bf16 %v3652, %v3651
        %v3677 = vpack.c.bf16 %v3654, %v3653
        %v3678 = vpack.c.bf16 %v3656, %v3655
        %v3679 = vpack.c.bf16 %v3658, %v3657
        %v3680 = vpack.c.bf16 %v3660, %v3659
        %v3681 = vpack.c.bf16 %v3662, %v3661
        %v3682 = vpack.c.bf16 %v3664, %v3663
        %v3683 = vpack.c.bf16 %v3666, %v3665
        %v3684 = vpack.c.bf16 %v3668, %v3667
        %v3685 = vld [vmem:[%s3] sm:$0xf]
        %v3686 = vld [vmem:[%s3 + $0x4] sm:$0xf]
        %v3687 = vld [vmem:[%s3 + $0x8] sm:$0xf]
        %v3688 = vld [vmem:[%s3 + $0xc] sm:$0xf]
        %v3689 = vld [vmem:[%s3 + $0x10] sm:$0x3]
        %v3690 = vld [vmem:[%s4] sm:$0x1]
        %v3692 = vperm.slane %v3690, 0
        %v3699 = vunpack.c.l.b16 %v3685
        %v3700 = vunpack.c.l.b16 %v3686
        %v3701 = vunpack.c.l.b16 %v3687
        %v3702 = vunpack.c.l.b16 %v3688
        %v3703 = vunpack.c.l.b16 %v3689
        %v3704 = vpack.c.b16 %v3700, %v3699
        %v3705 = vpack.c.b16 %v3702, %v3701
        %v3706 = vpack.c.b16 %v3703, %v3703
        %vm3709 = vcmask 293888
        %v3711 = vsel %vm3709, %v3669, 0
        %v3714 = vsel %vm3709, %v3670, 0
        %v3717 = vsel %vm3709, %v3671, 0
        %v3720 = vsel %vm3709, %v3672, 0
        %v3723 = vsel %vm3709, %v3673, 0
        %v3726 = vsel %vm3709, %v3674, 0
        %v3729 = vsel %vm3709, %v3675, 0
        %v3732 = vsel %vm3709, %v3676, 0
        %v3735 = vsel %vm3709, %v3677, 0
        %v3738 = vsel %vm3709, %v3678, 0
        %v3741 = vsel %vm3709, %v3679, 0
        %v3744 = vsel %vm3709, %v3680, 0
        %v3747 = vsel %vm3709, %v3681, 0
        %v3750 = vsel %vm3709, %v3682, 0
        %v3753 = vsel %vm3709, %v3683, 0
        %v3756 = vsel %vm3709, %v3684, 0
        %vm3758 = vcmask 1041408
        %v3760 = vsel %vm3758, %v3706, 0
        %3762 = vmatpush.bf16.msra.mxu0 0
        %3763 = vmatpush.bf16.msra.mxu0 0
        %3764 = vmatpush.bf16.msra.mxu0 0
        %3765 = vmatpush.bf16.msra.mxu0 0
        %3766 = vmatpush.bf16.msra.mxu0 0
        %3767 = vmatpush.bf16.msra.mxu0 %v3760
        %3768 = vmatpush.bf16.msra.mxu0 %v3705
        %3769 = vmatpush.bf16.msra.mxu0 %v3704
        %3770 = vmatmul.bf16.gmra.mxu0 %v3711
        %v3771 = vpop.f32.mrf.mxu0
        %v3772 = vadd.f32 %v3692, %v3771
        %v3773 = vpop.f32.mrf.mxu0
        %v3774 = vadd.f32 %v3692, %v3773
        %3775 = vmatmul.bf16.gmra.mxu0 %v3714
        %v3776 = vpop.f32.mrf.mxu0
        %v3777 = vadd.f32 %v3692, %v3776
        %v3778 = vpop.f32.mrf.mxu0
        %v3779 = vadd.f32 %v3692, %v3778
        %3780 = vmatmul.bf16.gmra.mxu0 %v3717
        %v3781 = vpop.f32.mrf.mxu0
        %v3782 = vadd.f32 %v3692, %v3781
        %v3783 = vpop.f32.mrf.mxu0
        %v3784 = vadd.f32 %v3692, %v3783
        %3785 = vmatmul.bf16.gmra.mxu0 %v3720
        %v3786 = vpop.f32.mrf.mxu0
        %v3787 = vadd.f32 %v3692, %v3786
        %v3788 = vpop.f32.mrf.mxu0
        %v3789 = vadd.f32 %v3692, %v3788
        %3790 = vmatmul.bf16.gmra.mxu0 %v3723
        %v3791 = vpop.f32.mrf.mxu0
        %v3792 = vadd.f32 %v3692, %v3791
        %v3793 = vpop.f32.mrf.mxu0
        %v3794 = vadd.f32 %v3692, %v3793
        %3795 = vmatmul.bf16.gmra.mxu0 %v3726
        %v3796 = vpop.f32.mrf.mxu0
        %v3797 = vadd.f32 %v3692, %v3796
        %v3798 = vpop.f32.mrf.mxu0
        %v3799 = vadd.f32 %v3692, %v3798
        %3800 = vmatmul.bf16.gmra.mxu0 %v3729
        %v3801 = vpop.f32.mrf.mxu0
        %v3802 = vadd.f32 %v3692, %v3801
        %v3803 = vpop.f32.mrf.mxu0
        %v3804 = vadd.f32 %v3692, %v3803
        %3805 = vmatmul.bf16.gmra.mxu0 %v3732
        %v3806 = vpop.f32.mrf.mxu0
        %v3807 = vadd.f32 %v3692, %v3806
        %v3808 = vpop.f32.mrf.mxu0
        %v3809 = vadd.f32 %v3692, %v3808
        %3810 = vmatmul.bf16.gmra.mxu0 %v3735
        %v3811 = vpop.f32.mrf.mxu0
        %v3812 = vadd.f32 %v3692, %v3811
        %v3813 = vpop.f32.mrf.mxu0
        %v3814 = vadd.f32 %v3692, %v3813
        %3815 = vmatmul.bf16.gmra.mxu0 %v3738
        %v3816 = vpop.f32.mrf.mxu0
        %v3817 = vadd.f32 %v3692, %v3816
        %v3818 = vpop.f32.mrf.mxu0
        %v3819 = vadd.f32 %v3692, %v3818
        %3820 = vmatmul.bf16.gmra.mxu0 %v3741
        %v3821 = vpop.f32.mrf.mxu0
        %v3822 = vadd.f32 %v3692, %v3821
        %v3823 = vpop.f32.mrf.mxu0
        %v3824 = vadd.f32 %v3692, %v3823
        %3825 = vmatmul.bf16.gmra.mxu0 %v3744
        %v3826 = vpop.f32.mrf.mxu0
        %v3827 = vadd.f32 %v3692, %v3826
        %v3828 = vpop.f32.mrf.mxu0
        %v3829 = vadd.f32 %v3692, %v3828
        %3830 = vmatmul.bf16.gmra.mxu0 %v3747
        %v3831 = vpop.f32.mrf.mxu0
        %v3832 = vadd.f32 %v3692, %v3831
        %v3833 = vpop.f32.mrf.mxu0
        %v3834 = vadd.f32 %v3692, %v3833
        %3835 = vmatmul.bf16.gmra.mxu0 %v3750
        %v3836 = vpop.f32.mrf.mxu0
        %v3837 = vadd.f32 %v3692, %v3836
        %v3838 = vpop.f32.mrf.mxu0
        %v3839 = vadd.f32 %v3692, %v3838
        %3840 = vmatmul.bf16.gmra.mxu0 %v3753
        %v3841 = vpop.f32.mrf.mxu0
        %v3842 = vadd.f32 %v3692, %v3841
        %v3843 = vpop.f32.mrf.mxu0
        %v3844 = vadd.f32 %v3692, %v3843
        %3845 = vmatmul.bf16.gmra.mxu0 %v3756
        %v3846 = vpop.f32.mrf.mxu0
        %v3847 = vadd.f32 %v3692, %v3846
        %v3848 = vpop.f32.mrf.mxu0
        %v3849 = vadd.f32 %v3692, %v3848
        %3850 = vdwg.mxu0
        %v3851 = vmax.f32 %v3772, 0.0
        %v3852 = vmax.f32 %v3774, 0.0
        %v3853 = vmax.f32 %v3777, 0.0
        %v3854 = vmax.f32 %v3779, 0.0
        %v3855 = vmax.f32 %v3782, 0.0
        %v3856 = vmax.f32 %v3784, 0.0
        %v3857 = vmax.f32 %v3787, 0.0
        %v3858 = vmax.f32 %v3789, 0.0
        %v3859 = vmax.f32 %v3792, 0.0
        %v3860 = vmax.f32 %v3794, 0.0
        %v3861 = vmax.f32 %v3797, 0.0
        %v3862 = vmax.f32 %v3799, 0.0
        %v3863 = vmax.f32 %v3802, 0.0
        %v3864 = vmax.f32 %v3804, 0.0
        %v3865 = vmax.f32 %v3807, 0.0
        %v3866 = vmax.f32 %v3809, 0.0
        %v3867 = vmax.f32 %v3812, 0.0
        %v3868 = vmax.f32 %v3814, 0.0
        %v3869 = vmax.f32 %v3817, 0.0
        %v3870 = vmax.f32 %v3819, 0.0
        %v3871 = vmax.f32 %v3822, 0.0
        %v3872 = vmax.f32 %v3824, 0.0
        %v3873 = vmax.f32 %v3827, 0.0
        %v3874 = vmax.f32 %v3829, 0.0
        %v3875 = vmax.f32 %v3832, 0.0
        %v3876 = vmax.f32 %v3834, 0.0
        %v3877 = vmax.f32 %v3837, 0.0
        %v3878 = vmax.f32 %v3839, 0.0
        %v3879 = vmax.f32 %v3842, 0.0
        %v3880 = vmax.f32 %v3844, 0.0
        %v3881 = vmax.f32 %v3847, 0.0
        %v3882 = vmax.f32 %v3849, 0.0
        %3883 = vst.msk [vmem:[#allocation3] sm:$0xff] %vm1637, %v3851
        %3884 = vst.msk [vmem:[#allocation3 + $0x8] sm:$0xff] %vm1637, %v3852
        %3885 = vst.msk [vmem:[#allocation3 + $0x10] sm:$0xff] %vm1637, %v3853
        %3886 = vst.msk [vmem:[#allocation3 + $0x18] sm:$0xff] %vm1637, %v3854
        %3887 = vst.msk [vmem:[#allocation3 + $0x20] sm:$0xff] %vm1637, %v3855
        %3888 = vst.msk [vmem:[#allocation3 + $0x28] sm:$0xff] %vm1637, %v3856
        %3889 = vst.msk [vmem:[#allocation3 + $0x30] sm:$0xff] %vm1637, %v3857
        %3890 = vst.msk [vmem:[#allocation3 + $0x38] sm:$0xff] %vm1637, %v3858
        %3891 = vst.msk [vmem:[#allocation3 + $0x40] sm:$0xff] %vm1637, %v3859
        %3892 = vst.msk [vmem:[#allocation3 + $0x48] sm:$0xff] %vm1637, %v3860
        %3893 = vst.msk [vmem:[#allocation3 + $0x50] sm:$0xff] %vm1637, %v3861
        %3894 = vst.msk [vmem:[#allocation3 + $0x58] sm:$0xff] %vm1637, %v3862
        %3895 = vst.msk [vmem:[#allocation3 + $0x60] sm:$0xff] %vm1637, %v3863
        %3896 = vst.msk [vmem:[#allocation3 + $0x68] sm:$0xff] %vm1637, %v3864
        %3897 = vst.msk [vmem:[#allocation3 + $0x70] sm:$0xff] %vm1637, %v3865
        %3898 = vst.msk [vmem:[#allocation3 + $0x78] sm:$0xff] %vm1637, %v3866
        %3899 = vst.msk [vmem:[#allocation3 + $0x80] sm:$0xff] %vm1637, %v3867
        %3900 = vst.msk [vmem:[#allocation3 + $0x88] sm:$0xff] %vm1637, %v3868
        %3901 = vst.msk [vmem:[#allocation3 + $0x90] sm:$0xff] %vm1637, %v3869
        %3902 = vst.msk [vmem:[#allocation3 + $0x98] sm:$0xff] %vm1637, %v3870
        %3903 = vst.msk [vmem:[#allocation3 + $0xa0] sm:$0xff] %vm1637, %v3871
        %3904 = vst.msk [vmem:[#allocation3 + $0xa8] sm:$0xff] %vm1637, %v3872
        %3905 = vst.msk [vmem:[#allocation3 + $0xb0] sm:$0xff] %vm1637, %v3873
        %3906 = vst.msk [vmem:[#allocation3 + $0xb8] sm:$0xff] %vm1637, %v3874
        %3907 = vst.msk [vmem:[#allocation3 + $0xc0] sm:$0xff] %vm1637, %v3875
        %3908 = vst.msk [vmem:[#allocation3 + $0xc8] sm:$0xff] %vm1637, %v3876
        %3909 = vst.msk [vmem:[#allocation3 + $0xd0] sm:$0xff] %vm1637, %v3877
        %3910 = vst.msk [vmem:[#allocation3 + $0xd8] sm:$0xff] %vm1637, %v3878
        %3911 = vst.msk [vmem:[#allocation3 + $0xe0] sm:$0xff] %vm1637, %v3879
        %3912 = vst.msk [vmem:[#allocation3 + $0xe8] sm:$0xff] %vm1637, %v3880
        %3913 = vst.msk [vmem:[#allocation3 + $0xf0] sm:$0xff] %vm1637, %v3881
        %3914 = vst.msk [vmem:[#allocation3 + $0xf8] sm:$0xff] %vm1637, %v3882
        %v3915 = vld [vmem:[#allocation3] sm:$0xff]
        %v3916 = vld [vmem:[#allocation3 + $0x8] sm:$0xff]
        %v3917 = vld [vmem:[#allocation3 + $0x10] sm:$0xff]
        %v3918 = vld [vmem:[#allocation3 + $0x18] sm:$0xff]
        %v3919 = vld [vmem:[#allocation3 + $0x20] sm:$0xff]
        %v3920 = vld [vmem:[#allocation3 + $0x28] sm:$0xff]
        %v3921 = vld [vmem:[#allocation3 + $0x30] sm:$0xff]
        %v3922 = vld [vmem:[#allocation3 + $0x38] sm:$0xff]
        %v3923 = vld [vmem:[#allocation3 + $0x40] sm:$0xff]
        %v3924 = vld [vmem:[#allocation3 + $0x48] sm:$0xff]
        %v3925 = vld [vmem:[#allocation3 + $0x50] sm:$0xff]
        %v3926 = vld [vmem:[#allocation3 + $0x58] sm:$0xff]
        %v3927 = vld [vmem:[#allocation3 + $0x60] sm:$0xff]
        %v3928 = vld [vmem:[#allocation3 + $0x68] sm:$0xff]
        %v3929 = vld [vmem:[#allocation3 + $0x70] sm:$0xff]
        %v3930 = vld [vmem:[#allocation3 + $0x78] sm:$0xff]
        %v3931 = vld [vmem:[#allocation3 + $0x80] sm:$0xff]
        %v3932 = vld [vmem:[#allocation3 + $0x88] sm:$0xff]
        %v3933 = vld [vmem:[#allocation3 + $0x90] sm:$0xff]
        %v3934 = vld [vmem:[#allocation3 + $0x98] sm:$0xff]
        %v3935 = vld [vmem:[#allocation3 + $0xa0] sm:$0xff]
        %v3936 = vld [vmem:[#allocation3 + $0xa8] sm:$0xff]
        %v3937 = vld [vmem:[#allocation3 + $0xb0] sm:$0xff]
        %v3938 = vld [vmem:[#allocation3 + $0xb8] sm:$0xff]
        %v3939 = vld [vmem:[#allocation3 + $0xc0] sm:$0xff]
        %v3940 = vld [vmem:[#allocation3 + $0xc8] sm:$0xff]
        %v3941 = vld [vmem:[#allocation3 + $0xd0] sm:$0xff]
        %v3942 = vld [vmem:[#allocation3 + $0xd8] sm:$0xff]
        %v3943 = vld [vmem:[#allocation3 + $0xe0] sm:$0xff]
        %v3944 = vld [vmem:[#allocation3 + $0xe8] sm:$0xff]
        %v3945 = vld [vmem:[#allocation3 + $0xf0] sm:$0xff]
        %v3946 = vld [vmem:[#allocation3 + $0xf8] sm:$0xff]
        %v3947 = vmax.f32 %v3915, %v3917
        %v3948 = vmax.f32 %v3916, %v3918
        %v3949 = vmax.f32 %v3919, %v3921
        %v3950 = vmax.f32 %v3920, %v3922
        %v3951 = vmax.f32 %v3923, %v3925
        %v3952 = vmax.f32 %v3924, %v3926
        %v3953 = vmax.f32 %v3927, %v3929
        %v3954 = vmax.f32 %v3928, %v3930
        %v3955 = vmax.f32 %v3931, %v3933
        %v3956 = vmax.f32 %v3932, %v3934
        %v3957 = vmax.f32 %v3935, %v3937
        %v3958 = vmax.f32 %v3936, %v3938
        %v3959 = vmax.f32 %v3939, %v3941
        %v3960 = vmax.f32 %v3940, %v3942
        %v3961 = vmax.f32 %v3943, %v3945
        %v3962 = vmax.f32 %v3944, %v3946
        %3963 = vst.msk [vmem:[#allocation4] sm:$0xff] %vm1637, %v3947
        %3964 = vst.msk [vmem:[#allocation4 + $0x8] sm:$0xff] %vm1637, %v3948
        %3965 = vst.msk [vmem:[#allocation4 + $0x10] sm:$0xff] %vm1637, %v3949
        %3966 = vst.msk [vmem:[#allocation4 + $0x18] sm:$0xff] %vm1637, %v3950
        %3967 = vst.msk [vmem:[#allocation4 + $0x20] sm:$0xff] %vm1637, %v3951
        %3968 = vst.msk [vmem:[#allocation4 + $0x28] sm:$0xff] %vm1637, %v3952
        %3969 = vst.msk [vmem:[#allocation4 + $0x30] sm:$0xff] %vm1637, %v3953
        %3970 = vst.msk [vmem:[#allocation4 + $0x38] sm:$0xff] %vm1637, %v3954
        %3971 = vst.msk [vmem:[#allocation4 + $0x40] sm:$0xff] %vm1637, %v3955
        %3972 = vst.msk [vmem:[#allocation4 + $0x48] sm:$0xff] %vm1637, %v3956
        %3973 = vst.msk [vmem:[#allocation4 + $0x50] sm:$0xff] %vm1637, %v3957
        %3974 = vst.msk [vmem:[#allocation4 + $0x58] sm:$0xff] %vm1637, %v3958
        %3975 = vst.msk [vmem:[#allocation4 + $0x60] sm:$0xff] %vm1637, %v3959
        %3976 = vst.msk [vmem:[#allocation4 + $0x68] sm:$0xff] %vm1637, %v3960
        %3977 = vst.msk [vmem:[#allocation4 + $0x70] sm:$0xff] %vm1637, %v3961
        %3978 = vst.msk [vmem:[#allocation4 + $0x78] sm:$0xff] %vm1637, %v3962
        %v3979 = vld [vmem:[#allocation4] ss:$2 sm:$0xff]
        %s3980 = scalar_lea.vmem [#allocation4], 16
        %v3981 = vld [vmem:[%s3980] ss:$2 sm:$0xff]
        %s3982 = scalar_lea.vmem [#allocation4], 32
        %v3983 = vld [vmem:[%s3982] ss:$2 sm:$0xff]
        %s3984 = scalar_lea.vmem [#allocation4], 48
        %v3985 = vld [vmem:[%s3984] ss:$2 sm:$0xff]
        %s3986 = scalar_lea.vmem [#allocation4], 64
        %v3987 = vld [vmem:[%s3986] ss:$2 sm:$0xff]
        %s3988 = scalar_lea.vmem [#allocation4], 80
        %v3989 = vld [vmem:[%s3988] ss:$2 sm:$0xff]
        %s3990 = scalar_lea.vmem [#allocation4], 96
        %v3991 = vld [vmem:[%s3990] ss:$2 sm:$0xff]
        %s3992 = scalar_lea.vmem [#allocation4], 112
        %v3993 = vld [vmem:[%s3992] ss:$2 sm:$0xff]
        %s3994 = scalar_lea.vmem [#allocation4], 1
        %v3995 = vld [vmem:[%s3994] ss:$2 sm:$0xff]
        %s3996 = scalar_lea.vmem [#allocation4], 17
        %v3997 = vld [vmem:[%s3996] ss:$2 sm:$0xff]
        %s3998 = scalar_lea.vmem [#allocation4], 33
        %v3999 = vld [vmem:[%s3998] ss:$2 sm:$0xff]
        %s4000 = scalar_lea.vmem [#allocation4], 49
        %v4001 = vld [vmem:[%s4000] ss:$2 sm:$0xff]
        %s4002 = scalar_lea.vmem [#allocation4], 65
        %v4003 = vld [vmem:[%s4002] ss:$2 sm:$0xff]
        %s4004 = scalar_lea.vmem [#allocation4], 81
        %v4005 = vld [vmem:[%s4004] ss:$2 sm:$0xff]
        %s4006 = scalar_lea.vmem [#allocation4], 97
        %v4007 = vld [vmem:[%s4006] ss:$2 sm:$0xff]
        %s4008 = scalar_lea.vmem [#allocation4], 113
        %v4009 = vld [vmem:[%s4008] ss:$2 sm:$0xff]
        %v4010 = vmax.f32 %v3979, %v3995
        %v4011 = vmax.f32 %v3981, %v3997
        %v4012 = vmax.f32 %v3983, %v3999
        %v4013 = vmax.f32 %v3985, %v4001
        %v4014 = vmax.f32 %v3987, %v4003
        %v4015 = vmax.f32 %v3989, %v4005
        %v4016 = vmax.f32 %v3991, %v4007
        %v4017 = vmax.f32 %v3993, %v4009
        %4018 = vxpose.xlu0.b32.start [1/16] %v4010, 128
        %4019 = vxpose.xlu0.b32.cont [2/16] %v4011, 128
        %4020 = vxpose.xlu0.b32.cont [3/16] %v4012, 128
        %4021 = vxpose.xlu0.b32.cont [4/16] %v4013, 128
        %4022 = vxpose.xlu0.b32.cont [5/16] %v4014, 128
        %4023 = vxpose.xlu0.b32.cont [6/16] %v4015, 128
        %4024 = vxpose.xlu0.b32.cont [7/16] %v4016, 128
        %4025 = vxpose.xlu0.b32.cont [8/16] %v4017, 128
        %4026 = vxpose.xlu0.b32.cont [9/16] 0.0, 128
        %4027 = vxpose.xlu0.b32.cont [10/16] 0.0, 128
        %4028 = vxpose.xlu0.b32.cont [11/16] 0.0, 128
        %4029 = vxpose.xlu0.b32.cont [12/16] 0.0, 128
        %4030 = vxpose.xlu0.b32.cont [13/16] 0.0, 128
        %4031 = vxpose.xlu0.b32.cont [14/16] 0.0, 128
        %4032 = vxpose.xlu0.b32.cont [15/16] 0.0, 128
        %4033 = vxpose.xlu0.b32.end [16/16] 0.0, 128
        %v4034 = vpop.trf.xlu0
        %v4035 = vpop.trf.xlu0
        %v4036 = vpop.trf.xlu0
        %v4037 = vpop.trf.xlu0
        %v4038 = vpop.trf.xlu0
        %v4039 = vpop.trf.xlu0
        %v4040 = vpop.trf.xlu0
        %v4041 = vpop.trf.xlu0
        %v4042 = vpop.trf.xlu0
        %v4043 = vpop.trf.xlu0
        %v4044 = vpop.trf.xlu0
        %v4045 = vpop.trf.xlu0
        %v4046 = vpop.trf.xlu0
        %v4047 = vpop.trf.xlu0
        %v4048 = vpop.trf.xlu0
        %v4049 = vpop.trf.xlu0
        %vm4050 = vcmask 519168
        %4051 = vst.msk [vmem:[%s217] sm:$0xf] %vm4050, %v4034
        %s4052 = sand.u32 %s137, 1
        %s4053 = scalar_lea.sflag [#allocation6], %s4052
        %s4054 = sand.u32 %s137, 1
        %s4055 = smul.addr %s4054, 4
        %s4056 = scalar_lea.vmem [#allocation5], %s4055
        // Predicated region
        $region41: #{tpu_custom_call.1} parent=39 // pred_check
          %p4057 = pneg %p147
        $region42: #{tpu_custom_call.1} parent=39 // pred_check_branch
          %4059 = sbr.rel (%p4057) target = $region44
        $region43: #{tpu_custom_call.1} parent=39 // pred_region
          %4061 = vsyncadd %s4053, 0
          %s4062 = smul.addr %s19, 4
          %s4063 = scalar_lea.hbm %s5, %s4062
          %s4065 = sshll.u32 %s4056, 4
          %s4066 = int_to_ptr.vmem [resolvable:$true] %s4065
          %s4067 = sshll.u32 %s4063, 4
          %s4068 = int_to_ptr.hbm [resolvable:$true] %s4067
          %4070 = dma.vmem_to_hbm [thread:$0]  %s4066, 64, %s4068, %s4053
        $region44: #{tpu_custom_call.1} parent=39 // pred_fallthru
          _
      $region40: #{tpu_custom_call.1} parent=5 // pred_fallthru
        _
      %p4071 = scmp.le.s32.totalorder 2, %s14
      // Predicated region
      $region45: #{tpu_custom_call.1} parent=5 // pred_check
        %p4072 = pneg %p4071
      $region46: #{tpu_custom_call.1} parent=5 // pred_check_branch
        %4074 = sbr.rel (%p4072) target = $region48
      $region47: #{tpu_custom_call.1} parent=5 // pred_region
        %s4075 = ssub.s32 %s14, 2
        // Predicated region
        $region49: #{tpu_custom_call.1} parent=47 // pred_check
          %p4076 = pneg %p153
        $region50: #{tpu_custom_call.1} parent=47 // pred_check_branch
          %4078 = sbr.rel (%p4076) target = $region52
        $region51: #{tpu_custom_call.1} parent=47 // pred_region
          %s4079 = sand.u32 %s138, 1
          %s4080 = scalar_lea.sflag [#allocation6], %s4079
          %s4081 = sand.u32 %s138, 1
          %s4082 = smul.addr %s4081, 4
          %s4083 = scalar_lea.vmem [#allocation5], %s4082
          %4085 = dma.done %s4080, 64
        $region52: #{tpu_custom_call.1} parent=47 // pred_fallthru
          _
      $region48: #{tpu_custom_call.1} parent=5 // pred_fallthru
        _
    $region6: #{tpu_custom_call.1} parent=1 // loop_footer
      %s18 = sadd.s32 1, %s14
    $region7: #{tpu_custom_call.1} parent=1 // loop_footer_branch
      %13 = sbr.rel target = $region3
    $region8: #{tpu_custom_call.1} parent=1 // loop_exit
      _
    %4086 = vsyncpa [#allocation6], 1
    %s4087 = scalar_lea.sflag [#allocation6], 1
    %4088 = vsyncpa %s4087, 1

</llo_original>
